<compile_context>
chip_gen: v5e
topology: v5e:2x2
jax: 0.10.0
libtpu: 0.0.40
codegen_flags: <defaults>
</compile_context>

<pallas_src>
import functools

import jax
import jax.numpy as jnp
from jax.experimental import pallas as pl
from jax.experimental.pallas import tpu as pltpu


def _round_up(x, m):
    return ((x + m - 1) // m) * m


def _pick_tile(hw):
    """Lane tile for the flattened spatial axis (multiple of 128, at most 1024)."""
    return min(1024, _round_up(hw, 128))


_COMPILER_PARAMS = pltpu.CompilerParams(
    dimension_semantics=("parallel", "parallel"),
    vmem_limit_bytes=32 * 1024 * 1024,   # explicit budget, safe on v5e/v6e/v7x
)


# ----------------------------------------------------------------------------
# Host-side im2col in NCHW layout: rows ordered (Cin, kh, kw) to match
# torch weight.reshape(Cout, -1); columns are the flattened output pixels.
# TODO(synk): fuse im2col into the conv kernel (halo'd tile DMA + in-kernel
# shifted slices / pltpu.roll) to avoid the k*k x HBM expansion of activations.
# ----------------------------------------------------------------------------
def _im2col_nchw(x, k, stride, pad):
    B, C, H, W = x.shape
    xp = jnp.pad(x, ((0, 0), (0, 0), (pad, pad), (pad, pad)))
    Hout = (H + 2 * pad - k) // stride + 1
    Wout = (W + 2 * pad - k) // stride + 1
    taps = []
    for dy in range(k):
        for dx in range(k):
            taps.append(xp[:, :, dy:dy + stride * Hout:stride,
                            dx:dx + stride * Wout:stride])
    pat = jnp.stack(taps, axis=2)                     # (B, C, k*k, Hout, Wout)
    return pat.reshape(B, C * k * k, Hout * Wout), Hout, Wout


# ----------------------------------------------------------------------------
# Pallas kernel 1: conv as  W(Cout,K) @ patches(K, tn)  + shift + optional ReLU
# (BN scale is folded into W on the host; output lanes = spatial -> lane-dense)
# ----------------------------------------------------------------------------
def _conv_kernel(p_ref, w_ref, shift_ref, o_ref, *, relu):
    acc = jnp.dot(w_ref[...], p_ref[...],
                  preferred_element_type=jnp.float32)          # (Cout, tn) f32
    acc = acc + shift_ref[...]                                  # (Cout, 1) broadcast
    if relu:
        acc = jnp.maximum(acc, 0.0)
    o_ref[...] = acc.astype(o_ref.dtype)


def conv2d_pallas(x_nchw, layer):
    """Conv (torch OIHW weight) + folded-BN affine + optional ReLU, via Pallas."""
    w = layer["w"]
    Cout, Cin, k, _ = w.shape
    stride, pad, relu = layer["stride"], layer["pad"], layer["relu"]

    x = x_nchw.astype(jnp.bfloat16)
    pat, Hout, Wout = _im2col_nchw(x, k, stride, pad)           # (B, K, HW) bf16
    B = x.shape[0]
    K = Cin * k * k
    HW = Hout * Wout
    tn = _pick_tile(HW)
    HWp = _round_up(HW, tn)
    if HWp != HW:
        pat = jnp.pad(pat, ((0, 0), (0, 0), (0, HWp - HW)))

    # Fold BN scale into the weights; kernel only adds the shift.
    wmat = (w.reshape(Cout, K) * layer["scale"][:, None]).astype(jnp.bfloat16)
    shift = layer["shift"].reshape(Cout, 1).astype(jnp.float32)

    out = pl.pallas_call(
        functools.partial(_conv_kernel, relu=relu),
        out_shape=jax.ShapeDtypeStruct((B, Cout, HWp), jnp.bfloat16),
        grid_spec=pltpu.PrefetchScalarGridSpec(
            num_scalar_prefetch=0,
            grid=(B, HWp // tn),
            in_specs=[
                pl.BlockSpec((None, K, tn), lambda b, j: (b, 0, j)),
                pl.BlockSpec((Cout, K), lambda b, j: (0, 0)),
                pl.BlockSpec((Cout, 1), lambda b, j: (0, 0)),
            ],
            out_specs=pl.BlockSpec((None, Cout, tn), lambda b, j: (b, 0, j)),
        ),
        compiler_params=_COMPILER_PARAMS,
    )(pat, wmat, shift)
    return out[:, :, :HW].reshape(B, Cout, Hout, Wout)


# ----------------------------------------------------------------------------
# Pallas kernel 2 (fused head): 9-channel conv -> softmax over the 9 taps ->
# weighted depth propagation, all in one kernel (logits never touch HBM).
# ----------------------------------------------------------------------------
def _head_prop_kernel(p_ref, w_ref, d_ref, o_ref):
    logits = jnp.dot(w_ref[...], p_ref[...],
                     preferred_element_type=jnp.float32)        # (9, tn) f32
    m = jnp.max(logits, axis=0, keepdims=True)
    e = jnp.exp(logits - m)
    s = jnp.sum(e, axis=0, keepdims=True)
    prob = e * pl.reciprocal(s, approx=True)                    # EUP slot, ~free
    o_ref[...] = jnp.sum(prob * d_ref[...], axis=0, keepdims=True)


def head_propagate_pallas(feat_nchw, w_head, depth_nchw):
    Cout, Cin, k, _ = w_head.shape                              # (9, 2*bc, 3, 3)
    B = feat_nchw.shape[0]
    pat, Hout, Wout = _im2col_nchw(feat_nchw.astype(jnp.bfloat16), k, 1, 1)
    K = Cin * k * k
    HW = Hout * Wout
    tn = _pick_tile(HW)
    HWp = _round_up(HW, tn)
    if HWp != HW:
        pat = jnp.pad(pat, ((0, 0), (0, 0), (0, HWp - HW)))
    wmat = w_head.reshape(Cout, K).astype(jnp.bfloat16)

    # F.pad(depth, (1,1,1,1), mode='replicate') + 3x3 unfold (single-channel, tiny).
    # TODO(synk): build the 9 taps in-kernel (pltpu.roll on a padded 2-D depth tile)
    # to avoid this 9x expansion of the depth tensor.
    d = depth_nchw.astype(jnp.float32)
    dp = jnp.pad(d, ((0, 0), (0, 0), (1, 1), (1, 1)), mode="edge")
    taps = [dp[:, 0, dy:dy + Hout, dx:dx + Wout]
            for dy in range(3) for dx in range(3)]
    dunf = jnp.stack(taps, axis=1).reshape(B, 9, HW)
    if HWp != HW:
        dunf = jnp.pad(dunf, ((0, 0), (0, 0), (0, HWp - HW)))

    out = pl.pallas_call(
        _head_prop_kernel,
        out_shape=jax.ShapeDtypeStruct((B, 1, HWp), jnp.float32),
        grid_spec=pltpu.PrefetchScalarGridSpec(
            num_scalar_prefetch=0,
            grid=(B, HWp // tn),
            in_specs=[
                pl.BlockSpec((None, K, tn), lambda b, j: (b, 0, j)),
                pl.BlockSpec((Cout, K), lambda b, j: (0, 0)),
                pl.BlockSpec((None, 9, tn), lambda b, j: (b, 0, j)),
            ],
            out_specs=pl.BlockSpec((None, 1, tn), lambda b, j: (b, 0, j)),
        ),
        compiler_params=_COMPILER_PARAMS,
    )(pat, wmat, dunf)
    return out[:, :, :HW].reshape(B, 1, Hout, Wout)


# ----------------------------------------------------------------------------
# Parameter construction (deterministic, synthetic)
# ----------------------------------------------------------------------------
def _make_layer(key, cin, cout, k, stride, pad, bn, relu):
    kw, kg, kb, km, kv = jax.random.split(key, 5)
    w = jax.random.normal(kw, (cout, cin, k, k), jnp.float32) * (
        0.5 / (cin * k * k) ** 0.5)
    if bn:  # Conv2d wrapper: conv(bias=False) + BatchNorm2d (eval) + ReLU
        gamma = 1.0 + 0.1 * jax.random.normal(kg, (cout,), jnp.float32)
        beta = 0.1 * jax.random.normal(kb, (cout,), jnp.float32)
        mean = 0.1 * jax.random.normal(km, (cout,), jnp.float32)
        var = 1.0 + 0.1 * jnp.abs(jax.random.normal(kv, (cout,), jnp.float32))
        scale = gamma / jnp.sqrt(var + 1e-5)
        shift = beta - mean * scale
    else:   # plain nn.Conv2d(..., bias=False): identity affine
        scale = jnp.ones((cout,), jnp.float32)
        shift = jnp.zeros((cout,), jnp.float32)
    return dict(w=w, scale=scale, shift=shift, stride=stride, pad=pad, relu=relu)


def make_params(key, base_channels):
    bc = base_channels
    img_cfg = [  # ImageConv: conv0 (x2), conv1 (x3), conv2 (x3, last is plain conv)
        (3, bc, 3, 1, 1, True, True),
        (bc, bc, 3, 1, 1, True, True),
        (bc, 2 * bc, 5, 2, 2, True, True),
        (2 * bc, 2 * bc, 3, 1, 1, True, True),
        (2 * bc, 2 * bc, 3, 1, 1, True, True),
        (2 * bc, 4 * bc, 5, 2, 2, True, True),
        (4 * bc, 4 * bc, 3, 1, 1, True, True),
        (4 * bc, 4 * bc, 3, 1, 1, False, False),
    ]
    head_cfg = [  # PropagationNet.conv3
        (4 * bc, 2 * bc, 3, 1, 1, True, True),
        (2 * bc, 9, 3, 1, 1, False, False),
    ]
    keys = jax.random.split(key, len(img_cfg) + len(head_cfg))
    img_layers = [_make_layer(keys[i], *c) for i, c in enumerate(img_cfg)]
    head_layers = [_make_layer(keys[len(img_cfg) + i], *c)
                   for i, c in enumerate(head_cfg)]
    return dict(img_layers=img_layers, head_layers=head_layers)


# ----------------------------------------------------------------------------
# Full forward pass (PropagationNet.forward)
# ----------------------------------------------------------------------------
def propagation_net_forward(depth_nchw, img_nchw, params):
    x = img_nchw
    for layer in params["img_layers"]:
        x = conv2d_pallas(x, layer)                   # ImageConv -> conv2 features
    x = conv2d_pallas(x, params["head_layers"][0])    # conv3[0] (BN + ReLU)
    w9 = params["head_layers"][1]["w"]                # conv3[1]: plain 9-ch conv
    return head_propagate_pallas(x, w9, depth_nchw)   # fused conv+softmax+propagate


# ----------------------------------------------------------------------------
# Pure-JAX references (for correctness checks)
# ----------------------------------------------------------------------------
def _ref_conv_f32(x, layer):
    out = jax.lax.conv_general_dilated(
        x, layer["w"], window_strides=(layer["stride"], layer["stride"]),
        padding=((layer["pad"], layer["pad"]), (layer["pad"], layer["pad"])),
        dimension_numbers=("NCHW", "OIHW", "NCHW"))
    out = out * layer["scale"][None, :, None, None] + layer["shift"][None, :, None, None]
    if layer["relu"]:
        out = jnp.maximum(out, 0.0)
    return out


def _propagate_ref(logits, depth):
    prob = jax.nn.softmax(logits, axis=1)
    b, _, h, w = depth.shape
    dp = jnp.pad(depth.astype(jnp.float32), ((0, 0), (0, 0), (1, 1), (1, 1)),
                 mode="edge")
    taps = [dp[:, :, dy:dy + h, dx:dx + w] for dy in range(3) for dx in range(3)]
    dunf = jnp.concatenate(taps, axis=1).reshape(b, 9, h * w)
    res = jnp.sum(dunf * prob.reshape(b, 9, h * w), axis=1)
    return res.reshape(b, 1, h, w)


def _ref_forward_f32(depth, img, params):
    x = img.astype(jnp.float32)
    for layer in params["img_layers"]:
        x = _ref_conv_f32(x, layer)
    for layer in params["head_layers"]:
        x = _ref_conv_f32(x, layer)
    return _propagate_ref(x, depth)


def _ref_conv_bf16(x_bf16, layer):
    # mirrors the Pallas numerics: scale folded into bf16 weights, f32 accumulate,
    # f32 shift + ReLU, bf16 activations between layers.
    w = (layer["w"] * layer["scale"][:, None, None, None]).astype(jnp.bfloat16)
    out = jax.lax.conv_general_dilated(
        x_bf16, w, window_strides=(layer["stride"], layer["stride"]),
        padding=((layer["pad"], layer["pad"]), (layer["pad"], layer["pad"])),
        dimension_numbers=("NCHW", "OIHW", "NCHW"),
        preferred_element_type=jnp.float32)
    out = out + layer["shift"][None, :, None, None]
    if layer["relu"]:
        out = jnp.maximum(out, 0.0)
    return out.astype(jnp.bfloat16)


def _ref_forward_bf16(depth, img, params):
    x = img.astype(jnp.bfloat16)
    for layer in params["img_layers"]:
        x = _ref_conv_bf16(x, layer)
    x = _ref_conv_bf16(x, params["head_layers"][0])
    w9 = params["head_layers"][1]["w"].astype(jnp.bfloat16)
    logits = jax.lax.conv_general_dilated(
        x, w9, window_strides=(1, 1), padding=((1, 1), (1, 1)),
        dimension_numbers=("NCHW", "OIHW", "NCHW"),
        preferred_element_type=jnp.float32)
    return _propagate_ref(logits, depth)


if __name__ == "__main__":
    base_channels = 4
    B, H, W = 2, 16, 16
    h, w = H // 4, W // 4                      # conv2 runs at 1/4 resolution

    key = jax.random.PRNGKey(0)
    k_img, k_depth, k_param = jax.random.split(key, 3)
    img = jax.random.normal(k_img, (B, 3, H, W), jnp.float32)
    depth = 1.0 + jax.random.uniform(k_depth, (B, 1, h, w), jnp.float32)

    params = make_params(k_param, base_channels)

    fwd = jax.jit(functools.partial(propagation_net_forward, params=params))
    out = jax.block_until_ready(fwd(depth, img))
    assert out.shape == (B, 1, h, w), out.shape

    ref16 = jax.block_until_ready(_ref_forward_bf16(depth, img, params))
    ref32 = jax.block_until_ready(_ref_forward_f32(depth, img, params))
    err16 = float(jnp.max(jnp.abs(out - ref16)))
    err32 = float(jnp.max(jnp.abs(out - ref32)))
    assert err16 < 1e-2, f"mismatch vs bf16-matched reference: {err16}"
    assert err32 < 5e-2, f"mismatch vs f32 reference: {err32}"

    print("KERNEL_OK")
</pallas_src>

<mosaic_0001>
module attributes {stable_mosaic.version = 11 : i64} {
  func.func @_conv_kernel(%arg0: i32, %arg1: i32, %arg2: memref<1x27x256xbf16, #tpu.memory_space<vmem>>, %arg3: memref<4x27xbf16, #tpu.memory_space<vmem>>, %arg4: memref<4x1xf32, #tpu.memory_space<vmem>>, %arg5: memref<1x4x256xbf16, #tpu.memory_space<vmem>>) attributes {dimension_semantics = [#tpu.dimension_semantics<parallel>, #tpu.dimension_semantics<parallel>], iteration_bounds = array<i64: 2, 1>, scalar_prefetch = 0 : i64, scratch_operands = 0 : i64, tpu.core_type = #tpu.core_type<tc>, window_params = [{transform_indices = @transform_0, window_bounds = array<i64: 1, 27, 256>}, {pipeline_mode = #tpu.pipeline_mode<synchronous>, transform_indices = @transform_1, window_bounds = array<i64: 4, 27>}, {pipeline_mode = #tpu.pipeline_mode<synchronous>, transform_indices = @transform_2, window_bounds = array<i64: 4, 1>}, {transform_indices = @transform_3, window_bounds = array<i64: 1, 4, 256>}]} {
    %c0 = arith.constant 0 : index
    %c0_0 = arith.constant 0 : index
    %0 = vector.load %arg3[%c0, %c0_0] : memref<4x27xbf16, #tpu.memory_space<vmem>>, vector<4x27xbf16>
    %c0_1 = arith.constant 0 : index
    %c0_2 = arith.constant 0 : index
    %c0_3 = arith.constant 0 : index
    %1 = vector.load %arg2[%c0_1, %c0_2, %c0_3] : memref<1x27x256xbf16, #tpu.memory_space<vmem>>, vector<1x27x256xbf16>
    %2 = vector.shape_cast %1 : vector<1x27x256xbf16> to vector<27x256xbf16>
    %cst = arith.constant dense<0.000000e+00> : vector<4x256xf32>
    %3 = tpu.matmul %0, %2, %cst {dimension_numbers = #tpu.dot_dimension_numbers<[1], [0], [0], [1], [0, 0, 1, 1], [], []>} : vector<4x27xbf16>, vector<27x256xbf16>, vector<4x256xf32> -> vector<4x256xf32>
    %c0_4 = arith.constant 0 : index
    %c0_5 = arith.constant 0 : index
    %4 = vector.load %arg4[%c0_4, %c0_5] : memref<4x1xf32, #tpu.memory_space<vmem>>, vector<4x1xf32>
    %5 = vector.broadcast %4 : vector<4x1xf32> to vector<4x256xf32>
    %6 = arith.addf %3, %5 : vector<4x256xf32>
    %cst_6 = arith.constant 0.000000e+00 : f32
    %7 = vector.broadcast %cst_6 : f32 to vector<4x256xf32>
    %8 = arith.maximumf %6, %7 : vector<4x256xf32>
    %9 = arith.truncf %8 : vector<4x256xf32> to vector<4x256xbf16>
    %c0_7 = arith.constant 0 : index
    %c0_8 = arith.constant 0 : index
    %c0_9 = arith.constant 0 : index
    %10 = vector.load %arg5[%c0_7, %c0_8, %c0_9] : memref<1x4x256xbf16, #tpu.memory_space<vmem>>, vector<1x4x256xbf16>
    %11 = vector.shape_cast %10 : vector<1x4x256xbf16> to vector<4x256xbf16>
    %12 = vector.shape_cast %9 : vector<4x256xbf16> to vector<1x4x256xbf16>
    tpu.vector_store %arg5[%c0_7, %c0_8, %c0_9], %12 {strides = array<i32>} : memref<1x4x256xbf16, #tpu.memory_space<vmem>>, vector<1x4x256xbf16>,
    return
  }
  func.func @transform_0(%arg0: i32, %arg1: i32) -> (i32, i32, i32) {
    %c0_i32 = arith.constant 0 : i32
    %c0_i32_0 = arith.constant 0 : i32
    return %arg0, %c0_i32, %arg1 : i32, i32, i32
  }
  func.func @transform_1(%arg0: i32, %arg1: i32) -> (i32, i32) {
    %c0_i32 = arith.constant 0 : i32
    %c0_i32_0 = arith.constant 0 : i32
    %c0_i32_1 = arith.constant 0 : i32
    return %c0_i32, %c0_i32_0 : i32, i32
  }
  func.func @transform_2(%arg0: i32, %arg1: i32) -> (i32, i32) {
    %c0_i32 = arith.constant 0 : i32
    %c0_i32_0 = arith.constant 0 : i32
    %c0_i32_1 = arith.constant 0 : i32
    return %c0_i32, %c0_i32_0 : i32, i32
  }
  func.func @transform_3(%arg0: i32, %arg1: i32) -> (i32, i32, i32) {
    %c0_i32 = arith.constant 0 : i32
    %c0_i32_0 = arith.constant 0 : i32
    return %arg0, %c0_i32, %arg1 : i32, i32, i32
  }
}

module attributes {stable_mosaic.version = 11 : i64} {
  func.func @_conv_kernel(%arg0: i32, %arg1: i32, %arg2: memref<1x36x256xbf16, #tpu.memory_space<vmem>>, %arg3: memref<4x36xbf16, #tpu.memory_space<vmem>>, %arg4: memref<4x1xf32, #tpu.memory_space<vmem>>, %arg5: memref<1x4x256xbf16, #tpu.memory_space<vmem>>) attributes {dimension_semantics = [#tpu.dimension_semantics<parallel>, #tpu.dimension_semantics<parallel>], iteration_bounds = array<i64: 2, 1>, scalar_prefetch = 0 : i64, scratch_operands = 0 : i64, tpu.core_type = #tpu.core_type<tc>, window_params = [{transform_indices = @transform_0, window_bounds = array<i64: 1, 36, 256>}, {pipeline_mode = #tpu.pipeline_mode<synchronous>, transform_indices = @transform_1, window_bounds = array<i64: 4, 36>}, {pipeline_mode = #tpu.pipeline_mode<synchronous>, transform_indices = @transform_2, window_bounds = array<i64: 4, 1>}, {transform_indices = @transform_3, window_bounds = array<i64: 1, 4, 256>}]} {
    %c0 = arith.constant 0 : index
    %c0_0 = arith.constant 0 : index
    %0 = vector.load %arg3[%c0, %c0_0] : memref<4x36xbf16, #tpu.memory_space<vmem>>, vector<4x36xbf16>
    %c0_1 = arith.constant 0 : index
    %c0_2 = arith.constant 0 : index
    %c0_3 = arith.constant 0 : index
    %1 = vector.load %arg2[%c0_1, %c0_2, %c0_3] : memref<1x36x256xbf16, #tpu.memory_space<vmem>>, vector<1x36x256xbf16>
    %2 = vector.shape_cast %1 : vector<1x36x256xbf16> to vector<36x256xbf16>
    %cst = arith.constant dense<0.000000e+00> : vector<4x256xf32>
    %3 = tpu.matmul %0, %2, %cst {dimension_numbers = #tpu.dot_dimension_numbers<[1], [0], [0], [1], [0, 0, 1, 1], [], []>} : vector<4x36xbf16>, vector<36x256xbf16>, vector<4x256xf32> -> vector<4x256xf32>
    %c0_4 = arith.constant 0 : index
    %c0_5 = arith.constant 0 : index
    %4 = vector.load %arg4[%c0_4, %c0_5] : memref<4x1xf32, #tpu.memory_space<vmem>>, vector<4x1xf32>
    %5 = vector.broadcast %4 : vector<4x1xf32> to vector<4x256xf32>
    %6 = arith.addf %3, %5 : vector<4x256xf32>
    %cst_6 = arith.constant 0.000000e+00 : f32
    %7 = vector.broadcast %cst_6 : f32 to vector<4x256xf32>
    %8 = arith.maximumf %6, %7 : vector<4x256xf32>
    %9 = arith.truncf %8 : vector<4x256xf32> to vector<4x256xbf16>
    %c0_7 = arith.constant 0 : index
    %c0_8 = arith.constant 0 : index
    %c0_9 = arith.constant 0 : index
    %10 = vector.load %arg5[%c0_7, %c0_8, %c0_9] : memref<1x4x256xbf16, #tpu.memory_space<vmem>>, vector<1x4x256xbf16>
    %11 = vector.shape_cast %10 : vector<1x4x256xbf16> to vector<4x256xbf16>
    %12 = vector.shape_cast %9 : vector<4x256xbf16> to vector<1x4x256xbf16>
    tpu.vector_store %arg5[%c0_7, %c0_8, %c0_9], %12 {strides = array<i32>} : memref<1x4x256xbf16, #tpu.memory_space<vmem>>, vector<1x4x256xbf16>,
    return
  }
  func.func @transform_0(%arg0: i32, %arg1: i32) -> (i32, i32, i32) {
    %c0_i32 = arith.constant 0 : i32
    %c0_i32_0 = arith.constant 0 : i32
    return %arg0, %c0_i32, %arg1 : i32, i32, i32
  }
  func.func @transform_1(%arg0: i32, %arg1: i32) -> (i32, i32) {
    %c0_i32 = arith.constant 0 : i32
    %c0_i32_0 = arith.constant 0 : i32
    %c0_i32_1 = arith.constant 0 : i32
    return %c0_i32, %c0_i32_0 : i32, i32
  }
  func.func @transform_2(%arg0: i32, %arg1: i32) -> (i32, i32) {
    %c0_i32 = arith.constant 0 : i32
    %c0_i32_0 = arith.constant 0 : i32
    %c0_i32_1 = arith.constant 0 : i32
    return %c0_i32, %c0_i32_0 : i32, i32
  }
  func.func @transform_3(%arg0: i32, %arg1: i32) -> (i32, i32, i32) {
    %c0_i32 = arith.constant 0 : i32
    %c0_i32_0 = arith.constant 0 : i32
    return %arg0, %c0_i32, %arg1 : i32, i32, i32
  }
}

module attributes {stable_mosaic.version = 11 : i64} {
  func.func @_conv_kernel(%arg0: i32, %arg1: i32, %arg2: memref<1x100x128xbf16, #tpu.memory_space<vmem>>, %arg3: memref<8x100xbf16, #tpu.memory_space<vmem>>, %arg4: memref<8x1xf32, #tpu.memory_space<vmem>>, %arg5: memref<1x8x128xbf16, #tpu.memory_space<vmem>>) attributes {dimension_semantics = [#tpu.dimension_semantics<parallel>, #tpu.dimension_semantics<parallel>], iteration_bounds = array<i64: 2, 1>, scalar_prefetch = 0 : i64, scratch_operands = 0 : i64, tpu.core_type = #tpu.core_type<tc>, window_params = [{transform_indices = @transform_0, window_bounds = array<i64: 1, 100, 128>}, {pipeline_mode = #tpu.pipeline_mode<synchronous>, transform_indices = @transform_1, window_bounds = array<i64: 8, 100>}, {pipeline_mode = #tpu.pipeline_mode<synchronous>, transform_indices = @transform_2, window_bounds = array<i64: 8, 1>}, {transform_indices = @transform_3, window_bounds = array<i64: 1, 8, 128>}]} {
    %c0 = arith.constant 0 : index
    %c0_0 = arith.constant 0 : index
    %0 = vector.load %arg3[%c0, %c0_0] : memref<8x100xbf16, #tpu.memory_space<vmem>>, vector<8x100xbf16>
    %c0_1 = arith.constant 0 : index
    %c0_2 = arith.constant 0 : index
    %c0_3 = arith.constant 0 : index
    %1 = vector.load %arg2[%c0_1, %c0_2, %c0_3] : memref<1x100x128xbf16, #tpu.memory_space<vmem>>, vector<1x100x128xbf16>
    %2 = vector.shape_cast %1 : vector<1x100x128xbf16> to vector<100x128xbf16>
    %cst = arith.constant dense<0.000000e+00> : vector<8x128xf32>
    %3 = tpu.matmul %0, %2, %cst {dimension_numbers = #tpu.dot_dimension_numbers<[1], [0], [0], [1], [0, 0, 1, 1], [], []>} : vector<8x100xbf16>, vector<100x128xbf16>, vector<8x128xf32> -> vector<8x128xf32>
    %c0_4 = arith.constant 0 : index
    %c0_5 = arith.constant 0 : index
    %4 = vector.load %arg4[%c0_4, %c0_5] : memref<8x1xf32, #tpu.memory_space<vmem>>, vector<8x1xf32>
    %5 = vector.broadcast %4 : vector<8x1xf32> to vector<8x128xf32>
    %6 = arith.addf %3, %5 : vector<8x128xf32>
    %cst_6 = arith.constant 0.000000e+00 : f32
    %7 = vector.broadcast %cst_6 : f32 to vector<8x128xf32>
    %8 = arith.maximumf %6, %7 : vector<8x128xf32>
    %9 = arith.truncf %8 : vector<8x128xf32> to vector<8x128xbf16>
    %c0_7 = arith.constant 0 : index
    %c0_8 = arith.constant 0 : index
    %c0_9 = arith.constant 0 : index
    %10 = vector.load %arg5[%c0_7, %c0_8, %c0_9] : memref<1x8x128xbf16, #tpu.memory_space<vmem>>, vector<1x8x128xbf16>
    %11 = vector.shape_cast %10 : vector<1x8x128xbf16> to vector<8x128xbf16>
    %12 = vector.shape_cast %9 : vector<8x128xbf16> to vector<1x8x128xbf16>
    tpu.vector_store %arg5[%c0_7, %c0_8, %c0_9], %12 {strides = array<i32>} : memref<1x8x128xbf16, #tpu.memory_space<vmem>>, vector<1x8x128xbf16>,
    return
  }
  func.func @transform_0(%arg0: i32, %arg1: i32) -> (i32, i32, i32) {
    %c0_i32 = arith.constant 0 : i32
    %c0_i32_0 = arith.constant 0 : i32
    return %arg0, %c0_i32, %arg1 : i32, i32, i32
  }
  func.func @transform_1(%arg0: i32, %arg1: i32) -> (i32, i32) {
    %c0_i32 = arith.constant 0 : i32
    %c0_i32_0 = arith.constant 0 : i32
    %c0_i32_1 = arith.constant 0 : i32
    return %c0_i32, %c0_i32_0 : i32, i32
  }
  func.func @transform_2(%arg0: i32, %arg1: i32) -> (i32, i32) {
    %c0_i32 = arith.constant 0 : i32
    %c0_i32_0 = arith.constant 0 : i32
    %c0_i32_1 = arith.constant 0 : i32
    return %c0_i32, %c0_i32_0 : i32, i32
  }
  func.func @transform_3(%arg0: i32, %arg1: i32) -> (i32, i32, i32) {
    %c0_i32 = arith.constant 0 : i32
    %c0_i32_0 = arith.constant 0 : i32
    return %arg0, %c0_i32, %arg1 : i32, i32, i32
  }
}

module attributes {stable_mosaic.version = 11 : i64} {
  func.func @_conv_kernel(%arg0: i32, %arg1: i32, %arg2: memref<1x72x128xbf16, #tpu.memory_space<vmem>>, %arg3: memref<8x72xbf16, #tpu.memory_space<vmem>>, %arg4: memref<8x1xf32, #tpu.memory_space<vmem>>, %arg5: memref<1x8x128xbf16, #tpu.memory_space<vmem>>) attributes {dimension_semantics = [#tpu.dimension_semantics<parallel>, #tpu.dimension_semantics<parallel>], iteration_bounds = array<i64: 2, 1>, scalar_prefetch = 0 : i64, scratch_operands = 0 : i64, tpu.core_type = #tpu.core_type<tc>, window_params = [{transform_indices = @transform_0, window_bounds = array<i64: 1, 72, 128>}, {pipeline_mode = #tpu.pipeline_mode<synchronous>, transform_indices = @transform_1, window_bounds = array<i64: 8, 72>}, {pipeline_mode = #tpu.pipeline_mode<synchronous>, transform_indices = @transform_2, window_bounds = array<i64: 8, 1>}, {transform_indices = @transform_3, window_bounds = array<i64: 1, 8, 128>}]} {
    %c0 = arith.constant 0 : index
    %c0_0 = arith.constant 0 : index
    %0 = vector.load %arg3[%c0, %c0_0] : memref<8x72xbf16, #tpu.memory_space<vmem>>, vector<8x72xbf16>
    %c0_1 = arith.constant 0 : index
    %c0_2 = arith.constant 0 : index
    %c0_3 = arith.constant 0 : index
    %1 = vector.load %arg2[%c0_1, %c0_2, %c0_3] : memref<1x72x128xbf16, #tpu.memory_space<vmem>>, vector<1x72x128xbf16>
    %2 = vector.shape_cast %1 : vector<1x72x128xbf16> to vector<72x128xbf16>
    %cst = arith.constant dense<0.000000e+00> : vector<8x128xf32>
    %3 = tpu.matmul %0, %2, %cst {dimension_numbers = #tpu.dot_dimension_numbers<[1], [0], [0], [1], [0, 0, 1, 1], [], []>} : vector<8x72xbf16>, vector<72x128xbf16>, vector<8x128xf32> -> vector<8x128xf32>
    %c0_4 = arith.constant 0 : index
    %c0_5 = arith.constant 0 : index
    %4 = vector.load %arg4[%c0_4, %c0_5] : memref<8x1xf32, #tpu.memory_space<vmem>>, vector<8x1xf32>
    %5 = vector.broadcast %4 : vector<8x1xf32> to vector<8x128xf32>
    %6 = arith.addf %3, %5 : vector<8x128xf32>
    %cst_6 = arith.constant 0.000000e+00 : f32
    %7 = vector.broadcast %cst_6 : f32 to vector<8x128xf32>
    %8 = arith.maximumf %6, %7 : vector<8x128xf32>
    %9 = arith.truncf %8 : vector<8x128xf32> to vector<8x128xbf16>
    %c0_7 = arith.constant 0 : index
    %c0_8 = arith.constant 0 : index
    %c0_9 = arith.constant 0 : index
    %10 = vector.load %arg5[%c0_7, %c0_8, %c0_9] : memref<1x8x128xbf16, #tpu.memory_space<vmem>>, vector<1x8x128xbf16>
    %11 = vector.shape_cast %10 : vector<1x8x128xbf16> to vector<8x128xbf16>
    %12 = vector.shape_cast %9 : vector<8x128xbf16> to vector<1x8x128xbf16>
    tpu.vector_store %arg5[%c0_7, %c0_8, %c0_9], %12 {strides = array<i32>} : memref<1x8x128xbf16, #tpu.memory_space<vmem>>, vector<1x8x128xbf16>,
    return
  }
  func.func @transform_0(%arg0: i32, %arg1: i32) -> (i32, i32, i32) {
    %c0_i32 = arith.constant 0 : i32
    %c0_i32_0 = arith.constant 0 : i32
    return %arg0, %c0_i32, %arg1 : i32, i32, i32
  }
  func.func @transform_1(%arg0: i32, %arg1: i32) -> (i32, i32) {
    %c0_i32 = arith.constant 0 : i32
    %c0_i32_0 = arith.constant 0 : i32
    %c0_i32_1 = arith.constant 0 : i32
    return %c0_i32, %c0_i32_0 : i32, i32
  }
  func.func @transform_2(%arg0: i32, %arg1: i32) -> (i32, i32) {
    %c0_i32 = arith.constant 0 : i32
    %c0_i32_0 = arith.constant 0 : i32
    %c0_i32_1 = arith.constant 0 : i32
    return %c0_i32, %c0_i32_0 : i32, i32
  }
  func.func @transform_3(%arg0: i32, %arg1: i32) -> (i32, i32, i32) {
    %c0_i32 = arith.constant 0 : i32
    %c0_i32_0 = arith.constant 0 : i32
    return %arg0, %c0_i32, %arg1 : i32, i32, i32
  }
}

module attributes {stable_mosaic.version = 11 : i64} {
  func.func @_conv_kernel(%arg0: i32, %arg1: i32, %arg2: memref<1x200x128xbf16, #tpu.memory_space<vmem>>, %arg3: memref<16x200xbf16, #tpu.memory_space<vmem>>, %arg4: memref<16x1xf32, #tpu.memory_space<vmem>>, %arg5: memref<1x16x128xbf16, #tpu.memory_space<vmem>>) attributes {dimension_semantics = [#tpu.dimension_semantics<parallel>, #tpu.dimension_semantics<parallel>], iteration_bounds = array<i64: 2, 1>, scalar_prefetch = 0 : i64, scratch_operands = 0 : i64, tpu.core_type = #tpu.core_type<tc>, window_params = [{transform_indices = @transform_0, window_bounds = array<i64: 1, 200, 128>}, {pipeline_mode = #tpu.pipeline_mode<synchronous>, transform_indices = @transform_1, window_bounds = array<i64: 16, 200>}, {pipeline_mode = #tpu.pipeline_mode<synchronous>, transform_indices = @transform_2, window_bounds = array<i64: 16, 1>}, {transform_indices = @transform_3, window_bounds = array<i64: 1, 16, 128>}]} {
    %c0 = arith.constant 0 : index
    %c0_0 = arith.constant 0 : index
    %0 = vector.load %arg3[%c0, %c0_0] : memref<16x200xbf16, #tpu.memory_space<vmem>>, vector<16x200xbf16>
    %c0_1 = arith.constant 0 : index
    %c0_2 = arith.constant 0 : index
    %c0_3 = arith.constant 0 : index
    %1 = vector.load %arg2[%c0_1, %c0_2, %c0_3] : memref<1x200x128xbf16, #tpu.memory_space<vmem>>, vector<1x200x128xbf16>
    %2 = vector.shape_cast %1 : vector<1x200x128xbf16> to vector<200x128xbf16>
    %cst = arith.constant dense<0.000000e+00> : vector<16x128xf32>
    %3 = tpu.matmul %0, %2, %cst {dimension_numbers = #tpu.dot_dimension_numbers<[1], [0], [0], [1], [0, 0, 1, 1], [], []>} : vector<16x200xbf16>, vector<200x128xbf16>, vector<16x128xf32> -> vector<16x128xf32>
    %c0_4 = arith.constant 0 : index
    %c0_5 = arith.constant 0 : index
    %4 = vector.load %arg4[%c0_4, %c0_5] : memref<16x1xf32, #tpu.memory_space<vmem>>, vector<16x1xf32>
    %5 = vector.broadcast %4 : vector<16x1xf32> to vector<16x128xf32>
    %6 = arith.addf %3, %5 : vector<16x128xf32>
    %cst_6 = arith.constant 0.000000e+00 : f32
    %7 = vector.broadcast %cst_6 : f32 to vector<16x128xf32>
    %8 = arith.maximumf %6, %7 : vector<16x128xf32>
    %9 = arith.truncf %8 : vector<16x128xf32> to vector<16x128xbf16>
    %c0_7 = arith.constant 0 : index
    %c0_8 = arith.constant 0 : index
    %c0_9 = arith.constant 0 : index
    %10 = vector.load %arg5[%c0_7, %c0_8, %c0_9] : memref<1x16x128xbf16, #tpu.memory_space<vmem>>, vector<1x16x128xbf16>
    %11 = vector.shape_cast %10 : vector<1x16x128xbf16> to vector<16x128xbf16>
    %12 = vector.shape_cast %9 : vector<16x128xbf16> to vector<1x16x128xbf16>
    tpu.vector_store %arg5[%c0_7, %c0_8, %c0_9], %12 {strides = array<i32>} : memref<1x16x128xbf16, #tpu.memory_space<vmem>>, vector<1x16x128xbf16>,
    return
  }
  func.func @transform_0(%arg0: i32, %arg1: i32) -> (i32, i32, i32) {
    %c0_i32 = arith.constant 0 : i32
    %c0_i32_0 = arith.constant 0 : i32
    return %arg0, %c0_i32, %arg1 : i32, i32, i32
  }
  func.func @transform_1(%arg0: i32, %arg1: i32) -> (i32, i32) {
    %c0_i32 = arith.constant 0 : i32
    %c0_i32_0 = arith.constant 0 : i32
    %c0_i32_1 = arith.constant 0 : i32
    return %c0_i32, %c0_i32_0 : i32, i32
  }
  func.func @transform_2(%arg0: i32, %arg1: i32) -> (i32, i32) {
    %c0_i32 = arith.constant 0 : i32
    %c0_i32_0 = arith.constant 0 : i32
    %c0_i32_1 = arith.constant 0 : i32
    return %c0_i32, %c0_i32_0 : i32, i32
  }
  func.func @transform_3(%arg0: i32, %arg1: i32) -> (i32, i32, i32) {
    %c0_i32 = arith.constant 0 : i32
    %c0_i32_0 = arith.constant 0 : i32
    return %arg0, %c0_i32, %arg1 : i32, i32, i32
  }
}

module attributes {stable_mosaic.version = 11 : i64} {
  func.func @_conv_kernel(%arg0: i32, %arg1: i32, %arg2: memref<1x144x128xbf16, #tpu.memory_space<vmem>>, %arg3: memref<16x144xbf16, #tpu.memory_space<vmem>>, %arg4: memref<16x1xf32, #tpu.memory_space<vmem>>, %arg5: memref<1x16x128xbf16, #tpu.memory_space<vmem>>) attributes {dimension_semantics = [#tpu.dimension_semantics<parallel>, #tpu.dimension_semantics<parallel>], iteration_bounds = array<i64: 2, 1>, scalar_prefetch = 0 : i64, scratch_operands = 0 : i64, tpu.core_type = #tpu.core_type<tc>, window_params = [{transform_indices = @transform_0, window_bounds = array<i64: 1, 144, 128>}, {pipeline_mode = #tpu.pipeline_mode<synchronous>, transform_indices = @transform_1, window_bounds = array<i64: 16, 144>}, {pipeline_mode = #tpu.pipeline_mode<synchronous>, transform_indices = @transform_2, window_bounds = array<i64: 16, 1>}, {transform_indices = @transform_3, window_bounds = array<i64: 1, 16, 128>}]} {
    %c0 = arith.constant 0 : index
    %c0_0 = arith.constant 0 : index
    %0 = vector.load %arg3[%c0, %c0_0] : memref<16x144xbf16, #tpu.memory_space<vmem>>, vector<16x144xbf16>
    %c0_1 = arith.constant 0 : index
    %c0_2 = arith.constant 0 : index
    %c0_3 = arith.constant 0 : index
    %1 = vector.load %arg2[%c0_1, %c0_2, %c0_3] : memref<1x144x128xbf16, #tpu.memory_space<vmem>>, vector<1x144x128xbf16>
    %2 = vector.shape_cast %1 : vector<1x144x128xbf16> to vector<144x128xbf16>
    %cst = arith.constant dense<0.000000e+00> : vector<16x128xf32>
    %3 = tpu.matmul %0, %2, %cst {dimension_numbers = #tpu.dot_dimension_numbers<[1], [0], [0], [1], [0, 0, 1, 1], [], []>} : vector<16x144xbf16>, vector<144x128xbf16>, vector<16x128xf32> -> vector<16x128xf32>
    %c0_4 = arith.constant 0 : index
    %c0_5 = arith.constant 0 : index
    %4 = vector.load %arg4[%c0_4, %c0_5] : memref<16x1xf32, #tpu.memory_space<vmem>>, vector<16x1xf32>
    %5 = vector.broadcast %4 : vector<16x1xf32> to vector<16x128xf32>
    %6 = arith.addf %3, %5 : vector<16x128xf32>
    %cst_6 = arith.constant 0.000000e+00 : f32
    %7 = vector.broadcast %cst_6 : f32 to vector<16x128xf32>
    %8 = arith.maximumf %6, %7 : vector<16x128xf32>
    %9 = arith.truncf %8 : vector<16x128xf32> to vector<16x128xbf16>
    %c0_7 = arith.constant 0 : index
    %c0_8 = arith.constant 0 : index
    %c0_9 = arith.constant 0 : index
    %10 = vector.load %arg5[%c0_7, %c0_8, %c0_9] : memref<1x16x128xbf16, #tpu.memory_space<vmem>>, vector<1x16x128xbf16>
    %11 = vector.shape_cast %10 : vector<1x16x128xbf16> to vector<16x128xbf16>
    %12 = vector.shape_cast %9 : vector<16x128xbf16> to vector<1x16x128xbf16>
    tpu.vector_store %arg5[%c0_7, %c0_8, %c0_9], %12 {strides = array<i32>} : memref<1x16x128xbf16, #tpu.memory_space<vmem>>, vector<1x16x128xbf16>,
    return
  }
  func.func @transform_0(%arg0: i32, %arg1: i32) -> (i32, i32, i32) {
    %c0_i32 = arith.constant 0 : i32
    %c0_i32_0 = arith.constant 0 : i32
    return %arg0, %c0_i32, %arg1 : i32, i32, i32
  }
  func.func @transform_1(%arg0: i32, %arg1: i32) -> (i32, i32) {
    %c0_i32 = arith.constant 0 : i32
    %c0_i32_0 = arith.constant 0 : i32
    %c0_i32_1 = arith.constant 0 : i32
    return %c0_i32, %c0_i32_0 : i32, i32
  }
  func.func @transform_2(%arg0: i32, %arg1: i32) -> (i32, i32) {
    %c0_i32 = arith.constant 0 : i32
    %c0_i32_0 = arith.constant 0 : i32
    %c0_i32_1 = arith.constant 0 : i32
    return %c0_i32, %c0_i32_0 : i32, i32
  }
  func.func @transform_3(%arg0: i32, %arg1: i32) -> (i32, i32, i32) {
    %c0_i32 = arith.constant 0 : i32
    %c0_i32_0 = arith.constant 0 : i32
    return %arg0, %c0_i32, %arg1 : i32, i32, i32
  }
}

module attributes {stable_mosaic.version = 11 : i64} {
  func.func @_conv_kernel(%arg0: i32, %arg1: i32, %arg2: memref<1x144x128xbf16, #tpu.memory_space<vmem>>, %arg3: memref<16x144xbf16, #tpu.memory_space<vmem>>, %arg4: memref<16x1xf32, #tpu.memory_space<vmem>>, %arg5: memref<1x16x128xbf16, #tpu.memory_space<vmem>>) attributes {dimension_semantics = [#tpu.dimension_semantics<parallel>, #tpu.dimension_semantics<parallel>], iteration_bounds = array<i64: 2, 1>, scalar_prefetch = 0 : i64, scratch_operands = 0 : i64, tpu.core_type = #tpu.core_type<tc>, window_params = [{transform_indices = @transform_0, window_bounds = array<i64: 1, 144, 128>}, {pipeline_mode = #tpu.pipeline_mode<synchronous>, transform_indices = @transform_1, window_bounds = array<i64: 16, 144>}, {pipeline_mode = #tpu.pipeline_mode<synchronous>, transform_indices = @transform_2, window_bounds = array<i64: 16, 1>}, {transform_indices = @transform_3, window_bounds = array<i64: 1, 16, 128>}]} {
    %c0 = arith.constant 0 : index
    %c0_0 = arith.constant 0 : index
    %0 = vector.load %arg3[%c0, %c0_0] : memref<16x144xbf16, #tpu.memory_space<vmem>>, vector<16x144xbf16>
    %c0_1 = arith.constant 0 : index
    %c0_2 = arith.constant 0 : index
    %c0_3 = arith.constant 0 : index
    %1 = vector.load %arg2[%c0_1, %c0_2, %c0_3] : memref<1x144x128xbf16, #tpu.memory_space<vmem>>, vector<1x144x128xbf16>
    %2 = vector.shape_cast %1 : vector<1x144x128xbf16> to vector<144x128xbf16>
    %cst = arith.constant dense<0.000000e+00> : vector<16x128xf32>
    %3 = tpu.matmul %0, %2, %cst {dimension_numbers = #tpu.dot_dimension_numbers<[1], [0], [0], [1], [0, 0, 1, 1], [], []>} : vector<16x144xbf16>, vector<144x128xbf16>, vector<16x128xf32> -> vector<16x128xf32>
    %c0_4 = arith.constant 0 : index
    %c0_5 = arith.constant 0 : index
    %4 = vector.load %arg4[%c0_4, %c0_5] : memref<16x1xf32, #tpu.memory_space<vmem>>, vector<16x1xf32>
    %5 = vector.broadcast %4 : vector<16x1xf32> to vector<16x128xf32>
    %6 = arith.addf %3, %5 : vector<16x128xf32>
    %7 = arith.truncf %6 : vector<16x128xf32> to vector<16x128xbf16>
    %c0_6 = arith.constant 0 : index
    %c0_7 = arith.constant 0 : index
    %c0_8 = arith.constant 0 : index
    %8 = vector.load %arg5[%c0_6, %c0_7, %c0_8] : memref<1x16x128xbf16, #tpu.memory_space<vmem>>, vector<1x16x128xbf16>
    %9 = vector.shape_cast %8 : vector<1x16x128xbf16> to vector<16x128xbf16>
    %10 = vector.shape_cast %7 : vector<16x128xbf16> to vector<1x16x128xbf16>
    tpu.vector_store %arg5[%c0_6, %c0_7, %c0_8], %10 {strides = array<i32>} : memref<1x16x128xbf16, #tpu.memory_space<vmem>>, vector<1x16x128xbf16>,
    return
  }
  func.func @transform_0(%arg0: i32, %arg1: i32) -> (i32, i32, i32) {
    %c0_i32 = arith.constant 0 : i32
    %c0_i32_0 = arith.constant 0 : i32
    return %arg0, %c0_i32, %arg1 : i32, i32, i32
  }
  func.func @transform_1(%arg0: i32, %arg1: i32) -> (i32, i32) {
    %c0_i32 = arith.constant 0 : i32
    %c0_i32_0 = arith.constant 0 : i32
    %c0_i32_1 = arith.constant 0 : i32
    return %c0_i32, %c0_i32_0 : i32, i32
  }
  func.func @transform_2(%arg0: i32, %arg1: i32) -> (i32, i32) {
    %c0_i32 = arith.constant 0 : i32
    %c0_i32_0 = arith.constant 0 : i32
    %c0_i32_1 = arith.constant 0 : i32
    return %c0_i32, %c0_i32_0 : i32, i32
  }
  func.func @transform_3(%arg0: i32, %arg1: i32) -> (i32, i32, i32) {
    %c0_i32 = arith.constant 0 : i32
    %c0_i32_0 = arith.constant 0 : i32
    return %arg0, %c0_i32, %arg1 : i32, i32, i32
  }
}

module attributes {stable_mosaic.version = 11 : i64} {
  func.func @_conv_kernel(%arg0: i32, %arg1: i32, %arg2: memref<1x144x128xbf16, #tpu.memory_space<vmem>>, %arg3: memref<8x144xbf16, #tpu.memory_space<vmem>>, %arg4: memref<8x1xf32, #tpu.memory_space<vmem>>, %arg5: memref<1x8x128xbf16, #tpu.memory_space<vmem>>) attributes {dimension_semantics = [#tpu.dimension_semantics<parallel>, #tpu.dimension_semantics<parallel>], iteration_bounds = array<i64: 2, 1>, scalar_prefetch = 0 : i64, scratch_operands = 0 : i64, tpu.core_type = #tpu.core_type<tc>, window_params = [{transform_indices = @transform_0, window_bounds = array<i64: 1, 144, 128>}, {pipeline_mode = #tpu.pipeline_mode<synchronous>, transform_indices = @transform_1, window_bounds = array<i64: 8, 144>}, {pipeline_mode = #tpu.pipeline_mode<synchronous>, transform_indices = @transform_2, window_bounds = array<i64: 8, 1>}, {transform_indices = @transform_3, window_bounds = array<i64: 1, 8, 128>}]} {
    %c0 = arith.constant 0 : index
    %c0_0 = arith.constant 0 : index
    %0 = vector.load %arg3[%c0, %c0_0] : memref<8x144xbf16, #tpu.memory_space<vmem>>, vector<8x144xbf16>
    %c0_1 = arith.constant 0 : index
    %c0_2 = arith.constant 0 : index
    %c0_3 = arith.constant 0 : index
    %1 = vector.load %arg2[%c0_1, %c0_2, %c0_3] : memref<1x144x128xbf16, #tpu.memory_space<vmem>>, vector<1x144x128xbf16>
    %2 = vector.shape_cast %1 : vector<1x144x128xbf16> to vector<144x128xbf16>
    %cst = arith.constant dense<0.000000e+00> : vector<8x128xf32>
    %3 = tpu.matmul %0, %2, %cst {dimension_numbers = #tpu.dot_dimension_numbers<[1], [0], [0], [1], [0, 0, 1, 1], [], []>} : vector<8x144xbf16>, vector<144x128xbf16>, vector<8x128xf32> -> vector<8x128xf32>
    %c0_4 = arith.constant 0 : index
    %c0_5 = arith.constant 0 : index
    %4 = vector.load %arg4[%c0_4, %c0_5] : memref<8x1xf32, #tpu.memory_space<vmem>>, vector<8x1xf32>
    %5 = vector.broadcast %4 : vector<8x1xf32> to vector<8x128xf32>
    %6 = arith.addf %3, %5 : vector<8x128xf32>
    %cst_6 = arith.constant 0.000000e+00 : f32
    %7 = vector.broadcast %cst_6 : f32 to vector<8x128xf32>
    %8 = arith.maximumf %6, %7 : vector<8x128xf32>
    %9 = arith.truncf %8 : vector<8x128xf32> to vector<8x128xbf16>
    %c0_7 = arith.constant 0 : index
    %c0_8 = arith.constant 0 : index
    %c0_9 = arith.constant 0 : index
    %10 = vector.load %arg5[%c0_7, %c0_8, %c0_9] : memref<1x8x128xbf16, #tpu.memory_space<vmem>>, vector<1x8x128xbf16>
    %11 = vector.shape_cast %10 : vector<1x8x128xbf16> to vector<8x128xbf16>
    %12 = vector.shape_cast %9 : vector<8x128xbf16> to vector<1x8x128xbf16>
    tpu.vector_store %arg5[%c0_7, %c0_8, %c0_9], %12 {strides = array<i32>} : memref<1x8x128xbf16, #tpu.memory_space<vmem>>, vector<1x8x128xbf16>,
    return
  }
  func.func @transform_0(%arg0: i32, %arg1: i32) -> (i32, i32, i32) {
    %c0_i32 = arith.constant 0 : i32
    %c0_i32_0 = arith.constant 0 : i32
    return %arg0, %c0_i32, %arg1 : i32, i32, i32
  }
  func.func @transform_1(%arg0: i32, %arg1: i32) -> (i32, i32) {
    %c0_i32 = arith.constant 0 : i32
    %c0_i32_0 = arith.constant 0 : i32
    %c0_i32_1 = arith.constant 0 : i32
    return %c0_i32, %c0_i32_0 : i32, i32
  }
  func.func @transform_2(%arg0: i32, %arg1: i32) -> (i32, i32) {
    %c0_i32 = arith.constant 0 : i32
    %c0_i32_0 = arith.constant 0 : i32
    %c0_i32_1 = arith.constant 0 : i32
    return %c0_i32, %c0_i32_0 : i32, i32
  }
  func.func @transform_3(%arg0: i32, %arg1: i32) -> (i32, i32, i32) {
    %c0_i32 = arith.constant 0 : i32
    %c0_i32_0 = arith.constant 0 : i32
    return %arg0, %c0_i32, %arg1 : i32, i32, i32
  }
}

module attributes {stable_mosaic.version = 11 : i64} {
  func.func @_head_prop_kernel(%arg0: i32, %arg1: i32, %arg2: memref<1x72x128xbf16, #tpu.memory_space<vmem>>, %arg3: memref<9x72xbf16, #tpu.memory_space<vmem>>, %arg4: memref<1x9x128xf32, #tpu.memory_space<vmem>>, %arg5: memref<1x1x128xf32, #tpu.memory_space<vmem>>) attributes {dimension_semantics = [#tpu.dimension_semantics<parallel>, #tpu.dimension_semantics<parallel>], iteration_bounds = array<i64: 2, 1>, scalar_prefetch = 0 : i64, scratch_operands = 0 : i64, tpu.core_type = #tpu.core_type<tc>, window_params = [{transform_indices = @transform_0, window_bounds = array<i64: 1, 72, 128>}, {pipeline_mode = #tpu.pipeline_mode<synchronous>, transform_indices = @transform_1, window_bounds = array<i64: 9, 72>}, {transform_indices = @transform_2, window_bounds = array<i64: 1, 9, 128>}, {transform_indices = @transform_3, window_bounds = array<i64: 1, 1, 128>}]} {
    %c0 = arith.constant 0 : index
    %c0_0 = arith.constant 0 : index
    %0 = vector.load %arg3[%c0, %c0_0] : memref<9x72xbf16, #tpu.memory_space<vmem>>, vector<9x72xbf16>
    %c0_1 = arith.constant 0 : index
    %c0_2 = arith.constant 0 : index
    %c0_3 = arith.constant 0 : index
    %1 = vector.load %arg2[%c0_1, %c0_2, %c0_3] : memref<1x72x128xbf16, #tpu.memory_space<vmem>>, vector<1x72x128xbf16>
    %2 = vector.shape_cast %1 : vector<1x72x128xbf16> to vector<72x128xbf16>
    %cst = arith.constant dense<0.000000e+00> : vector<9x128xf32>
    %3 = tpu.matmul %0, %2, %cst {dimension_numbers = #tpu.dot_dimension_numbers<[1], [0], [0], [1], [0, 0, 1, 1], [], []>} : vector<9x72xbf16>, vector<72x128xbf16>, vector<9x128xf32> -> vector<9x128xf32>
    %cst_4 = arith.constant dense<0xFF800000> : vector<128xf32>
    %4 = vector.multi_reduction <maximumf>, %3, %cst_4 [0] : vector<9x128xf32> to vector<128xf32>
    %5 = vector.shape_cast %4 : vector<128xf32> to vector<1x128xf32>
    %6 = vector.broadcast %5 : vector<1x128xf32> to vector<9x128xf32>
    %7 = arith.subf %3, %6 : vector<9x128xf32>
    %8 = math.exp %7 : vector<9x128xf32>
    %cst_5 = arith.constant dense<0.000000e+00> : vector<128xf32>
    %9 = vector.multi_reduction <add>, %8, %cst_5 [0] : vector<9x128xf32> to vector<128xf32>
    %10 = vector.shape_cast %9 : vector<128xf32> to vector<1x128xf32>
    %11 = tpu.reciprocal %10 {approx = true} : vector<1x128xf32> -> vector<1x128xf32>
    %12 = vector.broadcast %11 : vector<1x128xf32> to vector<9x128xf32>
    %13 = arith.mulf %8, %12 : vector<9x128xf32>
    %c0_6 = arith.constant 0 : index
    %c0_7 = arith.constant 0 : index
    %c0_8 = arith.constant 0 : index
    %14 = vector.load %arg4[%c0_6, %c0_7, %c0_8] : memref<1x9x128xf32, #tpu.memory_space<vmem>>, vector<1x9x128xf32>
    %15 = vector.shape_cast %14 : vector<1x9x128xf32> to vector<9x128xf32>
    %16 = arith.mulf %13, %15 : vector<9x128xf32>
    %cst_9 = arith.constant dense<0.000000e+00> : vector<128xf32>
    %17 = vector.multi_reduction <add>, %16, %cst_9 [0] : vector<9x128xf32> to vector<128xf32>
    %18 = vector.shape_cast %17 : vector<128xf32> to vector<1x128xf32>
    %c0_10 = arith.constant 0 : index
    %c0_11 = arith.constant 0 : index
    %c0_12 = arith.constant 0 : index
    %19 = vector.load %arg5[%c0_10, %c0_11, %c0_12] : memref<1x1x128xf32, #tpu.memory_space<vmem>>, vector<1x1x128xf32>
    %20 = vector.shape_cast %19 : vector<1x1x128xf32> to vector<1x128xf32>
    %21 = vector.shape_cast %18 : vector<1x128xf32> to vector<1x1x128xf32>
    tpu.vector_store %arg5[%c0_10, %c0_11, %c0_12], %21 {strides = array<i32>} : memref<1x1x128xf32, #tpu.memory_space<vmem>>, vector<1x1x128xf32>,
    return
  }
  func.func @transform_0(%arg0: i32, %arg1: i32) -> (i32, i32, i32) {
    %c0_i32 = arith.constant 0 : i32
    %c0_i32_0 = arith.constant 0 : i32
    return %arg0, %c0_i32, %arg1 : i32, i32, i32
  }
  func.func @transform_1(%arg0: i32, %arg1: i32) -> (i32, i32) {
    %c0_i32 = arith.constant 0 : i32
    %c0_i32_0 = arith.constant 0 : i32
    %c0_i32_1 = arith.constant 0 : i32
    return %c0_i32, %c0_i32_0 : i32, i32
  }
  func.func @transform_2(%arg0: i32, %arg1: i32) -> (i32, i32, i32) {
    %c0_i32 = arith.constant 0 : i32
    %c0_i32_0 = arith.constant 0 : i32
    return %arg0, %c0_i32, %arg1 : i32, i32, i32
  }
  func.func @transform_3(%arg0: i32, %arg1: i32) -> (i32, i32, i32) {
    %c0_i32 = arith.constant 0 : i32
    %c0_i32_0 = arith.constant 0 : i32
    return %arg0, %c0_i32, %arg1 : i32, i32, i32
  }
}

</mosaic_0001>

<llo_original>
// kernel: propagation_net_forward.10
$region0: #{propagation_net_forward.10}
  #allocation0 [shape = 'u32[]', space=smem, size = 0x4, offset = 0x4, fixed_abs, tag = 'smem constant byte address 0x4 - core index']
  #allocation1 [shape = 'u32[72,128]{1,0:T(1,128)}', space=vmem, size = 0x9000, scoped, tag = 'internal scratch']
  %s0 = inlined_call_operand.vmem [shape: bf16[2,27,256], index: 0, kind: input, shape index: {}]
  %s1 = inlined_call_operand.vmem [shape: bf16[4,27], index: 1, kind: input, shape index: {}]
  %s2 = inlined_call_operand.vmem [shape: f32[4,1], index: 2, kind: input, shape index: {}]
  %s3 = inlined_call_operand.vmem [shape: bf16[2,4,256], index: 3, kind: output, shape index: {}]
  %s4 = sld [smem:[#allocation0]]
  $region45: #{propagation_net_forward.10} parent=0
    _
  %s6 = ssub.s32 1, %s4
  %s7 = scalar_select 0, %s6, %s4
  loop: start=0, step=1, limit=4
  $region2: #{propagation_net_forward.10} parent=0 // loop_pre_header
    _
  $region3: #{propagation_net_forward.10} parent=0 // loop_header
    %s9 = sphi 0, %s13
    %p10 = scmp.ge.s32.totalorder %s9, 4
    %s16 = sphi 0, %s28
    %s17 = sphi 0, %s24
    %s18 = sphi 0, %s16
    %s19 = sphi 0, %s17
    %s20 = sphi 0, %s18
    %s21 = sphi 0, %s19
    %s33 = sphi 0, %s35
    %s36 = sphi 0, %s33
    %s37 = sphi 0, %s36
    %s53 = sphi 0, %s37
    %s57 = sphi 0, %s57
    %s59 = sphi 0, %s57
    %s60 = sphi 0, %s59
    %s74 = sphi 0, %s60
    %s78 = sphi 0, %s78
    %s80 = sphi 0, %s78
    %s81 = sphi 0, %s80
    %s95 = sphi 0, %s81
    %s103 = sphi 0, %s105
    %s106 = sphi 0, %s103
    %s107 = sphi 0, %s106
    %s123 = sphi 0, %s107
  $region4: #{propagation_net_forward.10} parent=0 // loop_header_branch
    %12 = sbr.rel (%p10) target = $region8
  $region5: #{propagation_net_forward.10} parent=0 // loop_body
    %s14 = ssub.s32 %s9, 1
    %s15 = ssub.s32 %s9, 2
    %s22 = sadd.s32 1, %s17
    %p23 = scmp.ge.s32.totalorder %s22, 1
    %s24 = scalar_select %p23, 0, %s22
    %s25 = sadd.s32 1, %s16
    %s26 = scalar_select %p23, %s25, %s16
    %p27 = scmp.ge.s32.totalorder %s26, 2
    %s28 = scalar_select %p27, 0, %s26
    %s29 = ssub.s32 %s16, %s28
    %s30 = ssub.s32 %s17, %s24
    %s31 = sor.u32 %s29, %s30
    %p32 = scmp.eq.s32.totalorder %s31, 0
    %s34 = sadd.s32 %s33, 1
    %s35 = scalar_select %p32, %s33, %s34
    %p38 = pneg %p32
    %p39 = scmp.eq.s32.totalorder %s9, 1
    %p40 = por %p38, %p39
    %p41 = scmp.ne.s32.totalorder %s33, %s36
    %p42 = scmp.eq.s32.totalorder %s9, 0
    %p43 = por %p41, %p42
    %p44 = scmp.ne.s32.totalorder %s33, %s36
    %p45 = scmp.eq.s32.totalorder %s14, 1
    %p46 = por %p44, %p45
    %p47 = scmp.ne.s32.totalorder %s36, %s37
    %p48 = scmp.eq.s32.totalorder %s14, 0
    %p49 = por %p47, %p48
    %p50 = scmp.ne.s32.totalorder %s36, %s37
    %p51 = scmp.eq.s32.totalorder %s15, 1
    %p52 = por %p50, %p51
    %p54 = scmp.ne.s32.totalorder %s37, %s53
    %p55 = scmp.eq.s32.totalorder %s15, 0
    %p56 = por %p54, %p55
    %s58 = sadd.s32 %s57, 1
    %p61 = scmp.eq.s32.totalorder %s9, 1
    %p62 = scmp.ne.s32.totalorder %s57, %s59
    %p63 = scmp.eq.s32.totalorder %s9, 0
    %p64 = por %p62, %p63
    %p65 = scmp.ne.s32.totalorder %s57, %s59
    %p66 = scmp.eq.s32.totalorder %s14, 1
    %p67 = por %p65, %p66
    %p68 = scmp.ne.s32.totalorder %s59, %s60
    %p69 = scmp.eq.s32.totalorder %s14, 0
    %p70 = por %p68, %p69
    %p71 = scmp.ne.s32.totalorder %s59, %s60
    %p72 = scmp.eq.s32.totalorder %s15, 1
    %p73 = por %p71, %p72
    %p75 = scmp.ne.s32.totalorder %s60, %s74
    %p76 = scmp.eq.s32.totalorder %s15, 0
    %p77 = por %p75, %p76
    %s79 = sadd.s32 %s78, 1
    %p82 = scmp.eq.s32.totalorder %s9, 1
    %p83 = scmp.ne.s32.totalorder %s78, %s80
    %p84 = scmp.eq.s32.totalorder %s9, 0
    %p85 = por %p83, %p84
    %p86 = scmp.ne.s32.totalorder %s78, %s80
    %p87 = scmp.eq.s32.totalorder %s14, 1
    %p88 = por %p86, %p87
    %p89 = scmp.ne.s32.totalorder %s80, %s81
    %p90 = scmp.eq.s32.totalorder %s14, 0
    %p91 = por %p89, %p90
    %p92 = scmp.ne.s32.totalorder %s80, %s81
    %p93 = scmp.eq.s32.totalorder %s15, 1
    %p94 = por %p92, %p93
    %p96 = scmp.ne.s32.totalorder %s81, %s95
    %p97 = scmp.eq.s32.totalorder %s15, 0
    %p98 = por %p96, %p97
    %s99 = ssub.s32 %s16, %s28
    %s100 = ssub.s32 %s17, %s24
    %s101 = sor.u32 %s99, %s100
    %p102 = scmp.eq.s32.totalorder %s101, 0
    %s104 = sadd.s32 %s103, 1
    %s105 = scalar_select %p102, %s103, %s104
    %p108 = pneg %p102
    %p109 = scmp.eq.s32.totalorder %s9, 1
    %p110 = por %p108, %p109
    %p111 = scmp.ne.s32.totalorder %s103, %s106
    %p112 = scmp.eq.s32.totalorder %s9, 0
    %p113 = por %p111, %p112
    %p114 = scmp.ne.s32.totalorder %s103, %s106
    %p115 = scmp.eq.s32.totalorder %s14, 1
    %p116 = por %p114, %p115
    %p117 = scmp.ne.s32.totalorder %s106, %s107
    %p118 = scmp.eq.s32.totalorder %s14, 0
    %p119 = por %p117, %p118
    %p120 = scmp.ne.s32.totalorder %s106, %s107
    %p121 = scmp.eq.s32.totalorder %s15, 1
    %p122 = por %p120, %p121
    %p124 = scmp.ne.s32.totalorder %s107, %s123
    %p125 = scmp.eq.s32.totalorder %s15, 0
    %p126 = por %p124, %p125
    %p127 = scmp.le.s32.totalorder 1, %s9
    %p128 = scmp.lt.s32.totalorder %s9, 3
    %p129 = pnand %p127, %p128
    %p130 = pneg %p129
    // Predicated region
    $region9: #{propagation_net_forward.10} parent=5 // pred_check
      _
    $region10: #{propagation_net_forward.10} parent=5 // pred_check_branch
      %132 = sbr.rel (%p129) target = $region12
    $region11: #{propagation_net_forward.10} parent=5 // pred_region
      %s133 = ssub.s32 %s9, 1
      // Predicated region
      $region13: #{propagation_net_forward.10} parent=11 // pred_check
        %p134 = pneg %p70
      $region14: #{propagation_net_forward.10} parent=11 // pred_check_branch
        %136 = sbr.rel (%p134) target = $region16
      $region15: #{propagation_net_forward.10} parent=11 // pred_region
        _
      $region16: #{propagation_net_forward.10} parent=11 // pred_fallthru
        _
      // Predicated region
      $region17: #{propagation_net_forward.10} parent=11 // pred_check
        %p137 = pneg %p91
      $region18: #{propagation_net_forward.10} parent=11 // pred_check_branch
        %139 = sbr.rel (%p137) target = $region20
      $region19: #{propagation_net_forward.10} parent=11 // pred_region
        _
      $region20: #{propagation_net_forward.10} parent=11 // pred_fallthru
        _
    $region12: #{propagation_net_forward.10} parent=5 // pred_fallthru
      _
    %p140 = scmp.lt.s32.totalorder %s9, 2
    // Predicated region
    $region21: #{propagation_net_forward.10} parent=5 // pred_check
      %p141 = pneg %p140
    $region22: #{propagation_net_forward.10} parent=5 // pred_check_branch
      %143 = sbr.rel (%p141) target = $region24
    $region23: #{propagation_net_forward.10} parent=5 // pred_region
      // Predicated region
      $region25: #{propagation_net_forward.10} parent=23 // pred_check
        %p144 = pneg %p43
      $region26: #{propagation_net_forward.10} parent=23 // pred_check_branch
        %146 = sbr.rel (%p144) target = $region28
      $region27: #{propagation_net_forward.10} parent=23 // pred_region
        %s147 = smul.u32 2, %s17
        %p148 = scmp.lt.s32.totalorder %s16, 1
        %s149 = scalar_select %p148, %s16, 1
        %p150 = scmp.lt.s32.totalorder %s147, 1
        %s151 = scalar_select %p150, %s147, 1
        %s152 = smul.addr %s149, 8
        %s153 = sadd.s32 %s151, %s152
        %s154 = smul.addr %s153, 4
        %s155 = scalar_lea.vmem %s0, %s154
        %s156 = smul.u32 2, %s17
      $region28: #{propagation_net_forward.10} parent=23 // pred_fallthru
        _
    $region24: #{propagation_net_forward.10} parent=5 // pred_fallthru
      _
    %p157 = scmp.le.s32.totalorder 1, %s9
    %p158 = scmp.lt.s32.totalorder %s9, 3
    %p159 = pnand %p157, %p158
    %p160 = pneg %p159
    // Predicated region
    $region29: #{propagation_net_forward.10} parent=5 // pred_check
      _
    $region30: #{propagation_net_forward.10} parent=5 // pred_check_branch
      %162 = sbr.rel (%p159) target = $region32
    $region31: #{propagation_net_forward.10} parent=5 // pred_region
      %s163 = ssub.s32 %s9, 1
      %s164 = smul.u32 2, %s19
      %p165 = scmp.lt.s32.totalorder %s18, 1
      %s166 = scalar_select %p165, %s18, 1
      %p167 = scmp.lt.s32.totalorder %s164, 1
      %s168 = scalar_select %p167, %s164, 1
      %s169 = smul.addr %s166, 8
      %s170 = sadd.s32 %s168, %s169
      %s171 = smul.addr %s170, 4
      %s172 = scalar_lea.vmem %s0, %s171
      %p173 = pneg %p49
      %p174 = pneg %p46
      %p175 = pneg %p70
      %p176 = pneg %p67
      %p177 = pneg %p91
      %p178 = pneg %p88
      %p179 = pneg %p119
      %p180 = pneg %p116
      %s181 = smul.u32 2, %s19
      %p182 = scmp.lt.s32.totalorder %s18, 1
      %s183 = scalar_select %p182, %s18, 1
      %p184 = scmp.lt.s32.totalorder %s181, 1
      %s185 = scalar_select %p184, %s181, 1
      %s186 = smul.addr %s183, 2
      %s187 = sadd.s32 %s185, %s186
      %s188 = smul.addr %s187, 2
      %s189 = scalar_lea.vmem %s3, %s188
      %s190 = smul.u32 2, %s19
      %p191 = scmp.lt.s32.totalorder %s18, 1
      %s192 = scalar_select %p191, %s18, 1
      %p193 = scmp.lt.s32.totalorder %s190, 1
      %s194 = scalar_select %p193, %s190, 1
      %s195 = smul.addr %s192, 8
      %s196 = sadd.s32 %s194, %s195
      %s197 = smul.addr %s196, 4
      %s198 = scalar_lea.vmem %s0, %s197
      %s199 = smul.u32 2, %s19
      %s200 = smul.u32 2, %s19
      %p201 = scmp.lt.s32.totalorder %s18, 1
      %s202 = scalar_select %p201, %s18, 1
      %p203 = scmp.lt.s32.totalorder %s200, 1
      %s204 = scalar_select %p203, %s200, 1
      %s205 = smul.addr %s202, 2
      %s206 = sadd.s32 %s204, %s205
      %s207 = smul.addr %s206, 2
      %s208 = scalar_lea.vmem %s3, %s207
      %s209 = smul.u32 2, %s19
      %v211 = vld [vmem:[%s1] sm:$0x3]
      %v212 = vld [vmem:[%s198] sm:$0xff]
      %v213 = vld [vmem:[%s198 + $0x8] sm:$0xff]
      %v214 = vld [vmem:[%s198 + $0x10] sm:$0xff]
      %v215 = vld [vmem:[%s198 + $0x18] sm:$0x33]
      %v216 = vld [vmem:[%s2] sm:$0xf]
      %218 = vset.pattern.permute.xlu0 0
      %219 = vperm.xlu0 %218, %v216
      %v220 = vpop.permute.xlu0 %219
      %v226 = vunpack.c.l.b16 %v212
      %v227 = vunpack.c.h.b16 %v212
      %v228 = vunpack.c.l.b16 %v213
      %v229 = vunpack.c.h.b16 %v213
      %v230 = vunpack.c.l.b16 %v214
      %v231 = vunpack.c.h.b16 %v214
      %v232 = vunpack.c.l.b16 %v215
      %v233 = vunpack.c.h.b16 %v215
      %v234 = vpack.c.b16 %v228, %v226
      %v235 = vpack.c.b16 %v229, %v227
      %v236 = vpack.c.b16 %v232, %v230
      %v237 = vpack.c.b16 %v233, %v231
      %vm240 = vcmask 220160
      %v242 = vsel %vm240, %v211, 0
      %vm244 = vcmask 1044480
      %vm245 = vcmask 1045504
      %v246 = vsel %vm244, 4294967295, 65535
      %v247 = vsel %vm245, %v246, 0
      %v249 = vand.u32 %v236, %v247
      %v252 = vand.u32 %v237, %v247
      %254 = vmatpush.bf16.msra.mxu0 0
      %255 = vmatpush.bf16.msra.mxu0 0
      %256 = vmatpush.bf16.msra.mxu0 0
      %257 = vmatpush.bf16.msra.mxu0 0
      %258 = vmatpush.bf16.msra.mxu0 0
      %259 = vmatpush.bf16.msra.mxu0 0
      %260 = vmatpush.bf16.msra.mxu0 %v249
      %261 = vmatpush.bf16.msra.mxu0 %v234
      %262 = vmatmul.bf16.gmra.mxu0 %v242
      %v263 = vpop.f32.mrf.mxu0
      %v264 = vadd.f32 %v220, %v263
      %v265 = vpop.f32.mrf.mxu0
      %266 = vdwg.mxu0
      %267 = vmatpush.bf16.msra.mxu0 0
      %268 = vmatpush.bf16.msra.mxu0 0
      %269 = vmatpush.bf16.msra.mxu0 0
      %270 = vmatpush.bf16.msra.mxu0 0
      %271 = vmatpush.bf16.msra.mxu0 0
      %272 = vmatpush.bf16.msra.mxu0 0
      %273 = vmatpush.bf16.msra.mxu0 %v252
      %274 = vmatpush.bf16.msra.mxu0 %v235
      %275 = vmatmul.bf16.gmra.mxu0 %v242
      %v276 = vpop.f32.mrf.mxu0
      %v277 = vadd.f32 %v220, %v276
      %v278 = vpop.f32.mrf.mxu0
      %279 = vdwg.mxu0
      %v280 = vmax.f32 %v264, 0.0
      %v281 = vmax.f32 %v277, 0.0
      %v282 = vpack.c.bf16 %v281, %v280
      %v284 = vrot.slane %v282, 2
      %vm285 = vcmask 1041408
      %v288 = vsel %vm285, %v282, %v284
      %290 = vst [vmem:[%s208] sm:$0xf] %v288
      %s291 = smul.u32 2, %s19
      %p292 = scmp.lt.s32.totalorder %s18, 1
      %s293 = scalar_select %p292, %s18, 1
      %p294 = scmp.lt.s32.totalorder %s291, 1
      %s295 = scalar_select %p294, %s291, 1
      %s296 = smul.addr %s293, 2
      %s297 = sadd.s32 %s295, %s296
      %s298 = smul.addr %s297, 2
      %s299 = scalar_lea.vmem %s3, %s298
      // Predicated region
      $region33: #{propagation_net_forward.10} parent=31 // pred_check
        %p300 = pneg %p116
      $region34: #{propagation_net_forward.10} parent=31 // pred_check_branch
        %302 = sbr.rel (%p300) target = $region36
      $region35: #{propagation_net_forward.10} parent=31 // pred_region
        %s303 = smul.u32 2, %s19
      $region36: #{propagation_net_forward.10} parent=31 // pred_fallthru
        _
    $region32: #{propagation_net_forward.10} parent=5 // pred_fallthru
      _
    %p304 = scmp.le.s32.totalorder 2, %s9
    // Predicated region
    $region37: #{propagation_net_forward.10} parent=5 // pred_check
      %p305 = pneg %p304
    $region38: #{propagation_net_forward.10} parent=5 // pred_check_branch
      %307 = sbr.rel (%p305) target = $region40
    $region39: #{propagation_net_forward.10} parent=5 // pred_region
      %s308 = ssub.s32 %s9, 2
      // Predicated region
      $region41: #{propagation_net_forward.10} parent=39 // pred_check
        %p309 = pneg %p122
      $region42: #{propagation_net_forward.10} parent=39 // pred_check_branch
        %311 = sbr.rel (%p309) target = $region44
      $region43: #{propagation_net_forward.10} parent=39 // pred_region
        %s312 = smul.u32 2, %s21
        %p313 = scmp.lt.s32.totalorder %s20, 1
        %s314 = scalar_select %p313, %s20, 1
        %p315 = scmp.lt.s32.totalorder %s312, 1
        %s316 = scalar_select %p315, %s312, 1
        %s317 = smul.addr %s314, 2
        %s318 = sadd.s32 %s316, %s317
        %s319 = smul.addr %s318, 2
        %s320 = scalar_lea.vmem %s3, %s319
      $region44: #{propagation_net_forward.10} parent=39 // pred_fallthru
        _
    $region40: #{propagation_net_forward.10} parent=5 // pred_fallthru
      _
  $region6: #{propagation_net_forward.10} parent=0 // loop_footer
    %s13 = sadd.s32 1, %s9
  $region7: #{propagation_net_forward.10} parent=0 // loop_footer_branch
    %8 = sbr.rel target = $region3
  $region8: #{propagation_net_forward.10} parent=0 // loop_exit
    _

// kernel: propagation_net_forward.11
$region0: #{propagation_net_forward.11}
  #allocation0 [shape = 'u32[]', space=smem, size = 0x4, offset = 0x4, fixed_abs, tag = 'smem constant byte address 0x4 - core index']
  #allocation1 [shape = 'u32[72,128]{1,0:T(1,128)}', space=vmem, size = 0x9000, scoped, tag = 'internal scratch']
  %s0 = inlined_call_operand.vmem [shape: bf16[2,36,256], index: 0, kind: input, shape index: {}]
  %s1 = inlined_call_operand.vmem [shape: bf16[4,36], index: 1, kind: input, shape index: {}]
  %s2 = inlined_call_operand.vmem [shape: f32[4,1], index: 2, kind: input, shape index: {}]
  %s3 = inlined_call_operand.vmem [shape: bf16[2,4,256], index: 3, kind: output, shape index: {}]
  %s4 = sld [smem:[#allocation0]]
  $region45: #{propagation_net_forward.11} parent=0
    _
  %s6 = ssub.s32 1, %s4
  %s7 = scalar_select 0, %s6, %s4
  loop: start=0, step=1, limit=4
  $region2: #{propagation_net_forward.11} parent=0 // loop_pre_header
    _
  $region3: #{propagation_net_forward.11} parent=0 // loop_header
    %s9 = sphi 0, %s13
    %p10 = scmp.ge.s32.totalorder %s9, 4
    %s16 = sphi 0, %s28
    %s17 = sphi 0, %s24
    %s18 = sphi 0, %s16
    %s19 = sphi 0, %s17
    %s20 = sphi 0, %s18
    %s21 = sphi 0, %s19
    %s33 = sphi 0, %s35
    %s36 = sphi 0, %s33
    %s37 = sphi 0, %s36
    %s53 = sphi 0, %s37
    %s57 = sphi 0, %s57
    %s59 = sphi 0, %s57
    %s60 = sphi 0, %s59
    %s74 = sphi 0, %s60
    %s78 = sphi 0, %s78
    %s80 = sphi 0, %s78
    %s81 = sphi 0, %s80
    %s95 = sphi 0, %s81
    %s103 = sphi 0, %s105
    %s106 = sphi 0, %s103
    %s107 = sphi 0, %s106
    %s123 = sphi 0, %s107
  $region4: #{propagation_net_forward.11} parent=0 // loop_header_branch
    %12 = sbr.rel (%p10) target = $region8
  $region5: #{propagation_net_forward.11} parent=0 // loop_body
    %s14 = ssub.s32 %s9, 1
    %s15 = ssub.s32 %s9, 2
    %s22 = sadd.s32 1, %s17
    %p23 = scmp.ge.s32.totalorder %s22, 1
    %s24 = scalar_select %p23, 0, %s22
    %s25 = sadd.s32 1, %s16
    %s26 = scalar_select %p23, %s25, %s16
    %p27 = scmp.ge.s32.totalorder %s26, 2
    %s28 = scalar_select %p27, 0, %s26
    %s29 = ssub.s32 %s16, %s28
    %s30 = ssub.s32 %s17, %s24
    %s31 = sor.u32 %s29, %s30
    %p32 = scmp.eq.s32.totalorder %s31, 0
    %s34 = sadd.s32 %s33, 1
    %s35 = scalar_select %p32, %s33, %s34
    %p38 = pneg %p32
    %p39 = scmp.eq.s32.totalorder %s9, 1
    %p40 = por %p38, %p39
    %p41 = scmp.ne.s32.totalorder %s33, %s36
    %p42 = scmp.eq.s32.totalorder %s9, 0
    %p43 = por %p41, %p42
    %p44 = scmp.ne.s32.totalorder %s33, %s36
    %p45 = scmp.eq.s32.totalorder %s14, 1
    %p46 = por %p44, %p45
    %p47 = scmp.ne.s32.totalorder %s36, %s37
    %p48 = scmp.eq.s32.totalorder %s14, 0
    %p49 = por %p47, %p48
    %p50 = scmp.ne.s32.totalorder %s36, %s37
    %p51 = scmp.eq.s32.totalorder %s15, 1
    %p52 = por %p50, %p51
    %p54 = scmp.ne.s32.totalorder %s37, %s53
    %p55 = scmp.eq.s32.totalorder %s15, 0
    %p56 = por %p54, %p55
    %s58 = sadd.s32 %s57, 1
    %p61 = scmp.eq.s32.totalorder %s9, 1
    %p62 = scmp.ne.s32.totalorder %s57, %s59
    %p63 = scmp.eq.s32.totalorder %s9, 0
    %p64 = por %p62, %p63
    %p65 = scmp.ne.s32.totalorder %s57, %s59
    %p66 = scmp.eq.s32.totalorder %s14, 1
    %p67 = por %p65, %p66
    %p68 = scmp.ne.s32.totalorder %s59, %s60
    %p69 = scmp.eq.s32.totalorder %s14, 0
    %p70 = por %p68, %p69
    %p71 = scmp.ne.s32.totalorder %s59, %s60
    %p72 = scmp.eq.s32.totalorder %s15, 1
    %p73 = por %p71, %p72
    %p75 = scmp.ne.s32.totalorder %s60, %s74
    %p76 = scmp.eq.s32.totalorder %s15, 0
    %p77 = por %p75, %p76
    %s79 = sadd.s32 %s78, 1
    %p82 = scmp.eq.s32.totalorder %s9, 1
    %p83 = scmp.ne.s32.totalorder %s78, %s80
    %p84 = scmp.eq.s32.totalorder %s9, 0
    %p85 = por %p83, %p84
    %p86 = scmp.ne.s32.totalorder %s78, %s80
    %p87 = scmp.eq.s32.totalorder %s14, 1
    %p88 = por %p86, %p87
    %p89 = scmp.ne.s32.totalorder %s80, %s81
    %p90 = scmp.eq.s32.totalorder %s14, 0
    %p91 = por %p89, %p90
    %p92 = scmp.ne.s32.totalorder %s80, %s81
    %p93 = scmp.eq.s32.totalorder %s15, 1
    %p94 = por %p92, %p93
    %p96 = scmp.ne.s32.totalorder %s81, %s95
    %p97 = scmp.eq.s32.totalorder %s15, 0
    %p98 = por %p96, %p97
    %s99 = ssub.s32 %s16, %s28
    %s100 = ssub.s32 %s17, %s24
    %s101 = sor.u32 %s99, %s100
    %p102 = scmp.eq.s32.totalorder %s101, 0
    %s104 = sadd.s32 %s103, 1
    %s105 = scalar_select %p102, %s103, %s104
    %p108 = pneg %p102
    %p109 = scmp.eq.s32.totalorder %s9, 1
    %p110 = por %p108, %p109
    %p111 = scmp.ne.s32.totalorder %s103, %s106
    %p112 = scmp.eq.s32.totalorder %s9, 0
    %p113 = por %p111, %p112
    %p114 = scmp.ne.s32.totalorder %s103, %s106
    %p115 = scmp.eq.s32.totalorder %s14, 1
    %p116 = por %p114, %p115
    %p117 = scmp.ne.s32.totalorder %s106, %s107
    %p118 = scmp.eq.s32.totalorder %s14, 0
    %p119 = por %p117, %p118
    %p120 = scmp.ne.s32.totalorder %s106, %s107
    %p121 = scmp.eq.s32.totalorder %s15, 1
    %p122 = por %p120, %p121
    %p124 = scmp.ne.s32.totalorder %s107, %s123
    %p125 = scmp.eq.s32.totalorder %s15, 0
    %p126 = por %p124, %p125
    %p127 = scmp.le.s32.totalorder 1, %s9
    %p128 = scmp.lt.s32.totalorder %s9, 3
    %p129 = pnand %p127, %p128
    %p130 = pneg %p129
    // Predicated region
    $region9: #{propagation_net_forward.11} parent=5 // pred_check
      _
    $region10: #{propagation_net_forward.11} parent=5 // pred_check_branch
      %132 = sbr.rel (%p129) target = $region12
    $region11: #{propagation_net_forward.11} parent=5 // pred_region
      %s133 = ssub.s32 %s9, 1
      // Predicated region
      $region13: #{propagation_net_forward.11} parent=11 // pred_check
        %p134 = pneg %p70
      $region14: #{propagation_net_forward.11} parent=11 // pred_check_branch
        %136 = sbr.rel (%p134) target = $region16
      $region15: #{propagation_net_forward.11} parent=11 // pred_region
        _
      $region16: #{propagation_net_forward.11} parent=11 // pred_fallthru
        _
      // Predicated region
      $region17: #{propagation_net_forward.11} parent=11 // pred_check
        %p137 = pneg %p91
      $region18: #{propagation_net_forward.11} parent=11 // pred_check_branch
        %139 = sbr.rel (%p137) target = $region20
      $region19: #{propagation_net_forward.11} parent=11 // pred_region
        _
      $region20: #{propagation_net_forward.11} parent=11 // pred_fallthru
        _
    $region12: #{propagation_net_forward.11} parent=5 // pred_fallthru
      _
    %p140 = scmp.lt.s32.totalorder %s9, 2
    // Predicated region
    $region21: #{propagation_net_forward.11} parent=5 // pred_check
      %p141 = pneg %p140
    $region22: #{propagation_net_forward.11} parent=5 // pred_check_branch
      %143 = sbr.rel (%p141) target = $region24
    $region23: #{propagation_net_forward.11} parent=5 // pred_region
      // Predicated region
      $region25: #{propagation_net_forward.11} parent=23 // pred_check
        %p144 = pneg %p43
      $region26: #{propagation_net_forward.11} parent=23 // pred_check_branch
        %146 = sbr.rel (%p144) target = $region28
      $region27: #{propagation_net_forward.11} parent=23 // pred_region
        %s147 = smul.u32 2, %s17
        %p148 = scmp.lt.s32.totalorder %s16, 1
        %s149 = scalar_select %p148, %s16, 1
        %p150 = scmp.lt.s32.totalorder %s147, 1
        %s151 = scalar_select %p150, %s147, 1
        %s152 = smul.addr %s149, 10
        %s153 = sadd.s32 %s151, %s152
        %s154 = smul.addr %s153, 4
        %s155 = scalar_lea.vmem %s0, %s154
        %s156 = smul.u32 2, %s17
      $region28: #{propagation_net_forward.11} parent=23 // pred_fallthru
        _
    $region24: #{propagation_net_forward.11} parent=5 // pred_fallthru
      _
    %p157 = scmp.le.s32.totalorder 1, %s9
    %p158 = scmp.lt.s32.totalorder %s9, 3
    %p159 = pnand %p157, %p158
    %p160 = pneg %p159
    // Predicated region
    $region29: #{propagation_net_forward.11} parent=5 // pred_check
      _
    $region30: #{propagation_net_forward.11} parent=5 // pred_check_branch
      %162 = sbr.rel (%p159) target = $region32
    $region31: #{propagation_net_forward.11} parent=5 // pred_region
      %s163 = ssub.s32 %s9, 1
      %s164 = smul.u32 2, %s19
      %p165 = scmp.lt.s32.totalorder %s18, 1
      %s166 = scalar_select %p165, %s18, 1
      %p167 = scmp.lt.s32.totalorder %s164, 1
      %s168 = scalar_select %p167, %s164, 1
      %s169 = smul.addr %s166, 10
      %s170 = sadd.s32 %s168, %s169
      %s171 = smul.addr %s170, 4
      %s172 = scalar_lea.vmem %s0, %s171
      %p173 = pneg %p49
      %p174 = pneg %p46
      %p175 = pneg %p70
      %p176 = pneg %p67
      %p177 = pneg %p91
      %p178 = pneg %p88
      %p179 = pneg %p119
      %p180 = pneg %p116
      %s181 = smul.u32 2, %s19
      %p182 = scmp.lt.s32.totalorder %s18, 1
      %s183 = scalar_select %p182, %s18, 1
      %p184 = scmp.lt.s32.totalorder %s181, 1
      %s185 = scalar_select %p184, %s181, 1
      %s186 = smul.addr %s183, 2
      %s187 = sadd.s32 %s185, %s186
      %s188 = smul.addr %s187, 2
      %s189 = scalar_lea.vmem %s3, %s188
      %s190 = smul.u32 2, %s19
      %p191 = scmp.lt.s32.totalorder %s18, 1
      %s192 = scalar_select %p191, %s18, 1
      %p193 = scmp.lt.s32.totalorder %s190, 1
      %s194 = scalar_select %p193, %s190, 1
      %s195 = smul.addr %s192, 10
      %s196 = sadd.s32 %s194, %s195
      %s197 = smul.addr %s196, 4
      %s198 = scalar_lea.vmem %s0, %s197
      %s199 = smul.u32 2, %s19
      %s200 = smul.u32 2, %s19
      %p201 = scmp.lt.s32.totalorder %s18, 1
      %s202 = scalar_select %p201, %s18, 1
      %p203 = scmp.lt.s32.totalorder %s200, 1
      %s204 = scalar_select %p203, %s200, 1
      %s205 = smul.addr %s202, 2
      %s206 = sadd.s32 %s204, %s205
      %s207 = smul.addr %s206, 2
      %s208 = scalar_lea.vmem %s3, %s207
      %s209 = smul.u32 2, %s19
      %v211 = vld [vmem:[%s1] sm:$0x3]
      %v212 = vld [vmem:[%s198] sm:$0xff]
      %v213 = vld [vmem:[%s198 + $0x8] sm:$0xff]
      %v214 = vld [vmem:[%s198 + $0x10] sm:$0xff]
      %v215 = vld [vmem:[%s198 + $0x18] sm:$0xff]
      %v216 = vld [vmem:[%s198 + $0x20] sm:$0x33]
      %v217 = vld [vmem:[%s2] sm:$0xf]
      %219 = vset.pattern.permute.xlu0 0
      %220 = vperm.xlu0 %219, %v217
      %v221 = vpop.permute.xlu0 %220
      %v228 = vunpack.c.l.b16 %v212
      %v229 = vunpack.c.h.b16 %v212
      %v230 = vunpack.c.l.b16 %v213
      %v231 = vunpack.c.h.b16 %v213
      %v232 = vunpack.c.l.b16 %v214
      %v233 = vunpack.c.h.b16 %v214
      %v234 = vunpack.c.l.b16 %v215
      %v235 = vunpack.c.h.b16 %v215
      %v236 = vunpack.c.l.b16 %v216
      %v237 = vunpack.c.h.b16 %v216
      %v238 = vpack.c.b16 %v230, %v228
      %v239 = vpack.c.b16 %v231, %v229
      %v240 = vpack.c.b16 %v234, %v232
      %v241 = vpack.c.b16 %v235, %v233
      %v242 = vpack.c.b16 %v236, %v236
      %v243 = vpack.c.b16 %v237, %v237
      %vm248 = vcmask 293888
      %v250 = vsel %vm248, %v211, 0
      %vm252 = vcmask 1041408
      %v254 = vsel %vm252, %v242, 0
      %v257 = vsel %vm252, %v243, 0
      %259 = vmatpush.bf16.msra.mxu0 0
      %260 = vmatpush.bf16.msra.mxu0 0
      %261 = vmatpush.bf16.msra.mxu0 0
      %262 = vmatpush.bf16.msra.mxu0 0
      %263 = vmatpush.bf16.msra.mxu0 0
      %264 = vmatpush.bf16.msra.mxu0 %v254
      %265 = vmatpush.bf16.msra.mxu0 %v240
      %266 = vmatpush.bf16.msra.mxu0 %v238
      %267 = vmatmul.bf16.gmra.mxu0 %v250
      %v268 = vpop.f32.mrf.mxu0
      %v269 = vadd.f32 %v221, %v268
      %v270 = vpop.f32.mrf.mxu0
      %271 = vdwg.mxu0
      %272 = vmatpush.bf16.msra.mxu0 0
      %273 = vmatpush.bf16.msra.mxu0 0
      %274 = vmatpush.bf16.msra.mxu0 0
      %275 = vmatpush.bf16.msra.mxu0 0
      %276 = vmatpush.bf16.msra.mxu0 0
      %277 = vmatpush.bf16.msra.mxu0 %v257
      %278 = vmatpush.bf16.msra.mxu0 %v241
      %279 = vmatpush.bf16.msra.mxu0 %v239
      %280 = vmatmul.bf16.gmra.mxu0 %v250
      %v281 = vpop.f32.mrf.mxu0
      %v282 = vadd.f32 %v221, %v281
      %v283 = vpop.f32.mrf.mxu0
      %284 = vdwg.mxu0
      %v285 = vmax.f32 %v269, 0.0
      %v286 = vmax.f32 %v282, 0.0
      %v287 = vpack.c.bf16 %v286, %v285
      %v289 = vrot.slane %v287, 2
      %v292 = vsel %vm252, %v287, %v289
      %294 = vst [vmem:[%s208] sm:$0xf] %v292
      %s295 = smul.u32 2, %s19
      %p296 = scmp.lt.s32.totalorder %s18, 1
      %s297 = scalar_select %p296, %s18, 1
      %p298 = scmp.lt.s32.totalorder %s295, 1
      %s299 = scalar_select %p298, %s295, 1
      %s300 = smul.addr %s297, 2
      %s301 = sadd.s32 %s299, %s300
      %s302 = smul.addr %s301, 2
      %s303 = scalar_lea.vmem %s3, %s302
      // Predicated region
      $region33: #{propagation_net_forward.11} parent=31 // pred_check
        %p304 = pneg %p116
      $region34: #{propagation_net_forward.11} parent=31 // pred_check_branch
        %306 = sbr.rel (%p304) target = $region36
      $region35: #{propagation_net_forward.11} parent=31 // pred_region
        %s307 = smul.u32 2, %s19
      $region36: #{propagation_net_forward.11} parent=31 // pred_fallthru
        _
    $region32: #{propagation_net_forward.11} parent=5 // pred_fallthru
      _
    %p308 = scmp.le.s32.totalorder 2, %s9
    // Predicated region
    $region37: #{propagation_net_forward.11} parent=5 // pred_check
      %p309 = pneg %p308
    $region38: #{propagation_net_forward.11} parent=5 // pred_check_branch
      %311 = sbr.rel (%p309) target = $region40
    $region39: #{propagation_net_forward.11} parent=5 // pred_region
      %s312 = ssub.s32 %s9, 2
      // Predicated region
      $region41: #{propagation_net_forward.11} parent=39 // pred_check
        %p313 = pneg %p122
      $region42: #{propagation_net_forward.11} parent=39 // pred_check_branch
        %315 = sbr.rel (%p313) target = $region44
      $region43: #{propagation_net_forward.11} parent=39 // pred_region
        %s316 = smul.u32 2, %s21
        %p317 = scmp.lt.s32.totalorder %s20, 1
        %s318 = scalar_select %p317, %s20, 1
        %p319 = scmp.lt.s32.totalorder %s316, 1
        %s320 = scalar_select %p319, %s316, 1
        %s321 = smul.addr %s318, 2
        %s322 = sadd.s32 %s320, %s321
        %s323 = smul.addr %s322, 2
        %s324 = scalar_lea.vmem %s3, %s323
      $region44: #{propagation_net_forward.11} parent=39 // pred_fallthru
        _
    $region40: #{propagation_net_forward.11} parent=5 // pred_fallthru
      _
  $region6: #{propagation_net_forward.11} parent=0 // loop_footer
    %s13 = sadd.s32 1, %s9
  $region7: #{propagation_net_forward.11} parent=0 // loop_footer_branch
    %8 = sbr.rel target = $region3
  $region8: #{propagation_net_forward.11} parent=0 // loop_exit
    _

// kernel: propagation_net_forward.12
$region0: #{propagation_net_forward.12}
  #allocation0 [shape = 'u32[]', space=smem, size = 0x4, offset = 0x4, fixed_abs, tag = 'smem constant byte address 0x4 - core index']
  #allocation1 [shape = 'u32[72,128]{1,0:T(1,128)}', space=vmem, size = 0x9000, scoped, tag = 'internal scratch']
  %s0 = inlined_call_operand.vmem [shape: bf16[2,100,128], index: 0, kind: input, shape index: {}]
  %s1 = inlined_call_operand.vmem [shape: bf16[8,100], index: 1, kind: input, shape index: {}]
  %s2 = inlined_call_operand.vmem [shape: f32[8,1], index: 2, kind: input, shape index: {}]
  %s3 = inlined_call_operand.vmem [shape: bf16[2,8,128], index: 3, kind: output, shape index: {}]
  %s4 = sld [smem:[#allocation0]]
  $region45: #{propagation_net_forward.12} parent=0
    _
  %s6 = ssub.s32 1, %s4
  %s7 = scalar_select 0, %s6, %s4
  loop: start=0, step=1, limit=4
  $region2: #{propagation_net_forward.12} parent=0 // loop_pre_header
    _
  $region3: #{propagation_net_forward.12} parent=0 // loop_header
    %s9 = sphi 0, %s13
    %p10 = scmp.ge.s32.totalorder %s9, 4
    %s16 = sphi 0, %s28
    %s17 = sphi 0, %s24
    %s18 = sphi 0, %s16
    %s19 = sphi 0, %s17
    %s20 = sphi 0, %s18
    %s21 = sphi 0, %s19
    %s33 = sphi 0, %s35
    %s36 = sphi 0, %s33
    %s37 = sphi 0, %s36
    %s53 = sphi 0, %s37
    %s57 = sphi 0, %s57
    %s59 = sphi 0, %s57
    %s60 = sphi 0, %s59
    %s74 = sphi 0, %s60
    %s78 = sphi 0, %s78
    %s80 = sphi 0, %s78
    %s81 = sphi 0, %s80
    %s95 = sphi 0, %s81
    %s103 = sphi 0, %s105
    %s106 = sphi 0, %s103
    %s107 = sphi 0, %s106
    %s123 = sphi 0, %s107
  $region4: #{propagation_net_forward.12} parent=0 // loop_header_branch
    %12 = sbr.rel (%p10) target = $region8
  $region5: #{propagation_net_forward.12} parent=0 // loop_body
    %s14 = ssub.s32 %s9, 1
    %s15 = ssub.s32 %s9, 2
    %s22 = sadd.s32 1, %s17
    %p23 = scmp.ge.s32.totalorder %s22, 1
    %s24 = scalar_select %p23, 0, %s22
    %s25 = sadd.s32 1, %s16
    %s26 = scalar_select %p23, %s25, %s16
    %p27 = scmp.ge.s32.totalorder %s26, 2
    %s28 = scalar_select %p27, 0, %s26
    %s29 = ssub.s32 %s16, %s28
    %s30 = ssub.s32 %s17, %s24
    %s31 = sor.u32 %s29, %s30
    %p32 = scmp.eq.s32.totalorder %s31, 0
    %s34 = sadd.s32 %s33, 1
    %s35 = scalar_select %p32, %s33, %s34
    %p38 = pneg %p32
    %p39 = scmp.eq.s32.totalorder %s9, 1
    %p40 = por %p38, %p39
    %p41 = scmp.ne.s32.totalorder %s33, %s36
    %p42 = scmp.eq.s32.totalorder %s9, 0
    %p43 = por %p41, %p42
    %p44 = scmp.ne.s32.totalorder %s33, %s36
    %p45 = scmp.eq.s32.totalorder %s14, 1
    %p46 = por %p44, %p45
    %p47 = scmp.ne.s32.totalorder %s36, %s37
    %p48 = scmp.eq.s32.totalorder %s14, 0
    %p49 = por %p47, %p48
    %p50 = scmp.ne.s32.totalorder %s36, %s37
    %p51 = scmp.eq.s32.totalorder %s15, 1
    %p52 = por %p50, %p51
    %p54 = scmp.ne.s32.totalorder %s37, %s53
    %p55 = scmp.eq.s32.totalorder %s15, 0
    %p56 = por %p54, %p55
    %s58 = sadd.s32 %s57, 1
    %p61 = scmp.eq.s32.totalorder %s9, 1
    %p62 = scmp.ne.s32.totalorder %s57, %s59
    %p63 = scmp.eq.s32.totalorder %s9, 0
    %p64 = por %p62, %p63
    %p65 = scmp.ne.s32.totalorder %s57, %s59
    %p66 = scmp.eq.s32.totalorder %s14, 1
    %p67 = por %p65, %p66
    %p68 = scmp.ne.s32.totalorder %s59, %s60
    %p69 = scmp.eq.s32.totalorder %s14, 0
    %p70 = por %p68, %p69
    %p71 = scmp.ne.s32.totalorder %s59, %s60
    %p72 = scmp.eq.s32.totalorder %s15, 1
    %p73 = por %p71, %p72
    %p75 = scmp.ne.s32.totalorder %s60, %s74
    %p76 = scmp.eq.s32.totalorder %s15, 0
    %p77 = por %p75, %p76
    %s79 = sadd.s32 %s78, 1
    %p82 = scmp.eq.s32.totalorder %s9, 1
    %p83 = scmp.ne.s32.totalorder %s78, %s80
    %p84 = scmp.eq.s32.totalorder %s9, 0
    %p85 = por %p83, %p84
    %p86 = scmp.ne.s32.totalorder %s78, %s80
    %p87 = scmp.eq.s32.totalorder %s14, 1
    %p88 = por %p86, %p87
    %p89 = scmp.ne.s32.totalorder %s80, %s81
    %p90 = scmp.eq.s32.totalorder %s14, 0
    %p91 = por %p89, %p90
    %p92 = scmp.ne.s32.totalorder %s80, %s81
    %p93 = scmp.eq.s32.totalorder %s15, 1
    %p94 = por %p92, %p93
    %p96 = scmp.ne.s32.totalorder %s81, %s95
    %p97 = scmp.eq.s32.totalorder %s15, 0
    %p98 = por %p96, %p97
    %s99 = ssub.s32 %s16, %s28
    %s100 = ssub.s32 %s17, %s24
    %s101 = sor.u32 %s99, %s100
    %p102 = scmp.eq.s32.totalorder %s101, 0
    %s104 = sadd.s32 %s103, 1
    %s105 = scalar_select %p102, %s103, %s104
    %p108 = pneg %p102
    %p109 = scmp.eq.s32.totalorder %s9, 1
    %p110 = por %p108, %p109
    %p111 = scmp.ne.s32.totalorder %s103, %s106
    %p112 = scmp.eq.s32.totalorder %s9, 0
    %p113 = por %p111, %p112
    %p114 = scmp.ne.s32.totalorder %s103, %s106
    %p115 = scmp.eq.s32.totalorder %s14, 1
    %p116 = por %p114, %p115
    %p117 = scmp.ne.s32.totalorder %s106, %s107
    %p118 = scmp.eq.s32.totalorder %s14, 0
    %p119 = por %p117, %p118
    %p120 = scmp.ne.s32.totalorder %s106, %s107
    %p121 = scmp.eq.s32.totalorder %s15, 1
    %p122 = por %p120, %p121
    %p124 = scmp.ne.s32.totalorder %s107, %s123
    %p125 = scmp.eq.s32.totalorder %s15, 0
    %p126 = por %p124, %p125
    %p127 = scmp.le.s32.totalorder 1, %s9
    %p128 = scmp.lt.s32.totalorder %s9, 3
    %p129 = pnand %p127, %p128
    %p130 = pneg %p129
    // Predicated region
    $region9: #{propagation_net_forward.12} parent=5 // pred_check
      _
    $region10: #{propagation_net_forward.12} parent=5 // pred_check_branch
      %132 = sbr.rel (%p129) target = $region12
    $region11: #{propagation_net_forward.12} parent=5 // pred_region
      %s133 = ssub.s32 %s9, 1
      // Predicated region
      $region13: #{propagation_net_forward.12} parent=11 // pred_check
        %p134 = pneg %p70
      $region14: #{propagation_net_forward.12} parent=11 // pred_check_branch
        %136 = sbr.rel (%p134) target = $region16
      $region15: #{propagation_net_forward.12} parent=11 // pred_region
        _
      $region16: #{propagation_net_forward.12} parent=11 // pred_fallthru
        _
      // Predicated region
      $region17: #{propagation_net_forward.12} parent=11 // pred_check
        %p137 = pneg %p91
      $region18: #{propagation_net_forward.12} parent=11 // pred_check_branch
        %139 = sbr.rel (%p137) target = $region20
      $region19: #{propagation_net_forward.12} parent=11 // pred_region
        _
      $region20: #{propagation_net_forward.12} parent=11 // pred_fallthru
        _
    $region12: #{propagation_net_forward.12} parent=5 // pred_fallthru
      _
    %p140 = scmp.lt.s32.totalorder %s9, 2
    // Predicated region
    $region21: #{propagation_net_forward.12} parent=5 // pred_check
      %p141 = pneg %p140
    $region22: #{propagation_net_forward.12} parent=5 // pred_check_branch
      %143 = sbr.rel (%p141) target = $region24
    $region23: #{propagation_net_forward.12} parent=5 // pred_region
      // Predicated region
      $region25: #{propagation_net_forward.12} parent=23 // pred_check
        %p144 = pneg %p43
      $region26: #{propagation_net_forward.12} parent=23 // pred_check_branch
        %146 = sbr.rel (%p144) target = $region28
      $region27: #{propagation_net_forward.12} parent=23 // pred_region
        %p147 = scmp.lt.s32.totalorder %s16, 1
        %s148 = scalar_select %p147, %s16, 1
        %p149 = scmp.lt.s32.totalorder %s17, 0
        %s150 = scalar_select %p149, %s17, 0
        %s151 = smul.addr %s148, 13
        %s152 = sadd.s32 %s150, %s151
        %s153 = smul.addr %s152, 4
        %s154 = scalar_lea.vmem %s0, %s153
      $region28: #{propagation_net_forward.12} parent=23 // pred_fallthru
        _
    $region24: #{propagation_net_forward.12} parent=5 // pred_fallthru
      _
    %p155 = scmp.le.s32.totalorder 1, %s9
    %p156 = scmp.lt.s32.totalorder %s9, 3
    %p157 = pnand %p155, %p156
    %p158 = pneg %p157
    // Predicated region
    $region29: #{propagation_net_forward.12} parent=5 // pred_check
      _
    $region30: #{propagation_net_forward.12} parent=5 // pred_check_branch
      %160 = sbr.rel (%p157) target = $region32
    $region31: #{propagation_net_forward.12} parent=5 // pred_region
      %s161 = ssub.s32 %s9, 1
      %p162 = scmp.lt.s32.totalorder %s18, 1
      %s163 = scalar_select %p162, %s18, 1
      %p164 = scmp.lt.s32.totalorder %s19, 0
      %s165 = scalar_select %p164, %s19, 0
      %s166 = smul.addr %s163, 13
      %s167 = sadd.s32 %s165, %s166
      %s168 = smul.addr %s167, 4
      %s169 = scalar_lea.vmem %s0, %s168
      %p170 = pneg %p49
      %p171 = pneg %p46
      %p172 = pneg %p70
      %p173 = pneg %p67
      %p174 = pneg %p91
      %p175 = pneg %p88
      %p176 = pneg %p119
      %p177 = pneg %p116
      %p178 = scmp.lt.s32.totalorder %s18, 1
      %s179 = scalar_select %p178, %s18, 1
      %p180 = scmp.lt.s32.totalorder %s19, 0
      %s181 = scalar_select %p180, %s19, 0
      %s182 = sadd.s32 %s181, %s179
      %s183 = smul.addr %s182, 4
      %s184 = scalar_lea.vmem %s3, %s183
      %p185 = scmp.lt.s32.totalorder %s18, 1
      %s186 = scalar_select %p185, %s18, 1
      %p187 = scmp.lt.s32.totalorder %s19, 0
      %s188 = scalar_select %p187, %s19, 0
      %s189 = smul.addr %s186, 13
      %s190 = sadd.s32 %s188, %s189
      %s191 = smul.addr %s190, 4
      %s192 = scalar_lea.vmem %s0, %s191
      %p193 = scmp.lt.s32.totalorder %s18, 1
      %s194 = scalar_select %p193, %s18, 1
      %p195 = scmp.lt.s32.totalorder %s19, 0
      %s196 = scalar_select %p195, %s19, 0
      %s197 = sadd.s32 %s196, %s194
      %s198 = smul.addr %s197, 4
      %s199 = scalar_lea.vmem %s3, %s198
      %v201 = vld [vmem:[%s1] sm:$0xf]
      %v202 = vld [vmem:[%s192] sm:$0xf]
      %v203 = vld [vmem:[%s192 + $0x4] sm:$0xf]
      %v204 = vld [vmem:[%s192 + $0x8] sm:$0xf]
      %v205 = vld [vmem:[%s192 + $0xc] sm:$0xf]
      %v206 = vld [vmem:[%s192 + $0x10] sm:$0xf]
      %v207 = vld [vmem:[%s192 + $0x14] sm:$0xf]
      %v208 = vld [vmem:[%s192 + $0x18] sm:$0xf]
      %v209 = vld [vmem:[%s192 + $0x1c] sm:$0xf]
      %v210 = vld [vmem:[%s192 + $0x20] sm:$0xf]
      %v211 = vld [vmem:[%s192 + $0x24] sm:$0xf]
      %v212 = vld [vmem:[%s192 + $0x28] sm:$0xf]
      %v213 = vld [vmem:[%s192 + $0x2c] sm:$0xf]
      %v214 = vld [vmem:[%s192 + $0x30] sm:$0x3]
      %v215 = vld [vmem:[%s2] sm:$0xff]
      %217 = vset.pattern.permute.xlu0 0
      %218 = vperm.xlu0 %217, %v215
      %v219 = vpop.permute.xlu0 %218
      %v234 = vunpack.c.l.b16 %v202
      %v235 = vunpack.c.l.b16 %v203
      %v236 = vunpack.c.l.b16 %v204
      %v237 = vunpack.c.l.b16 %v205
      %v238 = vunpack.c.l.b16 %v206
      %v239 = vunpack.c.l.b16 %v207
      %v240 = vunpack.c.l.b16 %v208
      %v241 = vunpack.c.l.b16 %v209
      %v242 = vunpack.c.l.b16 %v210
      %v243 = vunpack.c.l.b16 %v211
      %v244 = vunpack.c.l.b16 %v212
      %v245 = vunpack.c.l.b16 %v213
      %v246 = vunpack.c.l.b16 %v214
      %v247 = vpack.c.b16 %v235, %v234
      %v248 = vpack.c.b16 %v237, %v236
      %v249 = vpack.c.b16 %v239, %v238
      %v250 = vpack.c.b16 %v241, %v240
      %v251 = vpack.c.b16 %v243, %v242
      %v252 = vpack.c.b16 %v245, %v244
      %v253 = vpack.c.b16 %v246, %v246
      %vm260 = vcmask 818176
      %v262 = vsel %vm260, %v201, 0
      %vm264 = vcmask 1041408
      %v266 = vsel %vm264, %v253, 0
      %268 = vmatpush.bf16.msra.mxu0 0
      %269 = vmatpush.bf16.msra.mxu0 %v266
      %270 = vmatpush.bf16.msra.mxu0 %v252
      %271 = vmatpush.bf16.msra.mxu0 %v251
      %272 = vmatpush.bf16.msra.mxu0 %v250
      %273 = vmatpush.bf16.msra.mxu0 %v249
      %274 = vmatpush.bf16.msra.mxu0 %v248
      %275 = vmatpush.bf16.msra.mxu0 %v247
      %276 = vmatmul.bf16.gmra.mxu0 %v262
      %v277 = vpop.f32.mrf.mxu0
      %v278 = vadd.f32 %v219, %v277
      %v279 = vpop.f32.mrf.mxu0
      %280 = vdwg.mxu0
      %v281 = vmax.f32 %v278, 0.0
      %v282 = vpack.c.bf16 %v281, %v281
      %283 = vst [vmem:[%s199] sm:$0xf] %v282
      %p284 = scmp.lt.s32.totalorder %s18, 1
      %s285 = scalar_select %p284, %s18, 1
      %p286 = scmp.lt.s32.totalorder %s19, 0
      %s287 = scalar_select %p286, %s19, 0
      %s288 = sadd.s32 %s287, %s285
      %s289 = smul.addr %s288, 4
      %s290 = scalar_lea.vmem %s3, %s289
      // Predicated region
      $region33: #{propagation_net_forward.12} parent=31 // pred_check
        %p291 = pneg %p116
      $region34: #{propagation_net_forward.12} parent=31 // pred_check_branch
        %293 = sbr.rel (%p291) target = $region36
      $region35: #{propagation_net_forward.12} parent=31 // pred_region
        _
      $region36: #{propagation_net_forward.12} parent=31 // pred_fallthru
        _
    $region32: #{propagation_net_forward.12} parent=5 // pred_fallthru
      _
    %p294 = scmp.le.s32.totalorder 2, %s9
    // Predicated region
    $region37: #{propagation_net_forward.12} parent=5 // pred_check
      %p295 = pneg %p294
    $region38: #{propagation_net_forward.12} parent=5 // pred_check_branch
      %297 = sbr.rel (%p295) target = $region40
    $region39: #{propagation_net_forward.12} parent=5 // pred_region
      %s298 = ssub.s32 %s9, 2
      // Predicated region
      $region41: #{propagation_net_forward.12} parent=39 // pred_check
        %p299 = pneg %p122
      $region42: #{propagation_net_forward.12} parent=39 // pred_check_branch
        %301 = sbr.rel (%p299) target = $region44
      $region43: #{propagation_net_forward.12} parent=39 // pred_region
        %p302 = scmp.lt.s32.totalorder %s20, 1
        %s303 = scalar_select %p302, %s20, 1
        %p304 = scmp.lt.s32.totalorder %s21, 0
        %s305 = scalar_select %p304, %s21, 0
        %s306 = sadd.s32 %s305, %s303
        %s307 = smul.addr %s306, 4
        %s308 = scalar_lea.vmem %s3, %s307
      $region44: #{propagation_net_forward.12} parent=39 // pred_fallthru
        _
    $region40: #{propagation_net_forward.12} parent=5 // pred_fallthru
      _
  $region6: #{propagation_net_forward.12} parent=0 // loop_footer
    %s13 = sadd.s32 1, %s9
  $region7: #{propagation_net_forward.12} parent=0 // loop_footer_branch
    %8 = sbr.rel target = $region3
  $region8: #{propagation_net_forward.12} parent=0 // loop_exit
    _

// kernel: propagation_net_forward.13
$region0: #{propagation_net_forward.13}
  #allocation0 [shape = 'u32[]', space=smem, size = 0x4, offset = 0x4, fixed_abs, tag = 'smem constant byte address 0x4 - core index']
  #allocation1 [shape = 'u32[72,128]{1,0:T(1,128)}', space=vmem, size = 0x9000, scoped, tag = 'internal scratch']
  %s0 = inlined_call_operand.vmem [shape: bf16[2,72,128], index: 0, kind: input, shape index: {}]
  %s1 = inlined_call_operand.vmem [shape: bf16[8,72], index: 1, kind: input, shape index: {}]
  %s2 = inlined_call_operand.vmem [shape: f32[8,1], index: 2, kind: input, shape index: {}]
  %s3 = inlined_call_operand.vmem [shape: bf16[2,8,128], index: 3, kind: output, shape index: {}]
  %s4 = sld [smem:[#allocation0]]
  $region45: #{propagation_net_forward.13} parent=0
    _
  %s6 = ssub.s32 1, %s4
  %s7 = scalar_select 0, %s6, %s4
  loop: start=0, step=1, limit=4
  $region2: #{propagation_net_forward.13} parent=0 // loop_pre_header
    _
  $region3: #{propagation_net_forward.13} parent=0 // loop_header
    %s9 = sphi 0, %s13
    %p10 = scmp.ge.s32.totalorder %s9, 4
    %s16 = sphi 0, %s28
    %s17 = sphi 0, %s24
    %s18 = sphi 0, %s16
    %s19 = sphi 0, %s17
    %s20 = sphi 0, %s18
    %s21 = sphi 0, %s19
    %s33 = sphi 0, %s35
    %s36 = sphi 0, %s33
    %s37 = sphi 0, %s36
    %s53 = sphi 0, %s37
    %s57 = sphi 0, %s57
    %s59 = sphi 0, %s57
    %s60 = sphi 0, %s59
    %s74 = sphi 0, %s60
    %s78 = sphi 0, %s78
    %s80 = sphi 0, %s78
    %s81 = sphi 0, %s80
    %s95 = sphi 0, %s81
    %s103 = sphi 0, %s105
    %s106 = sphi 0, %s103
    %s107 = sphi 0, %s106
    %s123 = sphi 0, %s107
  $region4: #{propagation_net_forward.13} parent=0 // loop_header_branch
    %12 = sbr.rel (%p10) target = $region8
  $region5: #{propagation_net_forward.13} parent=0 // loop_body
    %s14 = ssub.s32 %s9, 1
    %s15 = ssub.s32 %s9, 2
    %s22 = sadd.s32 1, %s17
    %p23 = scmp.ge.s32.totalorder %s22, 1
    %s24 = scalar_select %p23, 0, %s22
    %s25 = sadd.s32 1, %s16
    %s26 = scalar_select %p23, %s25, %s16
    %p27 = scmp.ge.s32.totalorder %s26, 2
    %s28 = scalar_select %p27, 0, %s26
    %s29 = ssub.s32 %s16, %s28
    %s30 = ssub.s32 %s17, %s24
    %s31 = sor.u32 %s29, %s30
    %p32 = scmp.eq.s32.totalorder %s31, 0
    %s34 = sadd.s32 %s33, 1
    %s35 = scalar_select %p32, %s33, %s34
    %p38 = pneg %p32
    %p39 = scmp.eq.s32.totalorder %s9, 1
    %p40 = por %p38, %p39
    %p41 = scmp.ne.s32.totalorder %s33, %s36
    %p42 = scmp.eq.s32.totalorder %s9, 0
    %p43 = por %p41, %p42
    %p44 = scmp.ne.s32.totalorder %s33, %s36
    %p45 = scmp.eq.s32.totalorder %s14, 1
    %p46 = por %p44, %p45
    %p47 = scmp.ne.s32.totalorder %s36, %s37
    %p48 = scmp.eq.s32.totalorder %s14, 0
    %p49 = por %p47, %p48
    %p50 = scmp.ne.s32.totalorder %s36, %s37
    %p51 = scmp.eq.s32.totalorder %s15, 1
    %p52 = por %p50, %p51
    %p54 = scmp.ne.s32.totalorder %s37, %s53
    %p55 = scmp.eq.s32.totalorder %s15, 0
    %p56 = por %p54, %p55
    %s58 = sadd.s32 %s57, 1
    %p61 = scmp.eq.s32.totalorder %s9, 1
    %p62 = scmp.ne.s32.totalorder %s57, %s59
    %p63 = scmp.eq.s32.totalorder %s9, 0
    %p64 = por %p62, %p63
    %p65 = scmp.ne.s32.totalorder %s57, %s59
    %p66 = scmp.eq.s32.totalorder %s14, 1
    %p67 = por %p65, %p66
    %p68 = scmp.ne.s32.totalorder %s59, %s60
    %p69 = scmp.eq.s32.totalorder %s14, 0
    %p70 = por %p68, %p69
    %p71 = scmp.ne.s32.totalorder %s59, %s60
    %p72 = scmp.eq.s32.totalorder %s15, 1
    %p73 = por %p71, %p72
    %p75 = scmp.ne.s32.totalorder %s60, %s74
    %p76 = scmp.eq.s32.totalorder %s15, 0
    %p77 = por %p75, %p76
    %s79 = sadd.s32 %s78, 1
    %p82 = scmp.eq.s32.totalorder %s9, 1
    %p83 = scmp.ne.s32.totalorder %s78, %s80
    %p84 = scmp.eq.s32.totalorder %s9, 0
    %p85 = por %p83, %p84
    %p86 = scmp.ne.s32.totalorder %s78, %s80
    %p87 = scmp.eq.s32.totalorder %s14, 1
    %p88 = por %p86, %p87
    %p89 = scmp.ne.s32.totalorder %s80, %s81
    %p90 = scmp.eq.s32.totalorder %s14, 0
    %p91 = por %p89, %p90
    %p92 = scmp.ne.s32.totalorder %s80, %s81
    %p93 = scmp.eq.s32.totalorder %s15, 1
    %p94 = por %p92, %p93
    %p96 = scmp.ne.s32.totalorder %s81, %s95
    %p97 = scmp.eq.s32.totalorder %s15, 0
    %p98 = por %p96, %p97
    %s99 = ssub.s32 %s16, %s28
    %s100 = ssub.s32 %s17, %s24
    %s101 = sor.u32 %s99, %s100
    %p102 = scmp.eq.s32.totalorder %s101, 0
    %s104 = sadd.s32 %s103, 1
    %s105 = scalar_select %p102, %s103, %s104
    %p108 = pneg %p102
    %p109 = scmp.eq.s32.totalorder %s9, 1
    %p110 = por %p108, %p109
    %p111 = scmp.ne.s32.totalorder %s103, %s106
    %p112 = scmp.eq.s32.totalorder %s9, 0
    %p113 = por %p111, %p112
    %p114 = scmp.ne.s32.totalorder %s103, %s106
    %p115 = scmp.eq.s32.totalorder %s14, 1
    %p116 = por %p114, %p115
    %p117 = scmp.ne.s32.totalorder %s106, %s107
    %p118 = scmp.eq.s32.totalorder %s14, 0
    %p119 = por %p117, %p118
    %p120 = scmp.ne.s32.totalorder %s106, %s107
    %p121 = scmp.eq.s32.totalorder %s15, 1
    %p122 = por %p120, %p121
    %p124 = scmp.ne.s32.totalorder %s107, %s123
    %p125 = scmp.eq.s32.totalorder %s15, 0
    %p126 = por %p124, %p125
    %p127 = scmp.le.s32.totalorder 1, %s9
    %p128 = scmp.lt.s32.totalorder %s9, 3
    %p129 = pnand %p127, %p128
    %p130 = pneg %p129
    // Predicated region
    $region9: #{propagation_net_forward.13} parent=5 // pred_check
      _
    $region10: #{propagation_net_forward.13} parent=5 // pred_check_branch
      %132 = sbr.rel (%p129) target = $region12
    $region11: #{propagation_net_forward.13} parent=5 // pred_region
      %s133 = ssub.s32 %s9, 1
      // Predicated region
      $region13: #{propagation_net_forward.13} parent=11 // pred_check
        %p134 = pneg %p70
      $region14: #{propagation_net_forward.13} parent=11 // pred_check_branch
        %136 = sbr.rel (%p134) target = $region16
      $region15: #{propagation_net_forward.13} parent=11 // pred_region
        _
      $region16: #{propagation_net_forward.13} parent=11 // pred_fallthru
        _
      // Predicated region
      $region17: #{propagation_net_forward.13} parent=11 // pred_check
        %p137 = pneg %p91
      $region18: #{propagation_net_forward.13} parent=11 // pred_check_branch
        %139 = sbr.rel (%p137) target = $region20
      $region19: #{propagation_net_forward.13} parent=11 // pred_region
        _
      $region20: #{propagation_net_forward.13} parent=11 // pred_fallthru
        _
    $region12: #{propagation_net_forward.13} parent=5 // pred_fallthru
      _
    %p140 = scmp.lt.s32.totalorder %s9, 2
    // Predicated region
    $region21: #{propagation_net_forward.13} parent=5 // pred_check
      %p141 = pneg %p140
    $region22: #{propagation_net_forward.13} parent=5 // pred_check_branch
      %143 = sbr.rel (%p141) target = $region24
    $region23: #{propagation_net_forward.13} parent=5 // pred_region
      // Predicated region
      $region25: #{propagation_net_forward.13} parent=23 // pred_check
        %p144 = pneg %p43
      $region26: #{propagation_net_forward.13} parent=23 // pred_check_branch
        %146 = sbr.rel (%p144) target = $region28
      $region27: #{propagation_net_forward.13} parent=23 // pred_region
        %p147 = scmp.lt.s32.totalorder %s16, 1
        %s148 = scalar_select %p147, %s16, 1
        %p149 = scmp.lt.s32.totalorder %s17, 0
        %s150 = scalar_select %p149, %s17, 0
        %s151 = smul.addr %s148, 9
        %s152 = sadd.s32 %s150, %s151
        %s153 = smul.addr %s152, 4
        %s154 = scalar_lea.vmem %s0, %s153
      $region28: #{propagation_net_forward.13} parent=23 // pred_fallthru
        _
    $region24: #{propagation_net_forward.13} parent=5 // pred_fallthru
      _
    %p155 = scmp.le.s32.totalorder 1, %s9
    %p156 = scmp.lt.s32.totalorder %s9, 3
    %p157 = pnand %p155, %p156
    %p158 = pneg %p157
    // Predicated region
    $region29: #{propagation_net_forward.13} parent=5 // pred_check
      _
    $region30: #{propagation_net_forward.13} parent=5 // pred_check_branch
      %160 = sbr.rel (%p157) target = $region32
    $region31: #{propagation_net_forward.13} parent=5 // pred_region
      %s161 = ssub.s32 %s9, 1
      %p162 = scmp.lt.s32.totalorder %s18, 1
      %s163 = scalar_select %p162, %s18, 1
      %p164 = scmp.lt.s32.totalorder %s19, 0
      %s165 = scalar_select %p164, %s19, 0
      %s166 = smul.addr %s163, 9
      %s167 = sadd.s32 %s165, %s166
      %s168 = smul.addr %s167, 4
      %s169 = scalar_lea.vmem %s0, %s168
      %p170 = pneg %p49
      %p171 = pneg %p46
      %p172 = pneg %p70
      %p173 = pneg %p67
      %p174 = pneg %p91
      %p175 = pneg %p88
      %p176 = pneg %p119
      %p177 = pneg %p116
      %p178 = scmp.lt.s32.totalorder %s18, 1
      %s179 = scalar_select %p178, %s18, 1
      %p180 = scmp.lt.s32.totalorder %s19, 0
      %s181 = scalar_select %p180, %s19, 0
      %s182 = sadd.s32 %s181, %s179
      %s183 = smul.addr %s182, 4
      %s184 = scalar_lea.vmem %s3, %s183
      %p185 = scmp.lt.s32.totalorder %s18, 1
      %s186 = scalar_select %p185, %s18, 1
      %p187 = scmp.lt.s32.totalorder %s19, 0
      %s188 = scalar_select %p187, %s19, 0
      %s189 = smul.addr %s186, 9
      %s190 = sadd.s32 %s188, %s189
      %s191 = smul.addr %s190, 4
      %s192 = scalar_lea.vmem %s0, %s191
      %p193 = scmp.lt.s32.totalorder %s18, 1
      %s194 = scalar_select %p193, %s18, 1
      %p195 = scmp.lt.s32.totalorder %s19, 0
      %s196 = scalar_select %p195, %s19, 0
      %s197 = sadd.s32 %s196, %s194
      %s198 = smul.addr %s197, 4
      %s199 = scalar_lea.vmem %s3, %s198
      %v201 = vld [vmem:[%s1] sm:$0xf]
      %v202 = vld [vmem:[%s192] sm:$0xf]
      %v203 = vld [vmem:[%s192 + $0x4] sm:$0xf]
      %v204 = vld [vmem:[%s192 + $0x8] sm:$0xf]
      %v205 = vld [vmem:[%s192 + $0xc] sm:$0xf]
      %v206 = vld [vmem:[%s192 + $0x10] sm:$0xf]
      %v207 = vld [vmem:[%s192 + $0x14] sm:$0xf]
      %v208 = vld [vmem:[%s192 + $0x18] sm:$0xf]
      %v209 = vld [vmem:[%s192 + $0x1c] sm:$0xf]
      %v210 = vld [vmem:[%s192 + $0x20] sm:$0xf]
      %v211 = vld [vmem:[%s2] sm:$0xff]
      %213 = vset.pattern.permute.xlu0 0
      %214 = vperm.xlu0 %213, %v211
      %v215 = vpop.permute.xlu0 %214
      %v226 = vunpack.c.l.b16 %v202
      %v227 = vunpack.c.l.b16 %v203
      %v228 = vunpack.c.l.b16 %v204
      %v229 = vunpack.c.l.b16 %v205
      %v230 = vunpack.c.l.b16 %v206
      %v231 = vunpack.c.l.b16 %v207
      %v232 = vunpack.c.l.b16 %v208
      %v233 = vunpack.c.l.b16 %v209
      %v234 = vunpack.c.l.b16 %v210
      %v235 = vpack.c.b16 %v227, %v226
      %v236 = vpack.c.b16 %v229, %v228
      %v237 = vpack.c.b16 %v231, %v230
      %v238 = vpack.c.b16 %v233, %v232
      %v239 = vpack.c.b16 %v234, %v234
      %vm244 = vcmask 588800
      %v246 = vsel %vm244, %v201, 0
      %vm248 = vcmask 1043456
      %v250 = vsel %vm248, %v239, 0
      %252 = vmatpush.bf16.msra.mxu0 0
      %253 = vmatpush.bf16.msra.mxu0 0
      %254 = vmatpush.bf16.msra.mxu0 0
      %255 = vmatpush.bf16.msra.mxu0 %v250
      %256 = vmatpush.bf16.msra.mxu0 %v238
      %257 = vmatpush.bf16.msra.mxu0 %v237
      %258 = vmatpush.bf16.msra.mxu0 %v236
      %259 = vmatpush.bf16.msra.mxu0 %v235
      %260 = vmatmul.bf16.gmra.mxu0 %v246
      %v261 = vpop.f32.mrf.mxu0
      %v262 = vadd.f32 %v215, %v261
      %v263 = vpop.f32.mrf.mxu0
      %264 = vdwg.mxu0
      %v265 = vmax.f32 %v262, 0.0
      %v266 = vpack.c.bf16 %v265, %v265
      %267 = vst [vmem:[%s199] sm:$0xf] %v266
      %p268 = scmp.lt.s32.totalorder %s18, 1
      %s269 = scalar_select %p268, %s18, 1
      %p270 = scmp.lt.s32.totalorder %s19, 0
      %s271 = scalar_select %p270, %s19, 0
      %s272 = sadd.s32 %s271, %s269
      %s273 = smul.addr %s272, 4
      %s274 = scalar_lea.vmem %s3, %s273
      // Predicated region
      $region33: #{propagation_net_forward.13} parent=31 // pred_check
        %p275 = pneg %p116
      $region34: #{propagation_net_forward.13} parent=31 // pred_check_branch
        %277 = sbr.rel (%p275) target = $region36
      $region35: #{propagation_net_forward.13} parent=31 // pred_region
        _
      $region36: #{propagation_net_forward.13} parent=31 // pred_fallthru
        _
    $region32: #{propagation_net_forward.13} parent=5 // pred_fallthru
      _
    %p278 = scmp.le.s32.totalorder 2, %s9
    // Predicated region
    $region37: #{propagation_net_forward.13} parent=5 // pred_check
      %p279 = pneg %p278
    $region38: #{propagation_net_forward.13} parent=5 // pred_check_branch
      %281 = sbr.rel (%p279) target = $region40
    $region39: #{propagation_net_forward.13} parent=5 // pred_region
      %s282 = ssub.s32 %s9, 2
      // Predicated region
      $region41: #{propagation_net_forward.13} parent=39 // pred_check
        %p283 = pneg %p122
      $region42: #{propagation_net_forward.13} parent=39 // pred_check_branch
        %285 = sbr.rel (%p283) target = $region44
      $region43: #{propagation_net_forward.13} parent=39 // pred_region
        %p286 = scmp.lt.s32.totalorder %s20, 1
        %s287 = scalar_select %p286, %s20, 1
        %p288 = scmp.lt.s32.totalorder %s21, 0
        %s289 = scalar_select %p288, %s21, 0
        %s290 = sadd.s32 %s289, %s287
        %s291 = smul.addr %s290, 4
        %s292 = scalar_lea.vmem %s3, %s291
      $region44: #{propagation_net_forward.13} parent=39 // pred_fallthru
        _
    $region40: #{propagation_net_forward.13} parent=5 // pred_fallthru
      _
  $region6: #{propagation_net_forward.13} parent=0 // loop_footer
    %s13 = sadd.s32 1, %s9
  $region7: #{propagation_net_forward.13} parent=0 // loop_footer_branch
    %8 = sbr.rel target = $region3
  $region8: #{propagation_net_forward.13} parent=0 // loop_exit
    _

// kernel: propagation_net_forward.15
$region0: #{propagation_net_forward.15}
  #allocation0 [shape = 'u32[]', space=smem, size = 0x4, offset = 0x4, fixed_abs, tag = 'smem constant byte address 0x4 - core index']
  #allocation1 [shape = 'u32[72,128]{1,0:T(1,128)}', space=vmem, size = 0x9000, scoped, tag = 'internal scratch']
  %s0 = inlined_call_operand.vmem [shape: bf16[2,200,128], index: 0, kind: input, shape index: {}]
  %s1 = inlined_call_operand.vmem [shape: bf16[16,200], index: 1, kind: input, shape index: {}]
  %s2 = inlined_call_operand.vmem [shape: f32[16,1], index: 2, kind: input, shape index: {}]
  %s3 = inlined_call_operand.vmem [shape: bf16[2,16,128], index: 3, kind: output, shape index: {}]
  %s4 = sld [smem:[#allocation0]]
  $region45: #{propagation_net_forward.15} parent=0
    _
  %s6 = ssub.s32 1, %s4
  %s7 = scalar_select 0, %s6, %s4
  loop: start=0, step=1, limit=4
  $region2: #{propagation_net_forward.15} parent=0 // loop_pre_header
    _
  $region3: #{propagation_net_forward.15} parent=0 // loop_header
    %s9 = sphi 0, %s13
    %p10 = scmp.ge.s32.totalorder %s9, 4
    %s16 = sphi 0, %s28
    %s17 = sphi 0, %s24
    %s18 = sphi 0, %s16
    %s19 = sphi 0, %s17
    %s20 = sphi 0, %s18
    %s21 = sphi 0, %s19
    %s33 = sphi 0, %s35
    %s36 = sphi 0, %s33
    %s37 = sphi 0, %s36
    %s53 = sphi 0, %s37
    %s57 = sphi 0, %s57
    %s59 = sphi 0, %s57
    %s60 = sphi 0, %s59
    %s74 = sphi 0, %s60
    %s78 = sphi 0, %s78
    %s80 = sphi 0, %s78
    %s81 = sphi 0, %s80
    %s95 = sphi 0, %s81
    %s103 = sphi 0, %s105
    %s106 = sphi 0, %s103
    %s107 = sphi 0, %s106
    %s123 = sphi 0, %s107
  $region4: #{propagation_net_forward.15} parent=0 // loop_header_branch
    %12 = sbr.rel (%p10) target = $region8
  $region5: #{propagation_net_forward.15} parent=0 // loop_body
    %s14 = ssub.s32 %s9, 1
    %s15 = ssub.s32 %s9, 2
    %s22 = sadd.s32 1, %s17
    %p23 = scmp.ge.s32.totalorder %s22, 1
    %s24 = scalar_select %p23, 0, %s22
    %s25 = sadd.s32 1, %s16
    %s26 = scalar_select %p23, %s25, %s16
    %p27 = scmp.ge.s32.totalorder %s26, 2
    %s28 = scalar_select %p27, 0, %s26
    %s29 = ssub.s32 %s16, %s28
    %s30 = ssub.s32 %s17, %s24
    %s31 = sor.u32 %s29, %s30
    %p32 = scmp.eq.s32.totalorder %s31, 0
    %s34 = sadd.s32 %s33, 1
    %s35 = scalar_select %p32, %s33, %s34
    %p38 = pneg %p32
    %p39 = scmp.eq.s32.totalorder %s9, 1
    %p40 = por %p38, %p39
    %p41 = scmp.ne.s32.totalorder %s33, %s36
    %p42 = scmp.eq.s32.totalorder %s9, 0
    %p43 = por %p41, %p42
    %p44 = scmp.ne.s32.totalorder %s33, %s36
    %p45 = scmp.eq.s32.totalorder %s14, 1
    %p46 = por %p44, %p45
    %p47 = scmp.ne.s32.totalorder %s36, %s37
    %p48 = scmp.eq.s32.totalorder %s14, 0
    %p49 = por %p47, %p48
    %p50 = scmp.ne.s32.totalorder %s36, %s37
    %p51 = scmp.eq.s32.totalorder %s15, 1
    %p52 = por %p50, %p51
    %p54 = scmp.ne.s32.totalorder %s37, %s53
    %p55 = scmp.eq.s32.totalorder %s15, 0
    %p56 = por %p54, %p55
    %s58 = sadd.s32 %s57, 1
    %p61 = scmp.eq.s32.totalorder %s9, 1
    %p62 = scmp.ne.s32.totalorder %s57, %s59
    %p63 = scmp.eq.s32.totalorder %s9, 0
    %p64 = por %p62, %p63
    %p65 = scmp.ne.s32.totalorder %s57, %s59
    %p66 = scmp.eq.s32.totalorder %s14, 1
    %p67 = por %p65, %p66
    %p68 = scmp.ne.s32.totalorder %s59, %s60
    %p69 = scmp.eq.s32.totalorder %s14, 0
    %p70 = por %p68, %p69
    %p71 = scmp.ne.s32.totalorder %s59, %s60
    %p72 = scmp.eq.s32.totalorder %s15, 1
    %p73 = por %p71, %p72
    %p75 = scmp.ne.s32.totalorder %s60, %s74
    %p76 = scmp.eq.s32.totalorder %s15, 0
    %p77 = por %p75, %p76
    %s79 = sadd.s32 %s78, 1
    %p82 = scmp.eq.s32.totalorder %s9, 1
    %p83 = scmp.ne.s32.totalorder %s78, %s80
    %p84 = scmp.eq.s32.totalorder %s9, 0
    %p85 = por %p83, %p84
    %p86 = scmp.ne.s32.totalorder %s78, %s80
    %p87 = scmp.eq.s32.totalorder %s14, 1
    %p88 = por %p86, %p87
    %p89 = scmp.ne.s32.totalorder %s80, %s81
    %p90 = scmp.eq.s32.totalorder %s14, 0
    %p91 = por %p89, %p90
    %p92 = scmp.ne.s32.totalorder %s80, %s81
    %p93 = scmp.eq.s32.totalorder %s15, 1
    %p94 = por %p92, %p93
    %p96 = scmp.ne.s32.totalorder %s81, %s95
    %p97 = scmp.eq.s32.totalorder %s15, 0
    %p98 = por %p96, %p97
    %s99 = ssub.s32 %s16, %s28
    %s100 = ssub.s32 %s17, %s24
    %s101 = sor.u32 %s99, %s100
    %p102 = scmp.eq.s32.totalorder %s101, 0
    %s104 = sadd.s32 %s103, 1
    %s105 = scalar_select %p102, %s103, %s104
    %p108 = pneg %p102
    %p109 = scmp.eq.s32.totalorder %s9, 1
    %p110 = por %p108, %p109
    %p111 = scmp.ne.s32.totalorder %s103, %s106
    %p112 = scmp.eq.s32.totalorder %s9, 0
    %p113 = por %p111, %p112
    %p114 = scmp.ne.s32.totalorder %s103, %s106
    %p115 = scmp.eq.s32.totalorder %s14, 1
    %p116 = por %p114, %p115
    %p117 = scmp.ne.s32.totalorder %s106, %s107
    %p118 = scmp.eq.s32.totalorder %s14, 0
    %p119 = por %p117, %p118
    %p120 = scmp.ne.s32.totalorder %s106, %s107
    %p121 = scmp.eq.s32.totalorder %s15, 1
    %p122 = por %p120, %p121
    %p124 = scmp.ne.s32.totalorder %s107, %s123
    %p125 = scmp.eq.s32.totalorder %s15, 0
    %p126 = por %p124, %p125
    %p127 = scmp.le.s32.totalorder 1, %s9
    %p128 = scmp.lt.s32.totalorder %s9, 3
    %p129 = pnand %p127, %p128
    %p130 = pneg %p129
    // Predicated region
    $region9: #{propagation_net_forward.15} parent=5 // pred_check
      _
    $region10: #{propagation_net_forward.15} parent=5 // pred_check_branch
      %132 = sbr.rel (%p129) target = $region12
    $region11: #{propagation_net_forward.15} parent=5 // pred_region
      %s133 = ssub.s32 %s9, 1
      // Predicated region
      $region13: #{propagation_net_forward.15} parent=11 // pred_check
        %p134 = pneg %p70
      $region14: #{propagation_net_forward.15} parent=11 // pred_check_branch
        %136 = sbr.rel (%p134) target = $region16
      $region15: #{propagation_net_forward.15} parent=11 // pred_region
        _
      $region16: #{propagation_net_forward.15} parent=11 // pred_fallthru
        _
      // Predicated region
      $region17: #{propagation_net_forward.15} parent=11 // pred_check
        %p137 = pneg %p91
      $region18: #{propagation_net_forward.15} parent=11 // pred_check_branch
        %139 = sbr.rel (%p137) target = $region20
      $region19: #{propagation_net_forward.15} parent=11 // pred_region
        _
      $region20: #{propagation_net_forward.15} parent=11 // pred_fallthru
        _
    $region12: #{propagation_net_forward.15} parent=5 // pred_fallthru
      _
    %p140 = scmp.lt.s32.totalorder %s9, 2
    // Predicated region
    $region21: #{propagation_net_forward.15} parent=5 // pred_check
      %p141 = pneg %p140
    $region22: #{propagation_net_forward.15} parent=5 // pred_check_branch
      %143 = sbr.rel (%p141) target = $region24
    $region23: #{propagation_net_forward.15} parent=5 // pred_region
      // Predicated region
      $region25: #{propagation_net_forward.15} parent=23 // pred_check
        %p144 = pneg %p43
      $region26: #{propagation_net_forward.15} parent=23 // pred_check_branch
        %146 = sbr.rel (%p144) target = $region28
      $region27: #{propagation_net_forward.15} parent=23 // pred_region
        %p147 = scmp.lt.s32.totalorder %s16, 1
        %s148 = scalar_select %p147, %s16, 1
        %p149 = scmp.lt.s32.totalorder %s17, 0
        %s150 = scalar_select %p149, %s17, 0
        %s151 = smul.addr %s148, 25
        %s152 = sadd.s32 %s150, %s151
        %s153 = smul.addr %s152, 4
        %s154 = scalar_lea.vmem %s0, %s153
      $region28: #{propagation_net_forward.15} parent=23 // pred_fallthru
        _
    $region24: #{propagation_net_forward.15} parent=5 // pred_fallthru
      _
    %p155 = scmp.le.s32.totalorder 1, %s9
    %p156 = scmp.lt.s32.totalorder %s9, 3
    %p157 = pnand %p155, %p156
    %p158 = pneg %p157
    // Predicated region
    $region29: #{propagation_net_forward.15} parent=5 // pred_check
      _
    $region30: #{propagation_net_forward.15} parent=5 // pred_check_branch
      %160 = sbr.rel (%p157) target = $region32
    $region31: #{propagation_net_forward.15} parent=5 // pred_region
      %s161 = ssub.s32 %s9, 1
      %p162 = scmp.lt.s32.totalorder %s18, 1
      %s163 = scalar_select %p162, %s18, 1
      %p164 = scmp.lt.s32.totalorder %s19, 0
      %s165 = scalar_select %p164, %s19, 0
      %s166 = smul.addr %s163, 25
      %s167 = sadd.s32 %s165, %s166
      %s168 = smul.addr %s167, 4
      %s169 = scalar_lea.vmem %s0, %s168
      %p170 = pneg %p49
      %p171 = pneg %p46
      %p172 = pneg %p70
      %p173 = pneg %p67
      %p174 = pneg %p91
      %p175 = pneg %p88
      %p176 = pneg %p119
      %p177 = pneg %p116
      %p178 = scmp.lt.s32.totalorder %s18, 1
      %s179 = scalar_select %p178, %s18, 1
      %p180 = scmp.lt.s32.totalorder %s19, 0
      %s181 = scalar_select %p180, %s19, 0
      %s182 = smul.addr %s179, 2
      %s183 = sadd.s32 %s181, %s182
      %s184 = smul.addr %s183, 4
      %s185 = scalar_lea.vmem %s3, %s184
      %p186 = scmp.lt.s32.totalorder %s18, 1
      %s187 = scalar_select %p186, %s18, 1
      %p188 = scmp.lt.s32.totalorder %s19, 0
      %s189 = scalar_select %p188, %s19, 0
      %s190 = smul.addr %s187, 25
      %s191 = sadd.s32 %s189, %s190
      %s192 = smul.addr %s191, 4
      %s193 = scalar_lea.vmem %s0, %s192
      %p194 = scmp.lt.s32.totalorder %s18, 1
      %s195 = scalar_select %p194, %s18, 1
      %p196 = scmp.lt.s32.totalorder %s19, 0
      %s197 = scalar_select %p196, %s19, 0
      %s198 = smul.addr %s195, 2
      %s199 = sadd.s32 %s197, %s198
      %s200 = smul.addr %s199, 4
      %s201 = scalar_lea.vmem %s3, %s200
      %v203 = vld [vmem:[%s1] sm:$0xff]
      %v204 = vld [vmem:[%s1 + $0x8] sm:$0xff]
      %v205 = vld [vmem:[%s193] sm:$0xf]
      %v206 = vld [vmem:[%s193 + $0x4] sm:$0xf]
      %v207 = vld [vmem:[%s193 + $0x8] sm:$0xf]
      %v208 = vld [vmem:[%s193 + $0xc] sm:$0xf]
      %v209 = vld [vmem:[%s193 + $0x10] sm:$0xf]
      %v210 = vld [vmem:[%s193 + $0x14] sm:$0xf]
      %v211 = vld [vmem:[%s193 + $0x18] sm:$0xf]
      %v212 = vld [vmem:[%s193 + $0x1c] sm:$0xf]
      %v213 = vld [vmem:[%s193 + $0x20] sm:$0xf]
      %v214 = vld [vmem:[%s193 + $0x24] sm:$0xf]
      %v215 = vld [vmem:[%s193 + $0x28] sm:$0xf]
      %v216 = vld [vmem:[%s193 + $0x2c] sm:$0xf]
      %v217 = vld [vmem:[%s193 + $0x30] sm:$0xf]
      %v218 = vld [vmem:[%s193 + $0x34] sm:$0xf]
      %v219 = vld [vmem:[%s193 + $0x38] sm:$0xf]
      %v220 = vld [vmem:[%s193 + $0x3c] sm:$0xf]
      %v221 = vld [vmem:[%s193 + $0x40] sm:$0xf]
      %v222 = vld [vmem:[%s193 + $0x44] sm:$0xf]
      %v223 = vld [vmem:[%s193 + $0x48] sm:$0xf]
      %v224 = vld [vmem:[%s193 + $0x4c] sm:$0xf]
      %v225 = vld [vmem:[%s193 + $0x50] sm:$0xf]
      %v226 = vld [vmem:[%s193 + $0x54] sm:$0xf]
      %v227 = vld [vmem:[%s193 + $0x58] sm:$0xf]
      %v228 = vld [vmem:[%s193 + $0x5c] sm:$0xf]
      %v229 = vld [vmem:[%s193 + $0x60] sm:$0xf]
      %v230 = vld [vmem:[%s2] sm:$0xff]
      %v231 = vld [vmem:[%s2 + $0x8] sm:$0xff]
      %233 = vset.pattern.permute.xlu0 0
      %234 = vperm.xlu0 %233, %v230
      %v235 = vpop.permute.xlu0 %234
      %238 = vset.pattern.permute.xlu0 0
      %239 = vperm.xlu0 %238, %v231
      %v240 = vpop.permute.xlu0 %239
      %v244 = vunpack.c.l.b16 %v203
      %v245 = vunpack.c.h.b16 %v203
      %v246 = vunpack.c.l.b16 %v204
      %v247 = vunpack.c.h.b16 %v204
      %v248 = vpack.c.b16 %v246, %v244
      %v249 = vpack.c.b16 %v247, %v245
      %v276 = vunpack.c.l.b16 %v205
      %v277 = vunpack.c.l.b16 %v206
      %v278 = vunpack.c.l.b16 %v207
      %v279 = vunpack.c.l.b16 %v208
      %v280 = vunpack.c.l.b16 %v209
      %v281 = vunpack.c.l.b16 %v210
      %v282 = vunpack.c.l.b16 %v211
      %v283 = vunpack.c.l.b16 %v212
      %v284 = vunpack.c.l.b16 %v213
      %v285 = vunpack.c.l.b16 %v214
      %v286 = vunpack.c.l.b16 %v215
      %v287 = vunpack.c.l.b16 %v216
      %v288 = vunpack.c.l.b16 %v217
      %v289 = vunpack.c.l.b16 %v218
      %v290 = vunpack.c.l.b16 %v219
      %v291 = vunpack.c.l.b16 %v220
      %v292 = vunpack.c.l.b16 %v221
      %v293 = vunpack.c.l.b16 %v222
      %v294 = vunpack.c.l.b16 %v223
      %v295 = vunpack.c.l.b16 %v224
      %v296 = vunpack.c.l.b16 %v225
      %v297 = vunpack.c.l.b16 %v226
      %v298 = vunpack.c.l.b16 %v227
      %v299 = vunpack.c.l.b16 %v228
      %v300 = vunpack.c.l.b16 %v229
      %v301 = vpack.c.b16 %v277, %v276
      %v302 = vpack.c.b16 %v279, %v278
      %v303 = vpack.c.b16 %v281, %v280
      %v304 = vpack.c.b16 %v283, %v282
      %v305 = vpack.c.b16 %v285, %v284
      %v306 = vpack.c.b16 %v287, %v286
      %v307 = vpack.c.b16 %v289, %v288
      %v308 = vpack.c.b16 %v291, %v290
      %v309 = vpack.c.b16 %v293, %v292
      %v310 = vpack.c.b16 %v295, %v294
      %v311 = vpack.c.b16 %v297, %v296
      %v312 = vpack.c.b16 %v299, %v298
      %v313 = vpack.c.b16 %v300, %v300
      %vm326 = vcmask 588800
      %v328 = vsel %vm326, %v249, 0
      %vm330 = vcmask 1043456
      %v332 = vsel %vm330, %v313, 0
      %334 = vmatpush.bf16.msra.mxu0 %v308
      %335 = vmatpush.bf16.msra.mxu0 %v307
      %336 = vmatpush.bf16.msra.mxu0 %v306
      %337 = vmatpush.bf16.msra.mxu0 %v305
      %338 = vmatpush.bf16.msra.mxu0 %v304
      %339 = vmatpush.bf16.msra.mxu0 %v303
      %340 = vmatpush.bf16.msra.mxu0 %v302
      %341 = vmatpush.bf16.msra.mxu0 %v301
      %342 = vmatmul.bf16.gmra.mxu0 %v248
      %v343 = vpop.f32.mrf.mxu0
      %v344 = vadd.f32 %v235, %v343
      %v345 = vpop.f32.mrf.mxu0
      %v346 = vadd.f32 %v240, %v345
      %347 = vdwg.mxu0
      %348 = vmatpush.bf16.msra.mxu0 0
      %349 = vmatpush.bf16.msra.mxu0 0
      %350 = vmatpush.bf16.msra.mxu0 0
      %351 = vmatpush.bf16.msra.mxu0 %v332
      %352 = vmatpush.bf16.msra.mxu0 %v312
      %353 = vmatpush.bf16.msra.mxu0 %v311
      %354 = vmatpush.bf16.msra.mxu0 %v310
      %355 = vmatpush.bf16.msra.mxu0 %v309
      %356 = vmatmul.bf16.gmra.mxu0 %v328
      %v357 = vpop.f32.mrf.mxu0
      %v358 = vadd.f32 %v344, %v357
      %v359 = vpop.f32.mrf.mxu0
      %v360 = vadd.f32 %v346, %v359
      %361 = vdwg.mxu0
      %v362 = vmax.f32 %v358, 0.0
      %v363 = vmax.f32 %v360, 0.0
      %v364 = vpack.c.bf16 %v362, %v362
      %v365 = vpack.c.bf16 %v363, %v363
      %366 = vst [vmem:[%s201] sm:$0xf] %v364
      %367 = vst [vmem:[%s201 + $0x4] sm:$0xf] %v365
      %p368 = scmp.lt.s32.totalorder %s18, 1
      %s369 = scalar_select %p368, %s18, 1
      %p370 = scmp.lt.s32.totalorder %s19, 0
      %s371 = scalar_select %p370, %s19, 0
      %s372 = smul.addr %s369, 2
      %s373 = sadd.s32 %s371, %s372
      %s374 = smul.addr %s373, 4
      %s375 = scalar_lea.vmem %s3, %s374
      // Predicated region
      $region33: #{propagation_net_forward.15} parent=31 // pred_check
        %p376 = pneg %p116
      $region34: #{propagation_net_forward.15} parent=31 // pred_check_branch
        %378 = sbr.rel (%p376) target = $region36
      $region35: #{propagation_net_forward.15} parent=31 // pred_region
        _
      $region36: #{propagation_net_forward.15} parent=31 // pred_fallthru
        _
    $region32: #{propagation_net_forward.15} parent=5 // pred_fallthru
      _
    %p379 = scmp.le.s32.totalorder 2, %s9
    // Predicated region
    $region37: #{propagation_net_forward.15} parent=5 // pred_check
      %p380 = pneg %p379
    $region38: #{propagation_net_forward.15} parent=5 // pred_check_branch
      %382 = sbr.rel (%p380) target = $region40
    $region39: #{propagation_net_forward.15} parent=5 // pred_region
      %s383 = ssub.s32 %s9, 2
      // Predicated region
      $region41: #{propagation_net_forward.15} parent=39 // pred_check
        %p384 = pneg %p122
      $region42: #{propagation_net_forward.15} parent=39 // pred_check_branch
        %386 = sbr.rel (%p384) target = $region44
      $region43: #{propagation_net_forward.15} parent=39 // pred_region
        %p387 = scmp.lt.s32.totalorder %s20, 1
        %s388 = scalar_select %p387, %s20, 1
        %p389 = scmp.lt.s32.totalorder %s21, 0
        %s390 = scalar_select %p389, %s21, 0
        %s391 = smul.addr %s388, 2
        %s392 = sadd.s32 %s390, %s391
        %s393 = smul.addr %s392, 4
        %s394 = scalar_lea.vmem %s3, %s393
      $region44: #{propagation_net_forward.15} parent=39 // pred_fallthru
        _
    $region40: #{propagation_net_forward.15} parent=5 // pred_fallthru
      _
  $region6: #{propagation_net_forward.15} parent=0 // loop_footer
    %s13 = sadd.s32 1, %s9
  $region7: #{propagation_net_forward.15} parent=0 // loop_footer_branch
    %8 = sbr.rel target = $region3
  $region8: #{propagation_net_forward.15} parent=0 // loop_exit
    _

// kernel: propagation_net_forward.16
$region0: #{propagation_net_forward.16}
  #allocation0 [shape = 'u32[]', space=smem, size = 0x4, offset = 0x4, fixed_abs, tag = 'smem constant byte address 0x4 - core index']
  #allocation1 [shape = 'u32[72,128]{1,0:T(1,128)}', space=vmem, size = 0x9000, scoped, tag = 'internal scratch']
  %s0 = inlined_call_operand.vmem [shape: bf16[2,144,128], index: 0, kind: input, shape index: {}]
  %s1 = inlined_call_operand.vmem [shape: bf16[16,144], index: 1, kind: input, shape index: {}]
  %s2 = inlined_call_operand.vmem [shape: f32[16,1], index: 2, kind: input, shape index: {}]
  %s3 = inlined_call_operand.vmem [shape: bf16[2,16,128], index: 3, kind: output, shape index: {}]
  %s4 = sld [smem:[#allocation0]]
  $region45: #{propagation_net_forward.16} parent=0
    _
  %s6 = ssub.s32 1, %s4
  %s7 = scalar_select 0, %s6, %s4
  loop: start=0, step=1, limit=4
  $region2: #{propagation_net_forward.16} parent=0 // loop_pre_header
    _
  $region3: #{propagation_net_forward.16} parent=0 // loop_header
    %s9 = sphi 0, %s13
    %p10 = scmp.ge.s32.totalorder %s9, 4
    %s16 = sphi 0, %s28
    %s17 = sphi 0, %s24
    %s18 = sphi 0, %s16
    %s19 = sphi 0, %s17
    %s20 = sphi 0, %s18
    %s21 = sphi 0, %s19
    %s33 = sphi 0, %s35
    %s36 = sphi 0, %s33
    %s37 = sphi 0, %s36
    %s53 = sphi 0, %s37
    %s57 = sphi 0, %s57
    %s59 = sphi 0, %s57
    %s60 = sphi 0, %s59
    %s74 = sphi 0, %s60
    %s78 = sphi 0, %s78
    %s80 = sphi 0, %s78
    %s81 = sphi 0, %s80
    %s95 = sphi 0, %s81
    %s103 = sphi 0, %s105
    %s106 = sphi 0, %s103
    %s107 = sphi 0, %s106
    %s123 = sphi 0, %s107
  $region4: #{propagation_net_forward.16} parent=0 // loop_header_branch
    %12 = sbr.rel (%p10) target = $region8
  $region5: #{propagation_net_forward.16} parent=0 // loop_body
    %s14 = ssub.s32 %s9, 1
    %s15 = ssub.s32 %s9, 2
    %s22 = sadd.s32 1, %s17
    %p23 = scmp.ge.s32.totalorder %s22, 1
    %s24 = scalar_select %p23, 0, %s22
    %s25 = sadd.s32 1, %s16
    %s26 = scalar_select %p23, %s25, %s16
    %p27 = scmp.ge.s32.totalorder %s26, 2
    %s28 = scalar_select %p27, 0, %s26
    %s29 = ssub.s32 %s16, %s28
    %s30 = ssub.s32 %s17, %s24
    %s31 = sor.u32 %s29, %s30
    %p32 = scmp.eq.s32.totalorder %s31, 0
    %s34 = sadd.s32 %s33, 1
    %s35 = scalar_select %p32, %s33, %s34
    %p38 = pneg %p32
    %p39 = scmp.eq.s32.totalorder %s9, 1
    %p40 = por %p38, %p39
    %p41 = scmp.ne.s32.totalorder %s33, %s36
    %p42 = scmp.eq.s32.totalorder %s9, 0
    %p43 = por %p41, %p42
    %p44 = scmp.ne.s32.totalorder %s33, %s36
    %p45 = scmp.eq.s32.totalorder %s14, 1
    %p46 = por %p44, %p45
    %p47 = scmp.ne.s32.totalorder %s36, %s37
    %p48 = scmp.eq.s32.totalorder %s14, 0
    %p49 = por %p47, %p48
    %p50 = scmp.ne.s32.totalorder %s36, %s37
    %p51 = scmp.eq.s32.totalorder %s15, 1
    %p52 = por %p50, %p51
    %p54 = scmp.ne.s32.totalorder %s37, %s53
    %p55 = scmp.eq.s32.totalorder %s15, 0
    %p56 = por %p54, %p55
    %s58 = sadd.s32 %s57, 1
    %p61 = scmp.eq.s32.totalorder %s9, 1
    %p62 = scmp.ne.s32.totalorder %s57, %s59
    %p63 = scmp.eq.s32.totalorder %s9, 0
    %p64 = por %p62, %p63
    %p65 = scmp.ne.s32.totalorder %s57, %s59
    %p66 = scmp.eq.s32.totalorder %s14, 1
    %p67 = por %p65, %p66
    %p68 = scmp.ne.s32.totalorder %s59, %s60
    %p69 = scmp.eq.s32.totalorder %s14, 0
    %p70 = por %p68, %p69
    %p71 = scmp.ne.s32.totalorder %s59, %s60
    %p72 = scmp.eq.s32.totalorder %s15, 1
    %p73 = por %p71, %p72
    %p75 = scmp.ne.s32.totalorder %s60, %s74
    %p76 = scmp.eq.s32.totalorder %s15, 0
    %p77 = por %p75, %p76
    %s79 = sadd.s32 %s78, 1
    %p82 = scmp.eq.s32.totalorder %s9, 1
    %p83 = scmp.ne.s32.totalorder %s78, %s80
    %p84 = scmp.eq.s32.totalorder %s9, 0
    %p85 = por %p83, %p84
    %p86 = scmp.ne.s32.totalorder %s78, %s80
    %p87 = scmp.eq.s32.totalorder %s14, 1
    %p88 = por %p86, %p87
    %p89 = scmp.ne.s32.totalorder %s80, %s81
    %p90 = scmp.eq.s32.totalorder %s14, 0
    %p91 = por %p89, %p90
    %p92 = scmp.ne.s32.totalorder %s80, %s81
    %p93 = scmp.eq.s32.totalorder %s15, 1
    %p94 = por %p92, %p93
    %p96 = scmp.ne.s32.totalorder %s81, %s95
    %p97 = scmp.eq.s32.totalorder %s15, 0
    %p98 = por %p96, %p97
    %s99 = ssub.s32 %s16, %s28
    %s100 = ssub.s32 %s17, %s24
    %s101 = sor.u32 %s99, %s100
    %p102 = scmp.eq.s32.totalorder %s101, 0
    %s104 = sadd.s32 %s103, 1
    %s105 = scalar_select %p102, %s103, %s104
    %p108 = pneg %p102
    %p109 = scmp.eq.s32.totalorder %s9, 1
    %p110 = por %p108, %p109
    %p111 = scmp.ne.s32.totalorder %s103, %s106
    %p112 = scmp.eq.s32.totalorder %s9, 0
    %p113 = por %p111, %p112
    %p114 = scmp.ne.s32.totalorder %s103, %s106
    %p115 = scmp.eq.s32.totalorder %s14, 1
    %p116 = por %p114, %p115
    %p117 = scmp.ne.s32.totalorder %s106, %s107
    %p118 = scmp.eq.s32.totalorder %s14, 0
    %p119 = por %p117, %p118
    %p120 = scmp.ne.s32.totalorder %s106, %s107
    %p121 = scmp.eq.s32.totalorder %s15, 1
    %p122 = por %p120, %p121
    %p124 = scmp.ne.s32.totalorder %s107, %s123
    %p125 = scmp.eq.s32.totalorder %s15, 0
    %p126 = por %p124, %p125
    %p127 = scmp.le.s32.totalorder 1, %s9
    %p128 = scmp.lt.s32.totalorder %s9, 3
    %p129 = pnand %p127, %p128
    %p130 = pneg %p129
    // Predicated region
    $region9: #{propagation_net_forward.16} parent=5 // pred_check
      _
    $region10: #{propagation_net_forward.16} parent=5 // pred_check_branch
      %132 = sbr.rel (%p129) target = $region12
    $region11: #{propagation_net_forward.16} parent=5 // pred_region
      %s133 = ssub.s32 %s9, 1
      // Predicated region
      $region13: #{propagation_net_forward.16} parent=11 // pred_check
        %p134 = pneg %p70
      $region14: #{propagation_net_forward.16} parent=11 // pred_check_branch
        %136 = sbr.rel (%p134) target = $region16
      $region15: #{propagation_net_forward.16} parent=11 // pred_region
        _
      $region16: #{propagation_net_forward.16} parent=11 // pred_fallthru
        _
      // Predicated region
      $region17: #{propagation_net_forward.16} parent=11 // pred_check
        %p137 = pneg %p91
      $region18: #{propagation_net_forward.16} parent=11 // pred_check_branch
        %139 = sbr.rel (%p137) target = $region20
      $region19: #{propagation_net_forward.16} parent=11 // pred_region
        _
      $region20: #{propagation_net_forward.16} parent=11 // pred_fallthru
        _
    $region12: #{propagation_net_forward.16} parent=5 // pred_fallthru
      _
    %p140 = scmp.lt.s32.totalorder %s9, 2
    // Predicated region
    $region21: #{propagation_net_forward.16} parent=5 // pred_check
      %p141 = pneg %p140
    $region22: #{propagation_net_forward.16} parent=5 // pred_check_branch
      %143 = sbr.rel (%p141) target = $region24
    $region23: #{propagation_net_forward.16} parent=5 // pred_region
      // Predicated region
      $region25: #{propagation_net_forward.16} parent=23 // pred_check
        %p144 = pneg %p43
      $region26: #{propagation_net_forward.16} parent=23 // pred_check_branch
        %146 = sbr.rel (%p144) target = $region28
      $region27: #{propagation_net_forward.16} parent=23 // pred_region
        %p147 = scmp.lt.s32.totalorder %s16, 1
        %s148 = scalar_select %p147, %s16, 1
        %p149 = scmp.lt.s32.totalorder %s17, 0
        %s150 = scalar_select %p149, %s17, 0
        %s151 = smul.addr %s148, 18
        %s152 = sadd.s32 %s150, %s151
        %s153 = smul.addr %s152, 4
        %s154 = scalar_lea.vmem %s0, %s153
      $region28: #{propagation_net_forward.16} parent=23 // pred_fallthru
        _
    $region24: #{propagation_net_forward.16} parent=5 // pred_fallthru
      _
    %p155 = scmp.le.s32.totalorder 1, %s9
    %p156 = scmp.lt.s32.totalorder %s9, 3
    %p157 = pnand %p155, %p156
    %p158 = pneg %p157
    // Predicated region
    $region29: #{propagation_net_forward.16} parent=5 // pred_check
      _
    $region30: #{propagation_net_forward.16} parent=5 // pred_check_branch
      %160 = sbr.rel (%p157) target = $region32
    $region31: #{propagation_net_forward.16} parent=5 // pred_region
      %s161 = ssub.s32 %s9, 1
      %p162 = scmp.lt.s32.totalorder %s18, 1
      %s163 = scalar_select %p162, %s18, 1
      %p164 = scmp.lt.s32.totalorder %s19, 0
      %s165 = scalar_select %p164, %s19, 0
      %s166 = smul.addr %s163, 18
      %s167 = sadd.s32 %s165, %s166
      %s168 = smul.addr %s167, 4
      %s169 = scalar_lea.vmem %s0, %s168
      %p170 = pneg %p49
      %p171 = pneg %p46
      %p172 = pneg %p70
      %p173 = pneg %p67
      %p174 = pneg %p91
      %p175 = pneg %p88
      %p176 = pneg %p119
      %p177 = pneg %p116
      %p178 = scmp.lt.s32.totalorder %s18, 1
      %s179 = scalar_select %p178, %s18, 1
      %p180 = scmp.lt.s32.totalorder %s19, 0
      %s181 = scalar_select %p180, %s19, 0
      %s182 = smul.addr %s179, 2
      %s183 = sadd.s32 %s181, %s182
      %s184 = smul.addr %s183, 4
      %s185 = scalar_lea.vmem %s3, %s184
      %p186 = scmp.lt.s32.totalorder %s18, 1
      %s187 = scalar_select %p186, %s18, 1
      %p188 = scmp.lt.s32.totalorder %s19, 0
      %s189 = scalar_select %p188, %s19, 0
      %s190 = smul.addr %s187, 18
      %s191 = sadd.s32 %s189, %s190
      %s192 = smul.addr %s191, 4
      %s193 = scalar_lea.vmem %s0, %s192
      %p194 = scmp.lt.s32.totalorder %s18, 1
      %s195 = scalar_select %p194, %s18, 1
      %p196 = scmp.lt.s32.totalorder %s19, 0
      %s197 = scalar_select %p196, %s19, 0
      %s198 = smul.addr %s195, 2
      %s199 = sadd.s32 %s197, %s198
      %s200 = smul.addr %s199, 4
      %s201 = scalar_lea.vmem %s3, %s200
      %v203 = vld [vmem:[%s1] sm:$0xff]
      %v204 = vld [vmem:[%s1 + $0x8] sm:$0xff]
      %v205 = vld [vmem:[%s193] sm:$0xf]
      %v206 = vld [vmem:[%s193 + $0x4] sm:$0xf]
      %v207 = vld [vmem:[%s193 + $0x8] sm:$0xf]
      %v208 = vld [vmem:[%s193 + $0xc] sm:$0xf]
      %v209 = vld [vmem:[%s193 + $0x10] sm:$0xf]
      %v210 = vld [vmem:[%s193 + $0x14] sm:$0xf]
      %v211 = vld [vmem:[%s193 + $0x18] sm:$0xf]
      %v212 = vld [vmem:[%s193 + $0x1c] sm:$0xf]
      %v213 = vld [vmem:[%s193 + $0x20] sm:$0xf]
      %v214 = vld [vmem:[%s193 + $0x24] sm:$0xf]
      %v215 = vld [vmem:[%s193 + $0x28] sm:$0xf]
      %v216 = vld [vmem:[%s193 + $0x2c] sm:$0xf]
      %v217 = vld [vmem:[%s193 + $0x30] sm:$0xf]
      %v218 = vld [vmem:[%s193 + $0x34] sm:$0xf]
      %v219 = vld [vmem:[%s193 + $0x38] sm:$0xf]
      %v220 = vld [vmem:[%s193 + $0x3c] sm:$0xf]
      %v221 = vld [vmem:[%s193 + $0x40] sm:$0xf]
      %v222 = vld [vmem:[%s193 + $0x44] sm:$0xf]
      %v223 = vld [vmem:[%s2] sm:$0xff]
      %v224 = vld [vmem:[%s2 + $0x8] sm:$0xff]
      %226 = vset.pattern.permute.xlu0 0
      %227 = vperm.xlu0 %226, %v223
      %v228 = vpop.permute.xlu0 %227
      %231 = vset.pattern.permute.xlu0 0
      %232 = vperm.xlu0 %231, %v224
      %v233 = vpop.permute.xlu0 %232
      %v237 = vunpack.c.l.b16 %v203
      %v238 = vunpack.c.h.b16 %v203
      %v239 = vunpack.c.l.b16 %v204
      %v240 = vunpack.c.h.b16 %v204
      %v241 = vpack.c.b16 %v239, %v237
      %v242 = vpack.c.b16 %v240, %v238
      %v262 = vunpack.c.l.b16 %v205
      %v263 = vunpack.c.l.b16 %v206
      %v264 = vunpack.c.l.b16 %v207
      %v265 = vunpack.c.l.b16 %v208
      %v266 = vunpack.c.l.b16 %v209
      %v267 = vunpack.c.l.b16 %v210
      %v268 = vunpack.c.l.b16 %v211
      %v269 = vunpack.c.l.b16 %v212
      %v270 = vunpack.c.l.b16 %v213
      %v271 = vunpack.c.l.b16 %v214
      %v272 = vunpack.c.l.b16 %v215
      %v273 = vunpack.c.l.b16 %v216
      %v274 = vunpack.c.l.b16 %v217
      %v275 = vunpack.c.l.b16 %v218
      %v276 = vunpack.c.l.b16 %v219
      %v277 = vunpack.c.l.b16 %v220
      %v278 = vunpack.c.l.b16 %v221
      %v279 = vunpack.c.l.b16 %v222
      %v280 = vpack.c.b16 %v263, %v262
      %v281 = vpack.c.b16 %v265, %v264
      %v282 = vpack.c.b16 %v267, %v266
      %v283 = vpack.c.b16 %v269, %v268
      %v284 = vpack.c.b16 %v271, %v270
      %v285 = vpack.c.b16 %v273, %v272
      %v286 = vpack.c.b16 %v275, %v274
      %v287 = vpack.c.b16 %v277, %v276
      %v288 = vpack.c.b16 %v279, %v278
      %vm298 = vcmask 130048
      %v300 = vsel %vm298, %v242, 0
      %302 = vmatpush.bf16.msra.mxu0 %v287
      %303 = vmatpush.bf16.msra.mxu0 %v286
      %304 = vmatpush.bf16.msra.mxu0 %v285
      %305 = vmatpush.bf16.msra.mxu0 %v284
      %306 = vmatpush.bf16.msra.mxu0 %v283
      %307 = vmatpush.bf16.msra.mxu0 %v282
      %308 = vmatpush.bf16.msra.mxu0 %v281
      %309 = vmatpush.bf16.msra.mxu0 %v280
      %310 = vmatmul.bf16.gmra.mxu0 %v241
      %v311 = vpop.f32.mrf.mxu0
      %v312 = vadd.f32 %v228, %v311
      %v313 = vpop.f32.mrf.mxu0
      %v314 = vadd.f32 %v233, %v313
      %315 = vdwg.mxu0
      %316 = vmatpush.bf16.msra.mxu0 0
      %317 = vmatpush.bf16.msra.mxu0 0
      %318 = vmatpush.bf16.msra.mxu0 0
      %319 = vmatpush.bf16.msra.mxu0 0
      %320 = vmatpush.bf16.msra.mxu0 0
      %321 = vmatpush.bf16.msra.mxu0 0
      %322 = vmatpush.bf16.msra.mxu0 0
      %323 = vmatpush.bf16.msra.mxu0 %v288
      %324 = vmatmul.bf16.gmra.mxu0 %v300
      %v325 = vpop.f32.mrf.mxu0
      %v326 = vadd.f32 %v312, %v325
      %v327 = vpop.f32.mrf.mxu0
      %v328 = vadd.f32 %v314, %v327
      %329 = vdwg.mxu0
      %v330 = vmax.f32 %v326, 0.0
      %v331 = vmax.f32 %v328, 0.0
      %v332 = vpack.c.bf16 %v330, %v330
      %v333 = vpack.c.bf16 %v331, %v331
      %334 = vst [vmem:[%s201] sm:$0xf] %v332
      %335 = vst [vmem:[%s201 + $0x4] sm:$0xf] %v333
      %p336 = scmp.lt.s32.totalorder %s18, 1
      %s337 = scalar_select %p336, %s18, 1
      %p338 = scmp.lt.s32.totalorder %s19, 0
      %s339 = scalar_select %p338, %s19, 0
      %s340 = smul.addr %s337, 2
      %s341 = sadd.s32 %s339, %s340
      %s342 = smul.addr %s341, 4
      %s343 = scalar_lea.vmem %s3, %s342
      // Predicated region
      $region33: #{propagation_net_forward.16} parent=31 // pred_check
        %p344 = pneg %p116
      $region34: #{propagation_net_forward.16} parent=31 // pred_check_branch
        %346 = sbr.rel (%p344) target = $region36
      $region35: #{propagation_net_forward.16} parent=31 // pred_region
        _
      $region36: #{propagation_net_forward.16} parent=31 // pred_fallthru
        _
    $region32: #{propagation_net_forward.16} parent=5 // pred_fallthru
      _
    %p347 = scmp.le.s32.totalorder 2, %s9
    // Predicated region
    $region37: #{propagation_net_forward.16} parent=5 // pred_check
      %p348 = pneg %p347
    $region38: #{propagation_net_forward.16} parent=5 // pred_check_branch
      %350 = sbr.rel (%p348) target = $region40
    $region39: #{propagation_net_forward.16} parent=5 // pred_region
      %s351 = ssub.s32 %s9, 2
      // Predicated region
      $region41: #{propagation_net_forward.16} parent=39 // pred_check
        %p352 = pneg %p122
      $region42: #{propagation_net_forward.16} parent=39 // pred_check_branch
        %354 = sbr.rel (%p352) target = $region44
      $region43: #{propagation_net_forward.16} parent=39 // pred_region
        %p355 = scmp.lt.s32.totalorder %s20, 1
        %s356 = scalar_select %p355, %s20, 1
        %p357 = scmp.lt.s32.totalorder %s21, 0
        %s358 = scalar_select %p357, %s21, 0
        %s359 = smul.addr %s356, 2
        %s360 = sadd.s32 %s358, %s359
        %s361 = smul.addr %s360, 4
        %s362 = scalar_lea.vmem %s3, %s361
      $region44: #{propagation_net_forward.16} parent=39 // pred_fallthru
        _
    $region40: #{propagation_net_forward.16} parent=5 // pred_fallthru
      _
  $region6: #{propagation_net_forward.16} parent=0 // loop_footer
    %s13 = sadd.s32 1, %s9
  $region7: #{propagation_net_forward.16} parent=0 // loop_footer_branch
    %8 = sbr.rel target = $region3
  $region8: #{propagation_net_forward.16} parent=0 // loop_exit
    _

// kernel: propagation_net_forward.17
$region0: #{propagation_net_forward.17}
  #allocation0 [shape = 'u32[]', space=smem, size = 0x4, offset = 0x4, fixed_abs, tag = 'smem constant byte address 0x4 - core index']
  #allocation1 [shape = 'u32[72,128]{1,0:T(1,128)}', space=vmem, size = 0x9000, scoped, tag = 'internal scratch']
  %s0 = inlined_call_operand.vmem [shape: bf16[2,144,128], index: 0, kind: input, shape index: {}]
  %s1 = inlined_call_operand.vmem [shape: bf16[16,144], index: 1, kind: input, shape index: {}]
  %s2 = inlined_call_operand.vmem [shape: f32[16,1], index: 2, kind: input, shape index: {}]
  %s3 = inlined_call_operand.vmem [shape: bf16[2,16,128], index: 3, kind: output, shape index: {}]
  %s4 = sld [smem:[#allocation0]]
  $region45: #{propagation_net_forward.17} parent=0
    _
  %s6 = ssub.s32 1, %s4
  %s7 = scalar_select 0, %s6, %s4
  loop: start=0, step=1, limit=4
  $region2: #{propagation_net_forward.17} parent=0 // loop_pre_header
    _
  $region3: #{propagation_net_forward.17} parent=0 // loop_header
    %s9 = sphi 0, %s13
    %p10 = scmp.ge.s32.totalorder %s9, 4
    %s16 = sphi 0, %s28
    %s17 = sphi 0, %s24
    %s18 = sphi 0, %s16
    %s19 = sphi 0, %s17
    %s20 = sphi 0, %s18
    %s21 = sphi 0, %s19
    %s33 = sphi 0, %s35
    %s36 = sphi 0, %s33
    %s37 = sphi 0, %s36
    %s53 = sphi 0, %s37
    %s57 = sphi 0, %s57
    %s59 = sphi 0, %s57
    %s60 = sphi 0, %s59
    %s74 = sphi 0, %s60
    %s78 = sphi 0, %s78
    %s80 = sphi 0, %s78
    %s81 = sphi 0, %s80
    %s95 = sphi 0, %s81
    %s103 = sphi 0, %s105
    %s106 = sphi 0, %s103
    %s107 = sphi 0, %s106
    %s123 = sphi 0, %s107
  $region4: #{propagation_net_forward.17} parent=0 // loop_header_branch
    %12 = sbr.rel (%p10) target = $region8
  $region5: #{propagation_net_forward.17} parent=0 // loop_body
    %s14 = ssub.s32 %s9, 1
    %s15 = ssub.s32 %s9, 2
    %s22 = sadd.s32 1, %s17
    %p23 = scmp.ge.s32.totalorder %s22, 1
    %s24 = scalar_select %p23, 0, %s22
    %s25 = sadd.s32 1, %s16
    %s26 = scalar_select %p23, %s25, %s16
    %p27 = scmp.ge.s32.totalorder %s26, 2
    %s28 = scalar_select %p27, 0, %s26
    %s29 = ssub.s32 %s16, %s28
    %s30 = ssub.s32 %s17, %s24
    %s31 = sor.u32 %s29, %s30
    %p32 = scmp.eq.s32.totalorder %s31, 0
    %s34 = sadd.s32 %s33, 1
    %s35 = scalar_select %p32, %s33, %s34
    %p38 = pneg %p32
    %p39 = scmp.eq.s32.totalorder %s9, 1
    %p40 = por %p38, %p39
    %p41 = scmp.ne.s32.totalorder %s33, %s36
    %p42 = scmp.eq.s32.totalorder %s9, 0
    %p43 = por %p41, %p42
    %p44 = scmp.ne.s32.totalorder %s33, %s36
    %p45 = scmp.eq.s32.totalorder %s14, 1
    %p46 = por %p44, %p45
    %p47 = scmp.ne.s32.totalorder %s36, %s37
    %p48 = scmp.eq.s32.totalorder %s14, 0
    %p49 = por %p47, %p48
    %p50 = scmp.ne.s32.totalorder %s36, %s37
    %p51 = scmp.eq.s32.totalorder %s15, 1
    %p52 = por %p50, %p51
    %p54 = scmp.ne.s32.totalorder %s37, %s53
    %p55 = scmp.eq.s32.totalorder %s15, 0
    %p56 = por %p54, %p55
    %s58 = sadd.s32 %s57, 1
    %p61 = scmp.eq.s32.totalorder %s9, 1
    %p62 = scmp.ne.s32.totalorder %s57, %s59
    %p63 = scmp.eq.s32.totalorder %s9, 0
    %p64 = por %p62, %p63
    %p65 = scmp.ne.s32.totalorder %s57, %s59
    %p66 = scmp.eq.s32.totalorder %s14, 1
    %p67 = por %p65, %p66
    %p68 = scmp.ne.s32.totalorder %s59, %s60
    %p69 = scmp.eq.s32.totalorder %s14, 0
    %p70 = por %p68, %p69
    %p71 = scmp.ne.s32.totalorder %s59, %s60
    %p72 = scmp.eq.s32.totalorder %s15, 1
    %p73 = por %p71, %p72
    %p75 = scmp.ne.s32.totalorder %s60, %s74
    %p76 = scmp.eq.s32.totalorder %s15, 0
    %p77 = por %p75, %p76
    %s79 = sadd.s32 %s78, 1
    %p82 = scmp.eq.s32.totalorder %s9, 1
    %p83 = scmp.ne.s32.totalorder %s78, %s80
    %p84 = scmp.eq.s32.totalorder %s9, 0
    %p85 = por %p83, %p84
    %p86 = scmp.ne.s32.totalorder %s78, %s80
    %p87 = scmp.eq.s32.totalorder %s14, 1
    %p88 = por %p86, %p87
    %p89 = scmp.ne.s32.totalorder %s80, %s81
    %p90 = scmp.eq.s32.totalorder %s14, 0
    %p91 = por %p89, %p90
    %p92 = scmp.ne.s32.totalorder %s80, %s81
    %p93 = scmp.eq.s32.totalorder %s15, 1
    %p94 = por %p92, %p93
    %p96 = scmp.ne.s32.totalorder %s81, %s95
    %p97 = scmp.eq.s32.totalorder %s15, 0
    %p98 = por %p96, %p97
    %s99 = ssub.s32 %s16, %s28
    %s100 = ssub.s32 %s17, %s24
    %s101 = sor.u32 %s99, %s100
    %p102 = scmp.eq.s32.totalorder %s101, 0
    %s104 = sadd.s32 %s103, 1
    %s105 = scalar_select %p102, %s103, %s104
    %p108 = pneg %p102
    %p109 = scmp.eq.s32.totalorder %s9, 1
    %p110 = por %p108, %p109
    %p111 = scmp.ne.s32.totalorder %s103, %s106
    %p112 = scmp.eq.s32.totalorder %s9, 0
    %p113 = por %p111, %p112
    %p114 = scmp.ne.s32.totalorder %s103, %s106
    %p115 = scmp.eq.s32.totalorder %s14, 1
    %p116 = por %p114, %p115
    %p117 = scmp.ne.s32.totalorder %s106, %s107
    %p118 = scmp.eq.s32.totalorder %s14, 0
    %p119 = por %p117, %p118
    %p120 = scmp.ne.s32.totalorder %s106, %s107
    %p121 = scmp.eq.s32.totalorder %s15, 1
    %p122 = por %p120, %p121
    %p124 = scmp.ne.s32.totalorder %s107, %s123
    %p125 = scmp.eq.s32.totalorder %s15, 0
    %p126 = por %p124, %p125
    %p127 = scmp.le.s32.totalorder 1, %s9
    %p128 = scmp.lt.s32.totalorder %s9, 3
    %p129 = pnand %p127, %p128
    %p130 = pneg %p129
    // Predicated region
    $region9: #{propagation_net_forward.17} parent=5 // pred_check
      _
    $region10: #{propagation_net_forward.17} parent=5 // pred_check_branch
      %132 = sbr.rel (%p129) target = $region12
    $region11: #{propagation_net_forward.17} parent=5 // pred_region
      %s133 = ssub.s32 %s9, 1
      // Predicated region
      $region13: #{propagation_net_forward.17} parent=11 // pred_check
        %p134 = pneg %p70
      $region14: #{propagation_net_forward.17} parent=11 // pred_check_branch
        %136 = sbr.rel (%p134) target = $region16
      $region15: #{propagation_net_forward.17} parent=11 // pred_region
        _
      $region16: #{propagation_net_forward.17} parent=11 // pred_fallthru
        _
      // Predicated region
      $region17: #{propagation_net_forward.17} parent=11 // pred_check
        %p137 = pneg %p91
      $region18: #{propagation_net_forward.17} parent=11 // pred_check_branch
        %139 = sbr.rel (%p137) target = $region20
      $region19: #{propagation_net_forward.17} parent=11 // pred_region
        _
      $region20: #{propagation_net_forward.17} parent=11 // pred_fallthru
        _
    $region12: #{propagation_net_forward.17} parent=5 // pred_fallthru
      _
    %p140 = scmp.lt.s32.totalorder %s9, 2
    // Predicated region
    $region21: #{propagation_net_forward.17} parent=5 // pred_check
      %p141 = pneg %p140
    $region22: #{propagation_net_forward.17} parent=5 // pred_check_branch
      %143 = sbr.rel (%p141) target = $region24
    $region23: #{propagation_net_forward.17} parent=5 // pred_region
      // Predicated region
      $region25: #{propagation_net_forward.17} parent=23 // pred_check
        %p144 = pneg %p43
      $region26: #{propagation_net_forward.17} parent=23 // pred_check_branch
        %146 = sbr.rel (%p144) target = $region28
      $region27: #{propagation_net_forward.17} parent=23 // pred_region
        %p147 = scmp.lt.s32.totalorder %s16, 1
        %s148 = scalar_select %p147, %s16, 1
        %p149 = scmp.lt.s32.totalorder %s17, 0
        %s150 = scalar_select %p149, %s17, 0
        %s151 = smul.addr %s148, 18
        %s152 = sadd.s32 %s150, %s151
        %s153 = smul.addr %s152, 4
        %s154 = scalar_lea.vmem %s0, %s153
      $region28: #{propagation_net_forward.17} parent=23 // pred_fallthru
        _
    $region24: #{propagation_net_forward.17} parent=5 // pred_fallthru
      _
    %p155 = scmp.le.s32.totalorder 1, %s9
    %p156 = scmp.lt.s32.totalorder %s9, 3
    %p157 = pnand %p155, %p156
    %p158 = pneg %p157
    // Predicated region
    $region29: #{propagation_net_forward.17} parent=5 // pred_check
      _
    $region30: #{propagation_net_forward.17} parent=5 // pred_check_branch
      %160 = sbr.rel (%p157) target = $region32
    $region31: #{propagation_net_forward.17} parent=5 // pred_region
      %s161 = ssub.s32 %s9, 1
      %p162 = scmp.lt.s32.totalorder %s18, 1
      %s163 = scalar_select %p162, %s18, 1
      %p164 = scmp.lt.s32.totalorder %s19, 0
      %s165 = scalar_select %p164, %s19, 0
      %s166 = smul.addr %s163, 18
      %s167 = sadd.s32 %s165, %s166
      %s168 = smul.addr %s167, 4
      %s169 = scalar_lea.vmem %s0, %s168
      %p170 = pneg %p49
      %p171 = pneg %p46
      %p172 = pneg %p70
      %p173 = pneg %p67
      %p174 = pneg %p91
      %p175 = pneg %p88
      %p176 = pneg %p119
      %p177 = pneg %p116
      %p178 = scmp.lt.s32.totalorder %s18, 1
      %s179 = scalar_select %p178, %s18, 1
      %p180 = scmp.lt.s32.totalorder %s19, 0
      %s181 = scalar_select %p180, %s19, 0
      %s182 = smul.addr %s179, 2
      %s183 = sadd.s32 %s181, %s182
      %s184 = smul.addr %s183, 4
      %s185 = scalar_lea.vmem %s3, %s184
      %p186 = scmp.lt.s32.totalorder %s18, 1
      %s187 = scalar_select %p186, %s18, 1
      %p188 = scmp.lt.s32.totalorder %s19, 0
      %s189 = scalar_select %p188, %s19, 0
      %s190 = smul.addr %s187, 18
      %s191 = sadd.s32 %s189, %s190
      %s192 = smul.addr %s191, 4
      %s193 = scalar_lea.vmem %s0, %s192
      %p194 = scmp.lt.s32.totalorder %s18, 1
      %s195 = scalar_select %p194, %s18, 1
      %p196 = scmp.lt.s32.totalorder %s19, 0
      %s197 = scalar_select %p196, %s19, 0
      %s198 = smul.addr %s195, 2
      %s199 = sadd.s32 %s197, %s198
      %s200 = smul.addr %s199, 4
      %s201 = scalar_lea.vmem %s3, %s200
      %v203 = vld [vmem:[%s1] sm:$0xff]
      %v204 = vld [vmem:[%s1 + $0x8] sm:$0xff]
      %v205 = vld [vmem:[%s193] sm:$0xf]
      %v206 = vld [vmem:[%s193 + $0x4] sm:$0xf]
      %v207 = vld [vmem:[%s193 + $0x8] sm:$0xf]
      %v208 = vld [vmem:[%s193 + $0xc] sm:$0xf]
      %v209 = vld [vmem:[%s193 + $0x10] sm:$0xf]
      %v210 = vld [vmem:[%s193 + $0x14] sm:$0xf]
      %v211 = vld [vmem:[%s193 + $0x18] sm:$0xf]
      %v212 = vld [vmem:[%s193 + $0x1c] sm:$0xf]
      %v213 = vld [vmem:[%s193 + $0x20] sm:$0xf]
      %v214 = vld [vmem:[%s193 + $0x24] sm:$0xf]
      %v215 = vld [vmem:[%s193 + $0x28] sm:$0xf]
      %v216 = vld [vmem:[%s193 + $0x2c] sm:$0xf]
      %v217 = vld [vmem:[%s193 + $0x30] sm:$0xf]
      %v218 = vld [vmem:[%s193 + $0x34] sm:$0xf]
      %v219 = vld [vmem:[%s193 + $0x38] sm:$0xf]
      %v220 = vld [vmem:[%s193 + $0x3c] sm:$0xf]
      %v221 = vld [vmem:[%s193 + $0x40] sm:$0xf]
      %v222 = vld [vmem:[%s193 + $0x44] sm:$0xf]
      %v223 = vld [vmem:[%s2] sm:$0xff]
      %v224 = vld [vmem:[%s2 + $0x8] sm:$0xff]
      %226 = vset.pattern.permute.xlu0 0
      %227 = vperm.xlu0 %226, %v223
      %v228 = vpop.permute.xlu0 %227
      %231 = vset.pattern.permute.xlu0 0
      %232 = vperm.xlu0 %231, %v224
      %v233 = vpop.permute.xlu0 %232
      %v237 = vunpack.c.l.b16 %v203
      %v238 = vunpack.c.h.b16 %v203
      %v239 = vunpack.c.l.b16 %v204
      %v240 = vunpack.c.h.b16 %v204
      %v241 = vpack.c.b16 %v239, %v237
      %v242 = vpack.c.b16 %v240, %v238
      %v262 = vunpack.c.l.b16 %v205
      %v263 = vunpack.c.l.b16 %v206
      %v264 = vunpack.c.l.b16 %v207
      %v265 = vunpack.c.l.b16 %v208
      %v266 = vunpack.c.l.b16 %v209
      %v267 = vunpack.c.l.b16 %v210
      %v268 = vunpack.c.l.b16 %v211
      %v269 = vunpack.c.l.b16 %v212
      %v270 = vunpack.c.l.b16 %v213
      %v271 = vunpack.c.l.b16 %v214
      %v272 = vunpack.c.l.b16 %v215
      %v273 = vunpack.c.l.b16 %v216
      %v274 = vunpack.c.l.b16 %v217
      %v275 = vunpack.c.l.b16 %v218
      %v276 = vunpack.c.l.b16 %v219
      %v277 = vunpack.c.l.b16 %v220
      %v278 = vunpack.c.l.b16 %v221
      %v279 = vunpack.c.l.b16 %v222
      %v280 = vpack.c.b16 %v263, %v262
      %v281 = vpack.c.b16 %v265, %v264
      %v282 = vpack.c.b16 %v267, %v266
      %v283 = vpack.c.b16 %v269, %v268
      %v284 = vpack.c.b16 %v271, %v270
      %v285 = vpack.c.b16 %v273, %v272
      %v286 = vpack.c.b16 %v275, %v274
      %v287 = vpack.c.b16 %v277, %v276
      %v288 = vpack.c.b16 %v279, %v278
      %vm298 = vcmask 130048
      %v300 = vsel %vm298, %v242, 0
      %302 = vmatpush.bf16.msra.mxu0 %v287
      %303 = vmatpush.bf16.msra.mxu0 %v286
      %304 = vmatpush.bf16.msra.mxu0 %v285
      %305 = vmatpush.bf16.msra.mxu0 %v284
      %306 = vmatpush.bf16.msra.mxu0 %v283
      %307 = vmatpush.bf16.msra.mxu0 %v282
      %308 = vmatpush.bf16.msra.mxu0 %v281
      %309 = vmatpush.bf16.msra.mxu0 %v280
      %310 = vmatmul.bf16.gmra.mxu0 %v241
      %v311 = vpop.f32.mrf.mxu0
      %v312 = vadd.f32 %v228, %v311
      %v313 = vpop.f32.mrf.mxu0
      %v314 = vadd.f32 %v233, %v313
      %315 = vdwg.mxu0
      %316 = vmatpush.bf16.msra.mxu0 0
      %317 = vmatpush.bf16.msra.mxu0 0
      %318 = vmatpush.bf16.msra.mxu0 0
      %319 = vmatpush.bf16.msra.mxu0 0
      %320 = vmatpush.bf16.msra.mxu0 0
      %321 = vmatpush.bf16.msra.mxu0 0
      %322 = vmatpush.bf16.msra.mxu0 0
      %323 = vmatpush.bf16.msra.mxu0 %v288
      %324 = vmatmul.bf16.gmra.mxu0 %v300
      %v325 = vpop.f32.mrf.mxu0
      %v326 = vadd.f32 %v312, %v325
      %v327 = vpop.f32.mrf.mxu0
      %v328 = vadd.f32 %v314, %v327
      %329 = vdwg.mxu0
      %v330 = vpack.c.bf16 %v326, %v326
      %v331 = vpack.c.bf16 %v328, %v328
      %332 = vst [vmem:[%s201] sm:$0xf] %v330
      %333 = vst [vmem:[%s201 + $0x4] sm:$0xf] %v331
      %p334 = scmp.lt.s32.totalorder %s18, 1
      %s335 = scalar_select %p334, %s18, 1
      %p336 = scmp.lt.s32.totalorder %s19, 0
      %s337 = scalar_select %p336, %s19, 0
      %s338 = smul.addr %s335, 2
      %s339 = sadd.s32 %s337, %s338
      %s340 = smul.addr %s339, 4
      %s341 = scalar_lea.vmem %s3, %s340
      // Predicated region
      $region33: #{propagation_net_forward.17} parent=31 // pred_check
        %p342 = pneg %p116
      $region34: #{propagation_net_forward.17} parent=31 // pred_check_branch
        %344 = sbr.rel (%p342) target = $region36
      $region35: #{propagation_net_forward.17} parent=31 // pred_region
        _
      $region36: #{propagation_net_forward.17} parent=31 // pred_fallthru
        _
    $region32: #{propagation_net_forward.17} parent=5 // pred_fallthru
      _
    %p345 = scmp.le.s32.totalorder 2, %s9
    // Predicated region
    $region37: #{propagation_net_forward.17} parent=5 // pred_check
      %p346 = pneg %p345
    $region38: #{propagation_net_forward.17} parent=5 // pred_check_branch
      %348 = sbr.rel (%p346) target = $region40
    $region39: #{propagation_net_forward.17} parent=5 // pred_region
      %s349 = ssub.s32 %s9, 2
      // Predicated region
      $region41: #{propagation_net_forward.17} parent=39 // pred_check
        %p350 = pneg %p122
      $region42: #{propagation_net_forward.17} parent=39 // pred_check_branch
        %352 = sbr.rel (%p350) target = $region44
      $region43: #{propagation_net_forward.17} parent=39 // pred_region
        %p353 = scmp.lt.s32.totalorder %s20, 1
        %s354 = scalar_select %p353, %s20, 1
        %p355 = scmp.lt.s32.totalorder %s21, 0
        %s356 = scalar_select %p355, %s21, 0
        %s357 = smul.addr %s354, 2
        %s358 = sadd.s32 %s356, %s357
        %s359 = smul.addr %s358, 4
        %s360 = scalar_lea.vmem %s3, %s359
      $region44: #{propagation_net_forward.17} parent=39 // pred_fallthru
        _
    $region40: #{propagation_net_forward.17} parent=5 // pred_fallthru
      _
  $region6: #{propagation_net_forward.17} parent=0 // loop_footer
    %s13 = sadd.s32 1, %s9
  $region7: #{propagation_net_forward.17} parent=0 // loop_footer_branch
    %8 = sbr.rel target = $region3
  $region8: #{propagation_net_forward.17} parent=0 // loop_exit
    _

// kernel: propagation_net_forward.18
$region0: #{propagation_net_forward.18}
  #allocation0 [shape = 'u32[]', space=smem, size = 0x4, offset = 0x4, fixed_abs, tag = 'smem constant byte address 0x4 - core index']
  #allocation1 [shape = 'u32[72,128]{1,0:T(1,128)}', space=vmem, size = 0x9000, scoped, tag = 'internal scratch']
  %s0 = inlined_call_operand.vmem [shape: bf16[2,144,128], index: 0, kind: input, shape index: {}]
  %s1 = inlined_call_operand.vmem [shape: bf16[8,144], index: 1, kind: input, shape index: {}]
  %s2 = inlined_call_operand.vmem [shape: f32[8,1], index: 2, kind: input, shape index: {}]
  %s3 = inlined_call_operand.vmem [shape: bf16[2,8,128], index: 3, kind: output, shape index: {}]
  %s4 = sld [smem:[#allocation0]]
  $region45: #{propagation_net_forward.18} parent=0
    _
  %s6 = ssub.s32 1, %s4
  %s7 = scalar_select 0, %s6, %s4
  loop: start=0, step=1, limit=4
  $region2: #{propagation_net_forward.18} parent=0 // loop_pre_header
    _
  $region3: #{propagation_net_forward.18} parent=0 // loop_header
    %s9 = sphi 0, %s13
    %p10 = scmp.ge.s32.totalorder %s9, 4
    %s16 = sphi 0, %s28
    %s17 = sphi 0, %s24
    %s18 = sphi 0, %s16
    %s19 = sphi 0, %s17
    %s20 = sphi 0, %s18
    %s21 = sphi 0, %s19
    %s33 = sphi 0, %s35
    %s36 = sphi 0, %s33
    %s37 = sphi 0, %s36
    %s53 = sphi 0, %s37
    %s57 = sphi 0, %s57
    %s59 = sphi 0, %s57
    %s60 = sphi 0, %s59
    %s74 = sphi 0, %s60
    %s78 = sphi 0, %s78
    %s80 = sphi 0, %s78
    %s81 = sphi 0, %s80
    %s95 = sphi 0, %s81
    %s103 = sphi 0, %s105
    %s106 = sphi 0, %s103
    %s107 = sphi 0, %s106
    %s123 = sphi 0, %s107
  $region4: #{propagation_net_forward.18} parent=0 // loop_header_branch
    %12 = sbr.rel (%p10) target = $region8
  $region5: #{propagation_net_forward.18} parent=0 // loop_body
    %s14 = ssub.s32 %s9, 1
    %s15 = ssub.s32 %s9, 2
    %s22 = sadd.s32 1, %s17
    %p23 = scmp.ge.s32.totalorder %s22, 1
    %s24 = scalar_select %p23, 0, %s22
    %s25 = sadd.s32 1, %s16
    %s26 = scalar_select %p23, %s25, %s16
    %p27 = scmp.ge.s32.totalorder %s26, 2
    %s28 = scalar_select %p27, 0, %s26
    %s29 = ssub.s32 %s16, %s28
    %s30 = ssub.s32 %s17, %s24
    %s31 = sor.u32 %s29, %s30
    %p32 = scmp.eq.s32.totalorder %s31, 0
    %s34 = sadd.s32 %s33, 1
    %s35 = scalar_select %p32, %s33, %s34
    %p38 = pneg %p32
    %p39 = scmp.eq.s32.totalorder %s9, 1
    %p40 = por %p38, %p39
    %p41 = scmp.ne.s32.totalorder %s33, %s36
    %p42 = scmp.eq.s32.totalorder %s9, 0
    %p43 = por %p41, %p42
    %p44 = scmp.ne.s32.totalorder %s33, %s36
    %p45 = scmp.eq.s32.totalorder %s14, 1
    %p46 = por %p44, %p45
    %p47 = scmp.ne.s32.totalorder %s36, %s37
    %p48 = scmp.eq.s32.totalorder %s14, 0
    %p49 = por %p47, %p48
    %p50 = scmp.ne.s32.totalorder %s36, %s37
    %p51 = scmp.eq.s32.totalorder %s15, 1
    %p52 = por %p50, %p51
    %p54 = scmp.ne.s32.totalorder %s37, %s53
    %p55 = scmp.eq.s32.totalorder %s15, 0
    %p56 = por %p54, %p55
    %s58 = sadd.s32 %s57, 1
    %p61 = scmp.eq.s32.totalorder %s9, 1
    %p62 = scmp.ne.s32.totalorder %s57, %s59
    %p63 = scmp.eq.s32.totalorder %s9, 0
    %p64 = por %p62, %p63
    %p65 = scmp.ne.s32.totalorder %s57, %s59
    %p66 = scmp.eq.s32.totalorder %s14, 1
    %p67 = por %p65, %p66
    %p68 = scmp.ne.s32.totalorder %s59, %s60
    %p69 = scmp.eq.s32.totalorder %s14, 0
    %p70 = por %p68, %p69
    %p71 = scmp.ne.s32.totalorder %s59, %s60
    %p72 = scmp.eq.s32.totalorder %s15, 1
    %p73 = por %p71, %p72
    %p75 = scmp.ne.s32.totalorder %s60, %s74
    %p76 = scmp.eq.s32.totalorder %s15, 0
    %p77 = por %p75, %p76
    %s79 = sadd.s32 %s78, 1
    %p82 = scmp.eq.s32.totalorder %s9, 1
    %p83 = scmp.ne.s32.totalorder %s78, %s80
    %p84 = scmp.eq.s32.totalorder %s9, 0
    %p85 = por %p83, %p84
    %p86 = scmp.ne.s32.totalorder %s78, %s80
    %p87 = scmp.eq.s32.totalorder %s14, 1
    %p88 = por %p86, %p87
    %p89 = scmp.ne.s32.totalorder %s80, %s81
    %p90 = scmp.eq.s32.totalorder %s14, 0
    %p91 = por %p89, %p90
    %p92 = scmp.ne.s32.totalorder %s80, %s81
    %p93 = scmp.eq.s32.totalorder %s15, 1
    %p94 = por %p92, %p93
    %p96 = scmp.ne.s32.totalorder %s81, %s95
    %p97 = scmp.eq.s32.totalorder %s15, 0
    %p98 = por %p96, %p97
    %s99 = ssub.s32 %s16, %s28
    %s100 = ssub.s32 %s17, %s24
    %s101 = sor.u32 %s99, %s100
    %p102 = scmp.eq.s32.totalorder %s101, 0
    %s104 = sadd.s32 %s103, 1
    %s105 = scalar_select %p102, %s103, %s104
    %p108 = pneg %p102
    %p109 = scmp.eq.s32.totalorder %s9, 1
    %p110 = por %p108, %p109
    %p111 = scmp.ne.s32.totalorder %s103, %s106
    %p112 = scmp.eq.s32.totalorder %s9, 0
    %p113 = por %p111, %p112
    %p114 = scmp.ne.s32.totalorder %s103, %s106
    %p115 = scmp.eq.s32.totalorder %s14, 1
    %p116 = por %p114, %p115
    %p117 = scmp.ne.s32.totalorder %s106, %s107
    %p118 = scmp.eq.s32.totalorder %s14, 0
    %p119 = por %p117, %p118
    %p120 = scmp.ne.s32.totalorder %s106, %s107
    %p121 = scmp.eq.s32.totalorder %s15, 1
    %p122 = por %p120, %p121
    %p124 = scmp.ne.s32.totalorder %s107, %s123
    %p125 = scmp.eq.s32.totalorder %s15, 0
    %p126 = por %p124, %p125
    %p127 = scmp.le.s32.totalorder 1, %s9
    %p128 = scmp.lt.s32.totalorder %s9, 3
    %p129 = pnand %p127, %p128
    %p130 = pneg %p129
    // Predicated region
    $region9: #{propagation_net_forward.18} parent=5 // pred_check
      _
    $region10: #{propagation_net_forward.18} parent=5 // pred_check_branch
      %132 = sbr.rel (%p129) target = $region12
    $region11: #{propagation_net_forward.18} parent=5 // pred_region
      %s133 = ssub.s32 %s9, 1
      // Predicated region
      $region13: #{propagation_net_forward.18} parent=11 // pred_check
        %p134 = pneg %p70
      $region14: #{propagation_net_forward.18} parent=11 // pred_check_branch
        %136 = sbr.rel (%p134) target = $region16
      $region15: #{propagation_net_forward.18} parent=11 // pred_region
        _
      $region16: #{propagation_net_forward.18} parent=11 // pred_fallthru
        _
      // Predicated region
      $region17: #{propagation_net_forward.18} parent=11 // pred_check
        %p137 = pneg %p91
      $region18: #{propagation_net_forward.18} parent=11 // pred_check_branch
        %139 = sbr.rel (%p137) target = $region20
      $region19: #{propagation_net_forward.18} parent=11 // pred_region
        _
      $region20: #{propagation_net_forward.18} parent=11 // pred_fallthru
        _
    $region12: #{propagation_net_forward.18} parent=5 // pred_fallthru
      _
    %p140 = scmp.lt.s32.totalorder %s9, 2
    // Predicated region
    $region21: #{propagation_net_forward.18} parent=5 // pred_check
      %p141 = pneg %p140
    $region22: #{propagation_net_forward.18} parent=5 // pred_check_branch
      %143 = sbr.rel (%p141) target = $region24
    $region23: #{propagation_net_forward.18} parent=5 // pred_region
      // Predicated region
      $region25: #{propagation_net_forward.18} parent=23 // pred_check
        %p144 = pneg %p43
      $region26: #{propagation_net_forward.18} parent=23 // pred_check_branch
        %146 = sbr.rel (%p144) target = $region28
      $region27: #{propagation_net_forward.18} parent=23 // pred_region
        %p147 = scmp.lt.s32.totalorder %s16, 1
        %s148 = scalar_select %p147, %s16, 1
        %p149 = scmp.lt.s32.totalorder %s17, 0
        %s150 = scalar_select %p149, %s17, 0
        %s151 = smul.addr %s148, 18
        %s152 = sadd.s32 %s150, %s151
        %s153 = smul.addr %s152, 4
        %s154 = scalar_lea.vmem %s0, %s153
      $region28: #{propagation_net_forward.18} parent=23 // pred_fallthru
        _
    $region24: #{propagation_net_forward.18} parent=5 // pred_fallthru
      _
    %p155 = scmp.le.s32.totalorder 1, %s9
    %p156 = scmp.lt.s32.totalorder %s9, 3
    %p157 = pnand %p155, %p156
    %p158 = pneg %p157
    // Predicated region
    $region29: #{propagation_net_forward.18} parent=5 // pred_check
      _
    $region30: #{propagation_net_forward.18} parent=5 // pred_check_branch
      %160 = sbr.rel (%p157) target = $region32
    $region31: #{propagation_net_forward.18} parent=5 // pred_region
      %s161 = ssub.s32 %s9, 1
      %p162 = scmp.lt.s32.totalorder %s18, 1
      %s163 = scalar_select %p162, %s18, 1
      %p164 = scmp.lt.s32.totalorder %s19, 0
      %s165 = scalar_select %p164, %s19, 0
      %s166 = smul.addr %s163, 18
      %s167 = sadd.s32 %s165, %s166
      %s168 = smul.addr %s167, 4
      %s169 = scalar_lea.vmem %s0, %s168
      %p170 = pneg %p49
      %p171 = pneg %p46
      %p172 = pneg %p70
      %p173 = pneg %p67
      %p174 = pneg %p91
      %p175 = pneg %p88
      %p176 = pneg %p119
      %p177 = pneg %p116
      %p178 = scmp.lt.s32.totalorder %s18, 1
      %s179 = scalar_select %p178, %s18, 1
      %p180 = scmp.lt.s32.totalorder %s19, 0
      %s181 = scalar_select %p180, %s19, 0
      %s182 = sadd.s32 %s181, %s179
      %s183 = smul.addr %s182, 4
      %s184 = scalar_lea.vmem %s3, %s183
      %p185 = scmp.lt.s32.totalorder %s18, 1
      %s186 = scalar_select %p185, %s18, 1
      %p187 = scmp.lt.s32.totalorder %s19, 0
      %s188 = scalar_select %p187, %s19, 0
      %s189 = smul.addr %s186, 18
      %s190 = sadd.s32 %s188, %s189
      %s191 = smul.addr %s190, 4
      %s192 = scalar_lea.vmem %s0, %s191
      %p193 = scmp.lt.s32.totalorder %s18, 1
      %s194 = scalar_select %p193, %s18, 1
      %p195 = scmp.lt.s32.totalorder %s19, 0
      %s196 = scalar_select %p195, %s19, 0
      %s197 = sadd.s32 %s196, %s194
      %s198 = smul.addr %s197, 4
      %s199 = scalar_lea.vmem %s3, %s198
      %v201 = vld [vmem:[%s1] sm:$0xff]
      %v202 = vld [vmem:[%s192] sm:$0xf]
      %v203 = vld [vmem:[%s192 + $0x4] sm:$0xf]
      %v204 = vld [vmem:[%s192 + $0x8] sm:$0xf]
      %v205 = vld [vmem:[%s192 + $0xc] sm:$0xf]
      %v206 = vld [vmem:[%s192 + $0x10] sm:$0xf]
      %v207 = vld [vmem:[%s192 + $0x14] sm:$0xf]
      %v208 = vld [vmem:[%s192 + $0x18] sm:$0xf]
      %v209 = vld [vmem:[%s192 + $0x1c] sm:$0xf]
      %v210 = vld [vmem:[%s192 + $0x20] sm:$0xf]
      %v211 = vld [vmem:[%s192 + $0x24] sm:$0xf]
      %v212 = vld [vmem:[%s192 + $0x28] sm:$0xf]
      %v213 = vld [vmem:[%s192 + $0x2c] sm:$0xf]
      %v214 = vld [vmem:[%s192 + $0x30] sm:$0xf]
      %v215 = vld [vmem:[%s192 + $0x34] sm:$0xf]
      %v216 = vld [vmem:[%s192 + $0x38] sm:$0xf]
      %v217 = vld [vmem:[%s192 + $0x3c] sm:$0xf]
      %v218 = vld [vmem:[%s192 + $0x40] sm:$0xf]
      %v219 = vld [vmem:[%s192 + $0x44] sm:$0xf]
      %v220 = vld [vmem:[%s2] sm:$0xff]
      %222 = vset.pattern.permute.xlu0 0
      %223 = vperm.xlu0 %222, %v220
      %v224 = vpop.permute.xlu0 %223
      %v227 = vunpack.c.l.b16 %v201
      %v228 = vunpack.c.h.b16 %v201
      %v229 = vpack.c.b16 %v227, %v227
      %v230 = vpack.c.b16 %v228, %v228
      %v250 = vunpack.c.l.b16 %v202
      %v251 = vunpack.c.l.b16 %v203
      %v252 = vunpack.c.l.b16 %v204
      %v253 = vunpack.c.l.b16 %v205
      %v254 = vunpack.c.l.b16 %v206
      %v255 = vunpack.c.l.b16 %v207
      %v256 = vunpack.c.l.b16 %v208
      %v257 = vunpack.c.l.b16 %v209
      %v258 = vunpack.c.l.b16 %v210
      %v259 = vunpack.c.l.b16 %v211
      %v260 = vunpack.c.l.b16 %v212
      %v261 = vunpack.c.l.b16 %v213
      %v262 = vunpack.c.l.b16 %v214
      %v263 = vunpack.c.l.b16 %v215
      %v264 = vunpack.c.l.b16 %v216
      %v265 = vunpack.c.l.b16 %v217
      %v266 = vunpack.c.l.b16 %v218
      %v267 = vunpack.c.l.b16 %v219
      %v268 = vpack.c.b16 %v251, %v250
      %v269 = vpack.c.b16 %v253, %v252
      %v270 = vpack.c.b16 %v255, %v254
      %v271 = vpack.c.b16 %v257, %v256
      %v272 = vpack.c.b16 %v259, %v258
      %v273 = vpack.c.b16 %v261, %v260
      %v274 = vpack.c.b16 %v263, %v262
      %v275 = vpack.c.b16 %v265, %v264
      %v276 = vpack.c.b16 %v267, %v266
      %vm286 = vcmask 130048
      %v288 = vsel %vm286, %v230, 0
      %290 = vmatpush.bf16.msra.mxu0 %v275
      %291 = vmatpush.bf16.msra.mxu0 %v274
      %292 = vmatpush.bf16.msra.mxu0 %v273
      %293 = vmatpush.bf16.msra.mxu0 %v272
      %294 = vmatpush.bf16.msra.mxu0 %v271
      %295 = vmatpush.bf16.msra.mxu0 %v270
      %296 = vmatpush.bf16.msra.mxu0 %v269
      %297 = vmatpush.bf16.msra.mxu0 %v268
      %298 = vmatmul.bf16.gmra.mxu0 %v229
      %v299 = vpop.f32.mrf.mxu0
      %v300 = vadd.f32 %v224, %v299
      %v301 = vpop.f32.mrf.mxu0
      %302 = vdwg.mxu0
      %303 = vmatpush.bf16.msra.mxu0 0
      %304 = vmatpush.bf16.msra.mxu0 0
      %305 = vmatpush.bf16.msra.mxu0 0
      %306 = vmatpush.bf16.msra.mxu0 0
      %307 = vmatpush.bf16.msra.mxu0 0
      %308 = vmatpush.bf16.msra.mxu0 0
      %309 = vmatpush.bf16.msra.mxu0 0
      %310 = vmatpush.bf16.msra.mxu0 %v276
      %311 = vmatmul.bf16.gmra.mxu0 %v288
      %v312 = vpop.f32.mrf.mxu0
      %v313 = vadd.f32 %v300, %v312
      %v314 = vpop.f32.mrf.mxu0
      %315 = vdwg.mxu0
      %v316 = vmax.f32 %v313, 0.0
      %v317 = vpack.c.bf16 %v316, %v316
      %318 = vst [vmem:[%s199] sm:$0xf] %v317
      %p319 = scmp.lt.s32.totalorder %s18, 1
      %s320 = scalar_select %p319, %s18, 1
      %p321 = scmp.lt.s32.totalorder %s19, 0
      %s322 = scalar_select %p321, %s19, 0
      %s323 = sadd.s32 %s322, %s320
      %s324 = smul.addr %s323, 4
      %s325 = scalar_lea.vmem %s3, %s324
      // Predicated region
      $region33: #{propagation_net_forward.18} parent=31 // pred_check
        %p326 = pneg %p116
      $region34: #{propagation_net_forward.18} parent=31 // pred_check_branch
        %328 = sbr.rel (%p326) target = $region36
      $region35: #{propagation_net_forward.18} parent=31 // pred_region
        _
      $region36: #{propagation_net_forward.18} parent=31 // pred_fallthru
        _
    $region32: #{propagation_net_forward.18} parent=5 // pred_fallthru
      _
    %p329 = scmp.le.s32.totalorder 2, %s9
    // Predicated region
    $region37: #{propagation_net_forward.18} parent=5 // pred_check
      %p330 = pneg %p329
    $region38: #{propagation_net_forward.18} parent=5 // pred_check_branch
      %332 = sbr.rel (%p330) target = $region40
    $region39: #{propagation_net_forward.18} parent=5 // pred_region
      %s333 = ssub.s32 %s9, 2
      // Predicated region
      $region41: #{propagation_net_forward.18} parent=39 // pred_check
        %p334 = pneg %p122
      $region42: #{propagation_net_forward.18} parent=39 // pred_check_branch
        %336 = sbr.rel (%p334) target = $region44
      $region43: #{propagation_net_forward.18} parent=39 // pred_region
        %p337 = scmp.lt.s32.totalorder %s20, 1
        %s338 = scalar_select %p337, %s20, 1
        %p339 = scmp.lt.s32.totalorder %s21, 0
        %s340 = scalar_select %p339, %s21, 0
        %s341 = sadd.s32 %s340, %s338
        %s342 = smul.addr %s341, 4
        %s343 = scalar_lea.vmem %s3, %s342
      $region44: #{propagation_net_forward.18} parent=39 // pred_fallthru
        _
    $region40: #{propagation_net_forward.18} parent=5 // pred_fallthru
      _
  $region6: #{propagation_net_forward.18} parent=0 // loop_footer
    %s13 = sadd.s32 1, %s9
  $region7: #{propagation_net_forward.18} parent=0 // loop_footer_branch
    %8 = sbr.rel target = $region3
  $region8: #{propagation_net_forward.18} parent=0 // loop_exit
    _

// kernel: propagation_net_forward.19
$region0: #{propagation_net_forward.19}
  #allocation0 [shape = 'u32[]', space=smem, size = 0x4, offset = 0x4, fixed_abs, tag = 'smem constant byte address 0x4 - core index']
  #allocation1 [shape = 'u32[72,128]{1,0:T(1,128)}', space=vmem, size = 0x9000, scoped, tag = 'internal scratch']
  %s0 = inlined_call_operand.vmem [shape: bf16[2,72,128], index: 0, kind: input, shape index: {}]
  %s1 = inlined_call_operand.vmem [shape: bf16[9,72], index: 1, kind: input, shape index: {}]
  %s2 = inlined_call_operand.vmem [shape: f32[2,9,128], index: 2, kind: input, shape index: {}]
  %s3 = inlined_call_operand.vmem [shape: f32[2,1,128], index: 3, kind: output, shape index: {}]
  %s4 = sld [smem:[#allocation0]]
  $region45: #{propagation_net_forward.19} parent=0
    _
  %s6 = ssub.s32 1, %s4
  %s7 = scalar_select 0, %s6, %s4
  loop: start=0, step=1, limit=4
  $region2: #{propagation_net_forward.19} parent=0 // loop_pre_header
    _
  $region3: #{propagation_net_forward.19} parent=0 // loop_header
    %s9 = sphi 0, %s13
    %p10 = scmp.ge.s32.totalorder %s9, 4
    %s16 = sphi 0, %s28
    %s17 = sphi 0, %s24
    %s18 = sphi 0, %s16
    %s19 = sphi 0, %s17
    %s20 = sphi 0, %s18
    %s21 = sphi 0, %s19
    %s33 = sphi 0, %s35
    %s36 = sphi 0, %s33
    %s37 = sphi 0, %s36
    %s53 = sphi 0, %s37
    %s57 = sphi 0, %s57
    %s59 = sphi 0, %s57
    %s60 = sphi 0, %s59
    %s74 = sphi 0, %s60
    %s82 = sphi 0, %s84
    %s85 = sphi 0, %s82
    %s86 = sphi 0, %s85
    %s102 = sphi 0, %s86
    %s110 = sphi 0, %s112
    %s113 = sphi 0, %s110
    %s114 = sphi 0, %s113
    %s130 = sphi 0, %s114
  $region4: #{propagation_net_forward.19} parent=0 // loop_header_branch
    %12 = sbr.rel (%p10) target = $region8
  $region5: #{propagation_net_forward.19} parent=0 // loop_body
    %s14 = ssub.s32 %s9, 1
    %s15 = ssub.s32 %s9, 2
    %s22 = sadd.s32 1, %s17
    %p23 = scmp.ge.s32.totalorder %s22, 1
    %s24 = scalar_select %p23, 0, %s22
    %s25 = sadd.s32 1, %s16
    %s26 = scalar_select %p23, %s25, %s16
    %p27 = scmp.ge.s32.totalorder %s26, 2
    %s28 = scalar_select %p27, 0, %s26
    %s29 = ssub.s32 %s16, %s28
    %s30 = ssub.s32 %s17, %s24
    %s31 = sor.u32 %s29, %s30
    %p32 = scmp.eq.s32.totalorder %s31, 0
    %s34 = sadd.s32 %s33, 1
    %s35 = scalar_select %p32, %s33, %s34
    %p38 = pneg %p32
    %p39 = scmp.eq.s32.totalorder %s9, 1
    %p40 = por %p38, %p39
    %p41 = scmp.ne.s32.totalorder %s33, %s36
    %p42 = scmp.eq.s32.totalorder %s9, 0
    %p43 = por %p41, %p42
    %p44 = scmp.ne.s32.totalorder %s33, %s36
    %p45 = scmp.eq.s32.totalorder %s14, 1
    %p46 = por %p44, %p45
    %p47 = scmp.ne.s32.totalorder %s36, %s37
    %p48 = scmp.eq.s32.totalorder %s14, 0
    %p49 = por %p47, %p48
    %p50 = scmp.ne.s32.totalorder %s36, %s37
    %p51 = scmp.eq.s32.totalorder %s15, 1
    %p52 = por %p50, %p51
    %p54 = scmp.ne.s32.totalorder %s37, %s53
    %p55 = scmp.eq.s32.totalorder %s15, 0
    %p56 = por %p54, %p55
    %s58 = sadd.s32 %s57, 1
    %p61 = scmp.eq.s32.totalorder %s9, 1
    %p62 = scmp.ne.s32.totalorder %s57, %s59
    %p63 = scmp.eq.s32.totalorder %s9, 0
    %p64 = por %p62, %p63
    %p65 = scmp.ne.s32.totalorder %s57, %s59
    %p66 = scmp.eq.s32.totalorder %s14, 1
    %p67 = por %p65, %p66
    %p68 = scmp.ne.s32.totalorder %s59, %s60
    %p69 = scmp.eq.s32.totalorder %s14, 0
    %p70 = por %p68, %p69
    %p71 = scmp.ne.s32.totalorder %s59, %s60
    %p72 = scmp.eq.s32.totalorder %s15, 1
    %p73 = por %p71, %p72
    %p75 = scmp.ne.s32.totalorder %s60, %s74
    %p76 = scmp.eq.s32.totalorder %s15, 0
    %p77 = por %p75, %p76
    %s78 = ssub.s32 %s16, %s28
    %s79 = ssub.s32 %s17, %s24
    %s80 = sor.u32 %s78, %s79
    %p81 = scmp.eq.s32.totalorder %s80, 0
    %s83 = sadd.s32 %s82, 1
    %s84 = scalar_select %p81, %s82, %s83
    %p87 = pneg %p81
    %p88 = scmp.eq.s32.totalorder %s9, 1
    %p89 = por %p87, %p88
    %p90 = scmp.ne.s32.totalorder %s82, %s85
    %p91 = scmp.eq.s32.totalorder %s9, 0
    %p92 = por %p90, %p91
    %p93 = scmp.ne.s32.totalorder %s82, %s85
    %p94 = scmp.eq.s32.totalorder %s14, 1
    %p95 = por %p93, %p94
    %p96 = scmp.ne.s32.totalorder %s85, %s86
    %p97 = scmp.eq.s32.totalorder %s14, 0
    %p98 = por %p96, %p97
    %p99 = scmp.ne.s32.totalorder %s85, %s86
    %p100 = scmp.eq.s32.totalorder %s15, 1
    %p101 = por %p99, %p100
    %p103 = scmp.ne.s32.totalorder %s86, %s102
    %p104 = scmp.eq.s32.totalorder %s15, 0
    %p105 = por %p103, %p104
    %s106 = ssub.s32 %s16, %s28
    %s107 = ssub.s32 %s17, %s24
    %s108 = sor.u32 %s106, %s107
    %p109 = scmp.eq.s32.totalorder %s108, 0
    %s111 = sadd.s32 %s110, 1
    %s112 = scalar_select %p109, %s110, %s111
    %p115 = pneg %p109
    %p116 = scmp.eq.s32.totalorder %s9, 1
    %p117 = por %p115, %p116
    %p118 = scmp.ne.s32.totalorder %s110, %s113
    %p119 = scmp.eq.s32.totalorder %s9, 0
    %p120 = por %p118, %p119
    %p121 = scmp.ne.s32.totalorder %s110, %s113
    %p122 = scmp.eq.s32.totalorder %s14, 1
    %p123 = por %p121, %p122
    %p124 = scmp.ne.s32.totalorder %s113, %s114
    %p125 = scmp.eq.s32.totalorder %s14, 0
    %p126 = por %p124, %p125
    %p127 = scmp.ne.s32.totalorder %s113, %s114
    %p128 = scmp.eq.s32.totalorder %s15, 1
    %p129 = por %p127, %p128
    %p131 = scmp.ne.s32.totalorder %s114, %s130
    %p132 = scmp.eq.s32.totalorder %s15, 0
    %p133 = por %p131, %p132
    %p134 = scmp.le.s32.totalorder 1, %s9
    %p135 = scmp.lt.s32.totalorder %s9, 3
    %p136 = pnand %p134, %p135
    %p137 = pneg %p136
    // Predicated region
    $region9: #{propagation_net_forward.19} parent=5 // pred_check
      _
    $region10: #{propagation_net_forward.19} parent=5 // pred_check_branch
      %139 = sbr.rel (%p136) target = $region12
    $region11: #{propagation_net_forward.19} parent=5 // pred_region
      %s140 = ssub.s32 %s9, 1
      // Predicated region
      $region13: #{propagation_net_forward.19} parent=11 // pred_check
        %p141 = pneg %p70
      $region14: #{propagation_net_forward.19} parent=11 // pred_check_branch
        %143 = sbr.rel (%p141) target = $region16
      $region15: #{propagation_net_forward.19} parent=11 // pred_region
        _
      $region16: #{propagation_net_forward.19} parent=11 // pred_fallthru
        _
    $region12: #{propagation_net_forward.19} parent=5 // pred_fallthru
      _
    %p144 = scmp.lt.s32.totalorder %s9, 2
    // Predicated region
    $region17: #{propagation_net_forward.19} parent=5 // pred_check
      %p145 = pneg %p144
    $region18: #{propagation_net_forward.19} parent=5 // pred_check_branch
      %147 = sbr.rel (%p145) target = $region20
    $region19: #{propagation_net_forward.19} parent=5 // pred_region
      // Predicated region
      $region21: #{propagation_net_forward.19} parent=19 // pred_check
        %p148 = pneg %p43
      $region22: #{propagation_net_forward.19} parent=19 // pred_check_branch
        %150 = sbr.rel (%p148) target = $region24
      $region23: #{propagation_net_forward.19} parent=19 // pred_region
        %p151 = scmp.lt.s32.totalorder %s16, 1
        %s152 = scalar_select %p151, %s16, 1
        %p153 = scmp.lt.s32.totalorder %s17, 0
        %s154 = scalar_select %p153, %s17, 0
        %s155 = smul.addr %s152, 9
        %s156 = sadd.s32 %s154, %s155
        %s157 = smul.addr %s156, 4
        %s158 = scalar_lea.vmem %s0, %s157
      $region24: #{propagation_net_forward.19} parent=19 // pred_fallthru
        _
      // Predicated region
      $region25: #{propagation_net_forward.19} parent=19 // pred_check
        %p159 = pneg %p92
      $region26: #{propagation_net_forward.19} parent=19 // pred_check_branch
        %161 = sbr.rel (%p159) target = $region28
      $region27: #{propagation_net_forward.19} parent=19 // pred_region
        %p162 = scmp.lt.s32.totalorder %s16, 1
        %s163 = scalar_select %p162, %s16, 1
        %p164 = scmp.lt.s32.totalorder %s17, 0
        %s165 = scalar_select %p164, %s17, 0
        %s166 = smul.addr %s163, 2
        %s167 = sadd.s32 %s165, %s166
        %s168 = smul.addr %s167, 8
        %s169 = scalar_lea.vmem %s2, %s168
      $region28: #{propagation_net_forward.19} parent=19 // pred_fallthru
        _
    $region20: #{propagation_net_forward.19} parent=5 // pred_fallthru
      _
    %p170 = scmp.le.s32.totalorder 1, %s9
    %p171 = scmp.lt.s32.totalorder %s9, 3
    %p172 = pnand %p170, %p171
    %p173 = pneg %p172
    // Predicated region
    $region29: #{propagation_net_forward.19} parent=5 // pred_check
      _
    $region30: #{propagation_net_forward.19} parent=5 // pred_check_branch
      %175 = sbr.rel (%p172) target = $region32
    $region31: #{propagation_net_forward.19} parent=5 // pred_region
      %s176 = ssub.s32 %s9, 1
      %p177 = scmp.lt.s32.totalorder %s18, 1
      %s178 = scalar_select %p177, %s18, 1
      %p179 = scmp.lt.s32.totalorder %s19, 0
      %s180 = scalar_select %p179, %s19, 0
      %s181 = smul.addr %s178, 9
      %s182 = sadd.s32 %s180, %s181
      %s183 = smul.addr %s182, 4
      %s184 = scalar_lea.vmem %s0, %s183
      %p185 = pneg %p49
      %p186 = pneg %p46
      %p187 = pneg %p70
      %p188 = pneg %p67
      %p189 = scmp.lt.s32.totalorder %s18, 1
      %s190 = scalar_select %p189, %s18, 1
      %p191 = scmp.lt.s32.totalorder %s19, 0
      %s192 = scalar_select %p191, %s19, 0
      %s193 = smul.addr %s190, 2
      %s194 = sadd.s32 %s192, %s193
      %s195 = smul.addr %s194, 8
      %s196 = scalar_lea.vmem %s2, %s195
      %p197 = pneg %p98
      %p198 = pneg %p95
      %p199 = pneg %p126
      %p200 = pneg %p123
      %p201 = scmp.lt.s32.totalorder %s18, 1
      %s202 = scalar_select %p201, %s18, 1
      %p203 = scmp.lt.s32.totalorder %s19, 0
      %s204 = scalar_select %p203, %s19, 0
      %s205 = sadd.s32 %s204, %s202
      %s206 = scalar_lea.vmem %s3, %s205
      %p207 = scmp.lt.s32.totalorder %s18, 1
      %s208 = scalar_select %p207, %s18, 1
      %p209 = scmp.lt.s32.totalorder %s19, 0
      %s210 = scalar_select %p209, %s19, 0
      %s211 = smul.addr %s208, 9
      %s212 = sadd.s32 %s210, %s211
      %s213 = smul.addr %s212, 4
      %s214 = scalar_lea.vmem %s0, %s213
      %p215 = scmp.lt.s32.totalorder %s18, 1
      %s216 = scalar_select %p215, %s18, 1
      %p217 = scmp.lt.s32.totalorder %s19, 0
      %s218 = scalar_select %p217, %s19, 0
      %s219 = smul.addr %s216, 2
      %s220 = sadd.s32 %s218, %s219
      %s221 = smul.addr %s220, 8
      %s222 = scalar_lea.vmem %s2, %s221
      %p223 = scmp.lt.s32.totalorder %s18, 1
      %s224 = scalar_select %p223, %s18, 1
      %p225 = scmp.lt.s32.totalorder %s19, 0
      %s226 = scalar_select %p225, %s19, 0
      %s227 = sadd.s32 %s226, %s224
      %s228 = scalar_lea.vmem %s3, %s227
      %v230 = vld [vmem:[%s1] sm:$0xf]
      %v231 = vld [vmem:[%s1 + $0x4] sm:$0x1]
      %v232 = vld [vmem:[%s214] sm:$0xf]
      %v233 = vld [vmem:[%s214 + $0x4] sm:$0xf]
      %v234 = vld [vmem:[%s214 + $0x8] sm:$0xf]
      %v235 = vld [vmem:[%s214 + $0xc] sm:$0xf]
      %v236 = vld [vmem:[%s214 + $0x10] sm:$0xf]
      %v237 = vld [vmem:[%s214 + $0x14] sm:$0xf]
      %v238 = vld [vmem:[%s214 + $0x18] sm:$0xf]
      %v239 = vld [vmem:[%s214 + $0x1c] sm:$0xf]
      %v240 = vld [vmem:[%s214 + $0x20] sm:$0xf]
      %v243 = vunpack.c.l.b16 %v230
      %v244 = vunpack.c.l.b16 %v231
      %v245 = vpack.c.b16 %v244, %v243
      %v255 = vunpack.c.l.b16 %v232
      %v256 = vunpack.c.l.b16 %v233
      %v257 = vunpack.c.l.b16 %v234
      %v258 = vunpack.c.l.b16 %v235
      %v259 = vunpack.c.l.b16 %v236
      %v260 = vunpack.c.l.b16 %v237
      %v261 = vunpack.c.l.b16 %v238
      %v262 = vunpack.c.l.b16 %v239
      %v263 = vunpack.c.l.b16 %v240
      %v264 = vpack.c.b16 %v256, %v255
      %v265 = vpack.c.b16 %v258, %v257
      %v266 = vpack.c.b16 %v260, %v259
      %v267 = vpack.c.b16 %v262, %v261
      %v268 = vpack.c.b16 %v263, %v263
      %vm273 = vcmask 588800
      %v275 = vsel %vm273, %v245, 0
      %vm277 = vcmask 1043456
      %v279 = vsel %vm277, %v268, 0
      %281 = vmatpush.bf16.msra.mxu0 0
      %282 = vmatpush.bf16.msra.mxu0 0
      %283 = vmatpush.bf16.msra.mxu0 0
      %284 = vmatpush.bf16.msra.mxu0 %v279
      %285 = vmatpush.bf16.msra.mxu0 %v267
      %286 = vmatpush.bf16.msra.mxu0 %v266
      %287 = vmatpush.bf16.msra.mxu0 %v265
      %288 = vmatpush.bf16.msra.mxu0 %v264
      %289 = vmatmul.bf16.gmra.mxu0 %v275
      %v290 = vpop.f32.mrf.mxu0
      %v291 = vadd.f32 0.0, %v290
      %v292 = vpop.f32.mrf.mxu0
      %v293 = vadd.f32 0.0, %v292
      %294 = vdwg.mxu0
      %vm295 = vcmask 1040384
      %v296 = vsel %vm295, %v293, -inf
      %v297 = vmax.f32 %v291, %v296
      %v298 = vrot.slane %v297, 4
      %v299 = vmax.f32 %v297, %v298
      %v300 = vrot.slane %v299, 2
      %v301 = vmax.f32 %v299, %v300
      %v302 = vrot.slane %v301, 1
      %v303 = vmax.f32 %v301, %v302
      %v304 = vsub.f32 %v291, %v303
      %v305 = vsub.f32 %v293, %v303
      %v306 = vmul.f32 %v304, 1.442695
      %v307 = vpow.pop %v306
      %v308 = vmul.f32 %v305, 1.442695
      %v309 = vpow.pop %v308
      %v310 = vsel %vm295, %v309, 0.0
      %v311 = vadd.f32 %v307, %v310
      %v312 = vrot.slane %v311, 4
      %v313 = vadd.f32 %v311, %v312
      %v314 = vrot.slane %v313, 2
      %v315 = vadd.f32 %v313, %v314
      %v316 = vrot.slane %v315, 1
      %v317 = vadd.f32 %v315, %v316
      %v318 = vrcp.pop %v317
      %v319 = vmul.f32 %v307, %v318
      %v320 = vmul.f32 %v309, %v318
      %v321 = vld [vmem:[%s222] sm:$0xff]
      %v322 = vld [vmem:[%s222 + $0x8] sm:$0x1]
      %v323 = vmul.f32 %v319, %v321
      %v324 = vmul.f32 %v320, %v322
      %v325 = vsel %vm295, %v324, 0.0
      %v326 = vadd.f32 %v323, %v325
      %v327 = vrot.slane %v326, 4
      %v328 = vadd.f32 %v326, %v327
      %v329 = vrot.slane %v328, 2
      %v330 = vadd.f32 %v328, %v329
      %v331 = vrot.slane %v330, 1
      %v332 = vadd.f32 %v330, %v331
      %333 = vst [vmem:[%s228] sm:$0x1] %v332
      %p334 = scmp.lt.s32.totalorder %s18, 1
      %s335 = scalar_select %p334, %s18, 1
      %p336 = scmp.lt.s32.totalorder %s19, 0
      %s337 = scalar_select %p336, %s19, 0
      %s338 = sadd.s32 %s337, %s335
      %s339 = scalar_lea.vmem %s3, %s338
      // Predicated region
      $region33: #{propagation_net_forward.19} parent=31 // pred_check
        %p340 = pneg %p123
      $region34: #{propagation_net_forward.19} parent=31 // pred_check_branch
        %342 = sbr.rel (%p340) target = $region36
      $region35: #{propagation_net_forward.19} parent=31 // pred_region
        _
      $region36: #{propagation_net_forward.19} parent=31 // pred_fallthru
        _
    $region32: #{propagation_net_forward.19} parent=5 // pred_fallthru
      _
    %p343 = scmp.le.s32.totalorder 2, %s9
    // Predicated region
    $region37: #{propagation_net_forward.19} parent=5 // pred_check
      %p344 = pneg %p343
    $region38: #{propagation_net_forward.19} parent=5 // pred_check_branch
      %346 = sbr.rel (%p344) target = $region40
    $region39: #{propagation_net_forward.19} parent=5 // pred_region
      %s347 = ssub.s32 %s9, 2
      // Predicated region
      $region41: #{propagation_net_forward.19} parent=39 // pred_check
        %p348 = pneg %p129
      $region42: #{propagation_net_forward.19} parent=39 // pred_check_branch
        %350 = sbr.rel (%p348) target = $region44
      $region43: #{propagation_net_forward.19} parent=39 // pred_region
        %p351 = scmp.lt.s32.totalorder %s20, 1
        %s352 = scalar_select %p351, %s20, 1
        %p353 = scmp.lt.s32.totalorder %s21, 0
        %s354 = scalar_select %p353, %s21, 0
        %s355 = sadd.s32 %s354, %s352
        %s356 = scalar_lea.vmem %s3, %s355
      $region44: #{propagation_net_forward.19} parent=39 // pred_fallthru
        _
    $region40: #{propagation_net_forward.19} parent=5 // pred_fallthru
      _
  $region6: #{propagation_net_forward.19} parent=0 // loop_footer
    %s13 = sadd.s32 1, %s9
  $region7: #{propagation_net_forward.19} parent=0 // loop_footer_branch
    %8 = sbr.rel target = $region3
  $region8: #{propagation_net_forward.19} parent=0 // loop_exit
    _

</llo_original>
